<compile_context>
chip_gen: v7x
topology: tpu7x:2x2x1
jax: 0.10.0
libtpu: 0.0.40
codegen_flags: <defaults>
</compile_context>

<pallas_src>
import jax
import jax.numpy as jnp
from jax.experimental import pallas as pl
from jax.experimental.pallas import tpu as pltpu

HIDDEN = 64
NUM_HEADS = 8
HEAD_DIM = HIDDEN // NUM_HEADS
KV_IN = 48                    # 8 neighbours * 6 features
GATE_W = 3 * HIDDEN           # packed i|g|o gates
KV_W = 2 * HEAD_DIM           # packed [K|V] lane width per head
HEAD_SLAB_ROWS = 144          # sublane-aligned sections, see prepare_params


def lstm_att_kernel(x0_ref, nb0_ref, wg_ref, wh_ref, out_ref):
    f32 = jnp.float32
    bs = x0_ref.shape[0]

    x0 = x0_ref[...]                                    # (bs, 6)
    nb0 = nb0_ref[...]                                  # (bs, 48)

    # ---- LSTM step t = 0: gates i|g|o in one (bs,6)@(6,192) matmul ----
    z = jnp.dot(x0, wg_ref[0:6, :], preferred_element_type=f32) + wg_ref[6:7, :]
    i_g = jax.nn.sigmoid(z[:, 0:HIDDEN])
    g_g = jnp.tanh(z[:, HIDDEN:2 * HIDDEN])
    o_g = jax.nn.sigmoid(z[:, 2 * HIDDEN:3 * HIDDEN])
    h0 = o_g * jnp.tanh(i_g * g_g)                      # (bs, 64)

    # ---- per-head weight slab slices (all sublane-aligned, static) ----
    wq3 = wh_ref[:, 0:64, :]        # (8, 64, 16)  scaled Wq in lanes 0:8 | zeros
    wkv3 = wh_ref[:, 64:112, :]     # (8, 48, 16)  Wk lanes 0:8 | Wv lanes 8:16
    bq3 = wh_ref[:, 112:113, :]     # (8, 1, 16)
    bkv3 = wh_ref[:, 120:121, :]    # (8, 1, 16)
    wf3 = wh_ref[:, 128:144, 0:2]   # (8, 16, 2)   zero K-half | folded (64->2)

    # ---- head-batched Q and packed [K|V] projections ----
    h0b = jnp.broadcast_to(h0[None, :, :], (NUM_HEADS, bs, HIDDEN))
    nbb = jnp.broadcast_to(nb0[None, :, :], (NUM_HEADS, bs, KV_IN))
    qh = jnp.einsum('hbi,hie->hbe', h0b, wq3, preferred_element_type=f32) + bq3
    kvh = jnp.einsum('hbi,hie->hbe', nbb, wkv3, preferred_element_type=f32) + bkv3

    # ---- attention over the batch dimension (L = S = bs), 8 heads batched ----
    # qh's upper 8 lanes are exactly zero, so contracting the packed [K|V]
    # block over all 16 lanes reduces to Q.K per head (Q is pre-scaled).
    s = jnp.einsum('hbe,hce->hbc', qh, kvh, preferred_element_type=f32)   # (8,bs,bs)
    m = jnp.max(s, axis=-1, keepdims=True)
    e = jnp.exp(s - m)
    inv = pl.reciprocal(jnp.sum(e, axis=-1, keepdims=True), approx=True)
    a = e * inv

    # A @ [K|V]: lanes 8:16 hold the per-head attention output; the dead K
    # half in lanes 0:8 is killed by wf3's zero rows in the folded projection.
    ovh = jnp.einsum('hbc,hce->hbe', a, kvh, preferred_element_type=f32)  # (8,bs,16)
    fh = jnp.einsum('hbe,heo->hbo', ovh, wf3, preferred_element_type=f32)  # (8,bs,2)
    out_ref[...] = jnp.sum(fh, axis=0) + wg_ref[7:8, 0:2]                  # (bs, 2)


def init_params(key):
    ks = iter(jax.random.split(key, 48))

    def w(shape, s=0.1):
        return jax.random.normal(next(ks), shape, jnp.float32) * s

    p = {}
    p['w_hist_emb'] = w((32, 6));   p['b_hist_emb'] = w((32,), 0.05)
    p['w_ih'] = w((256, 32));       p['w_hh'] = w((256, 64))
    p['b_ih'] = w((256,), 0.05);    p['b_hh'] = w((256,), 0.05)
    p['w_pose'] = w((32, 48));      p['b_pose'] = w((32,), 0.05)
    p['w_q_emb'] = w((64, 64));     p['b_q_emb'] = w((64,), 0.05)
    p['w_k_emb'] = w((64, 32));     p['b_k_emb'] = w((64,), 0.05)
    p['w_v_emb'] = w((64, 32));     p['b_v_emb'] = w((64,), 0.05)
    p['in_proj_w'] = w((192, 64));  p['in_proj_b'] = w((192,), 0.05)
    p['out_proj_w'] = w((64, 64));  p['out_proj_b'] = w((64,), 0.05)
    p['w_d1'] = w((32, 64));        p['b_d1'] = w((32,), 0.05)
    p['bn1_gamma'] = 1.0 + w((32,), 0.1); p['bn1_beta'] = w((32,), 0.05)
    p['bn1_mean'] = w((32,), 0.05);       p['bn1_var'] = 1.0 + jnp.abs(w((32,), 0.1))
    p['w_d2'] = w((8, 32));         p['b_d2'] = w((8,), 0.05)
    p['bn2_gamma'] = 1.0 + w((8,), 0.1);  p['bn2_beta'] = w((8,), 0.05)
    p['bn2_mean'] = w((8,), 0.05);        p['bn2_var'] = 1.0 + jnp.abs(w((8,), 0.1))
    p['w_d3'] = w((2, 8));          p['b_d3'] = w((2,), 0.05)
    return p


def prepare_params(p):
    """Fold + pack all module weights into two slabs.  Runs ONCE, off the
    per-call path (review: hoist the folding math out of the forward)."""
    f32 = jnp.float32
    hp = jax.lax.Precision.HIGHEST
    H = HIDDEN

    def dot(a, b):
        return jnp.dot(a, b, precision=hp)

    # hist_emb -> LSTM input-side gates (h0 = c0 = 0 kills W_hh + forget gate).
    Wg_full = dot(p['w_hist_emb'].T, p['w_ih'].T)                           # (6, 256)
    bg_full = dot(p['b_hist_emb'][None, :], p['w_ih'].T)[0] + p['b_ih'] + p['b_hh']
    # PyTorch gate order is i | f | g | o ; keep the live i, g, o gates packed.
    Wg = jnp.concatenate([Wg_full[:, 0:H], Wg_full[:, 2 * H:3 * H],
                          Wg_full[:, 3 * H:4 * H]], axis=1)                 # (6, 192)
    bg = jnp.concatenate([bg_full[0:H], bg_full[2 * H:3 * H], bg_full[3 * H:4 * H]])

    wq_i, wk_i, wv_i = jnp.split(p['in_proj_w'], 3, axis=0)
    bq_i, bk_i, bv_i = jnp.split(p['in_proj_b'], 3, axis=0)

    # q_emb -> MHA Q in-projection.
    Wq = dot(p['w_q_emb'].T, wq_i.T)                                        # (64, 64)
    bq = dot(p['b_q_emb'][None, :], wq_i.T)[0] + bq_i
    # pose_embed -> k/v_emb -> MHA K/V in-projections.
    Wk = dot(dot(p['w_pose'].T, p['w_k_emb'].T), wk_i.T)                    # (48, 64)
    bk = dot(dot(p['b_pose'][None, :], p['w_k_emb'].T) + p['b_k_emb'][None, :], wk_i.T)[0] + bk_i
    Wv = dot(dot(p['w_pose'].T, p['w_v_emb'].T), wv_i.T)                    # (48, 64)
    bv = dot(dot(p['b_pose'][None, :], p['w_v_emb'].T) + p['b_v_emb'][None, :], wv_i.T)[0] + bv_i

    # out_proj + dec: Linear/BN/Linear/BN/Linear, all affine in eval mode
    # (the PyTorch Sequential has no activation), so fold to (64, 2) + (2,).
    eps = 1e-5
    bn1_s = p['bn1_gamma'] / jnp.sqrt(p['bn1_var'] + eps)
    bn1_b = p['bn1_beta'] - p['bn1_mean'] * bn1_s
    bn2_s = p['bn2_gamma'] / jnp.sqrt(p['bn2_var'] + eps)
    bn2_b = p['bn2_beta'] - p['bn2_mean'] * bn2_s

    Wf, bf = p['out_proj_w'].T, p['out_proj_b']
    Wf, bf = dot(Wf, p['w_d1'].T), dot(bf[None, :], p['w_d1'].T)[0] + p['b_d1']
    Wf, bf = Wf * bn1_s[None, :], bf * bn1_s + bn1_b
    Wf, bf = dot(Wf, p['w_d2'].T), dot(bf[None, :], p['w_d2'].T)[0] + p['b_d2']
    Wf, bf = Wf * bn2_s[None, :], bf * bn2_s + bn2_b
    Wf, bf = dot(Wf, p['w_d3'].T), dot(bf[None, :], p['w_d3'].T)[0] + p['b_d3']  # (64,2),(2,)

    scale = 1.0 / (HEAD_DIM ** 0.5)

    def to_heads(W, b):  # (in, 64), (64,) -> (8, in, 8), (8, 8)
        return (W.reshape(W.shape[0], NUM_HEADS, HEAD_DIM).transpose(1, 0, 2),
                b.reshape(NUM_HEADS, HEAD_DIM))

    Wq3, bq3 = to_heads(Wq * scale, bq * scale)
    Wk3, bk3 = to_heads(Wk, bk)
    Wv3, bv3 = to_heads(Wv, bv)
    Wf3 = Wf.reshape(NUM_HEADS, HEAD_DIM, 2)

    # Slab 1: gates + fold bias  (8, 192)
    wg_slab = jnp.zeros((8, GATE_W), f32)
    wg_slab = wg_slab.at[0:6, :].set(Wg)
    wg_slab = wg_slab.at[6, :].set(bg)
    wg_slab = wg_slab.at[7, 0:2].set(bf)

    # Slab 2: per-head weights  (8, 144, 16), sublane-aligned sections.
    wh_slab = jnp.zeros((NUM_HEADS, HEAD_SLAB_ROWS, KV_W), f32)
    wh_slab = wh_slab.at[:, 0:64, 0:8].set(Wq3)          # Q (pre-scaled), lanes 8:16 zero
    wh_slab = wh_slab.at[:, 64:112, 0:8].set(Wk3)        # K
    wh_slab = wh_slab.at[:, 64:112, 8:16].set(Wv3)       # V
    wh_slab = wh_slab.at[:, 112, 0:8].set(bq3)
    wh_slab = wh_slab.at[:, 120, 0:8].set(bk3)
    wh_slab = wh_slab.at[:, 120, 8:16].set(bv3)
    wh_slab = wh_slab.at[:, 136:144, 0:2].set(Wf3)       # rows 128:136 stay zero (K-half)
    return {'wg_slab': wg_slab, 'wh_slab': wh_slab}


def lstm_att_forward(self_hist, neigb, packed):
    bs, T, _ = self_hist.shape
    NN = neigb.shape[1]
    assert NN == T, "nn.MultiheadAttention (batch_first=False) requires num_n == T here"
    # TODO(synk): the `num_n == 0` fallback branch of encode_edge_att is not reproduced.
    f32 = jnp.float32
    x0 = self_hist[:, 0, :].astype(f32)                  # (bs, 6)   only t = 0 is live
    nb0 = neigb[:, 0].reshape(bs, -1).astype(f32)        # (bs, 48)  only neighbour 0 is live

    vmem = pl.BlockSpec(memory_space=pltpu.MemorySpace.VMEM)
    return pl.pallas_call(
        lstm_att_kernel,
        out_shape=jax.ShapeDtypeStruct((bs, 2), f32),
        in_specs=[vmem, vmem, vmem, vmem],
        out_specs=vmem,
    )(x0, nb0, packed['wg_slab'], packed['wh_slab'])


def reference_forward(self_hist, neigb, p):
    """Pure-JAX mirror of the FULL PyTorch module (eval mode), for validation."""
    bs, T, _ = self_hist.shape
    NN = neigb.shape[1]
    H = HIDDEN
    e = self_hist @ p['w_hist_emb'].T + p['b_hist_emb']
    h = jnp.zeros((bs, H)); c = jnp.zeros((bs, H))
    outs = []
    for t in range(T):
        g = e[:, t, :] @ p['w_ih'].T + h @ p['w_hh'].T + p['b_ih'] + p['b_hh']
        i_ = jax.nn.sigmoid(g[:, :H]); f_ = jax.nn.sigmoid(g[:, H:2 * H])
        gg = jnp.tanh(g[:, 2 * H:3 * H]); o_ = jax.nn.sigmoid(g[:, 3 * H:])
        c = f_ * c + i_ * gg
        h = o_ * jnp.tanh(c)
        outs.append(h)
    enc = jnp.stack(outs, axis=1)                          # (bs, T, 64)
    nbe = neigb.reshape(bs, NN, -1) @ p['w_pose'].T + p['b_pose']
    q = enc @ p['w_q_emb'].T + p['b_q_emb']                # (L=bs, N=T, E)
    k = nbe @ p['w_k_emb'].T + p['b_k_emb']                # (S=bs, N=NN, E)
    v = nbe @ p['w_v_emb'].T + p['b_v_emb']
    wq, wk, wv = jnp.split(p['in_proj_w'], 3, axis=0)
    bq, bk, bv = jnp.split(p['in_proj_b'], 3, axis=0)
    Q = q @ wq.T + bq; K = k @ wk.T + bk; V = v @ wv.T + bv
    L, N = Q.shape[0], Q.shape[1]; S = K.shape[0]
    Q4 = Q.reshape(L, N, NUM_HEADS, HEAD_DIM).transpose(1, 2, 0, 3)
    K4 = K.reshape(S, N, NUM_HEADS, HEAD_DIM).transpose(1, 2, 0, 3)
    V4 = V.reshape(S, N, NUM_HEADS, HEAD_DIM).transpose(1, 2, 0, 3)
    s = jnp.einsum('nhld,nhsd->nhls', Q4 / jnp.sqrt(HEAD_DIM), K4)
    pm = jax.nn.softmax(s, axis=-1)
    o4 = jnp.einsum('nhls,nhsd->nhld', pm, V4)
    o = o4.transpose(2, 0, 1, 3).reshape(L, N, H)
    attn_out = o @ p['out_proj_w'].T + p['out_proj_b']
    enc_scene = attn_out[:, 0, :]
    eps = 1e-5
    bn1_s = p['bn1_gamma'] / jnp.sqrt(p['bn1_var'] + eps)
    bn1_b = p['bn1_beta'] - p['bn1_mean'] * bn1_s
    bn2_s = p['bn2_gamma'] / jnp.sqrt(p['bn2_var'] + eps)
    bn2_b = p['bn2_beta'] - p['bn2_mean'] * bn2_s
    d = enc_scene @ p['w_d1'].T + p['b_d1']
    d = d * bn1_s + bn1_b
    d = d @ p['w_d2'].T + p['b_d2']
    d = d * bn2_s + bn2_b
    d = d @ p['w_d3'].T + p['b_d3']
    return d


if __name__ == "__main__":
    key = jax.random.PRNGKey(0)
    kp, kx, kn = jax.random.split(key, 3)
    params = init_params(kp)
    packed = prepare_params(params)          # fold + pack once, off the per-call path

    bs, T, NN = 2, 8, 8
    self_hist = jax.random.normal(kx, (bs, T, 6), jnp.float32)
    neigb = jax.random.normal(kn, (bs, NN, 8, 6), jnp.float32)

    fwd = jax.jit(lstm_att_forward)
    out = jax.block_until_ready(fwd(self_hist, neigb, packed))
    assert out.shape == (bs, 2)

    with jax.default_matmul_precision("float32"):
        ref = jax.block_until_ready(reference_forward(self_hist, neigb, params))
    assert jnp.allclose(out, ref, atol=1e-2, rtol=1e-2), (out, ref)

    print("KERNEL_OK")
</pallas_src>

<mosaic_0001>
module attributes {stable_mosaic.version = 11 : i64} {
  func.func @lstm_att_kernel(%arg0: memref<2x6xf32, #tpu.memory_space<vmem>>, %arg1: memref<2x48xf32, #tpu.memory_space<vmem>>, %arg2: memref<8x192xf32, #tpu.memory_space<vmem>>, %arg3: memref<8x144x16xf32, #tpu.memory_space<vmem>>, %arg4: memref<2x2xf32, #tpu.memory_space<vmem>>) attributes {dimension_semantics = [], scalar_prefetch = 0 : i64, scratch_operands = 0 : i64, tpu.core_type = #tpu.core_type<tc>} {
    %c0 = arith.constant 0 : index
    %c0_0 = arith.constant 0 : index
    %0 = vector.load %arg0[%c0, %c0_0] : memref<2x6xf32, #tpu.memory_space<vmem>>, vector<2x6xf32>
    %c0_1 = arith.constant 0 : index
    %c0_2 = arith.constant 0 : index
    %1 = vector.load %arg1[%c0_1, %c0_2] : memref<2x48xf32, #tpu.memory_space<vmem>>, vector<2x48xf32>
    %c0_3 = arith.constant 0 : index
    %c0_4 = arith.constant 0 : index
    %2 = vector.load %arg2[%c0_3, %c0_4] : memref<8x192xf32, #tpu.memory_space<vmem>>, vector<6x192xf32>
    %cst = arith.constant dense<0.000000e+00> : vector<2x192xf32>
    %3 = tpu.matmul %0, %2, %cst {dimension_numbers = #tpu.dot_dimension_numbers<[1], [0], [0], [1], [0, 0, 1, 1], [], []>} : vector<2x6xf32>, vector<6x192xf32>, vector<2x192xf32> -> vector<2x192xf32>
    %c6 = arith.constant 6 : index
    %c0_5 = arith.constant 0 : index
    %4 = vector.load %arg2[%c6, %c0_5] : memref<8x192xf32, #tpu.memory_space<vmem>>, vector<1x192xf32>
    %5 = vector.broadcast %4 : vector<1x192xf32> to vector<2x192xf32>
    %6 = arith.addf %3, %5 : vector<2x192xf32>
    %7 = vector.extract_strided_slice %6 {offsets = [0, 0], sizes = [2, 64], strides = [1, 1]} : vector<2x192xf32> to vector<2x64xf32>
    %8 = arith.negf %7 : vector<2x64xf32>
    %9 = math.exp %8 : vector<2x64xf32>
    %cst_6 = arith.constant 1.000000e+00 : f32
    %10 = vector.broadcast %cst_6 : f32 to vector<2x64xf32>
    %11 = arith.addf %10, %9 : vector<2x64xf32>
    %12 = arith.divf %10, %11 : vector<2x64xf32>
    %13 = vector.extract_strided_slice %6 {offsets = [0, 64], sizes = [2, 64], strides = [1, 1]} : vector<2x192xf32> to vector<2x64xf32>
    %14 = math.tanh %13 : vector<2x64xf32>
    %15 = vector.extract_strided_slice %6 {offsets = [0, 128], sizes = [2, 64], strides = [1, 1]} : vector<2x192xf32> to vector<2x64xf32>
    %16 = arith.negf %15 : vector<2x64xf32>
    %17 = math.exp %16 : vector<2x64xf32>
    %cst_7 = arith.constant 1.000000e+00 : f32
    %18 = vector.broadcast %cst_7 : f32 to vector<2x64xf32>
    %19 = arith.addf %18, %17 : vector<2x64xf32>
    %20 = arith.divf %18, %19 : vector<2x64xf32>
    %21 = arith.mulf %12, %14 : vector<2x64xf32>
    %22 = math.tanh %21 : vector<2x64xf32>
    %23 = arith.mulf %20, %22 : vector<2x64xf32>
    %c0_8 = arith.constant 0 : index
    %c0_9 = arith.constant 0 : index
    %c0_10 = arith.constant 0 : index
    %24 = vector.load %arg3[%c0_8, %c0_9, %c0_10] : memref<8x144x16xf32, #tpu.memory_space<vmem>>, vector<8x64x16xf32>
    %c0_11 = arith.constant 0 : index
    %c64 = arith.constant 64 : index
    %c0_12 = arith.constant 0 : index
    %25 = vector.load %arg3[%c0_11, %c64, %c0_12] : memref<8x144x16xf32, #tpu.memory_space<vmem>>, vector<8x48x16xf32>
    %c0_13 = arith.constant 0 : index
    %c112 = arith.constant 112 : index
    %c0_14 = arith.constant 0 : index
    %26 = vector.load %arg3[%c0_13, %c112, %c0_14] : memref<8x144x16xf32, #tpu.memory_space<vmem>>, vector<8x1x16xf32>
    %c0_15 = arith.constant 0 : index
    %c120 = arith.constant 120 : index
    %c0_16 = arith.constant 0 : index
    %27 = vector.load %arg3[%c0_15, %c120, %c0_16] : memref<8x144x16xf32, #tpu.memory_space<vmem>>, vector<8x1x16xf32>
    %c0_17 = arith.constant 0 : index
    %c128 = arith.constant 128 : index
    %c0_18 = arith.constant 0 : index
    %28 = vector.load %arg3[%c0_17, %c128, %c0_18] : memref<8x144x16xf32, #tpu.memory_space<vmem>>, vector<8x16x2xf32>
    %29 = vector.shape_cast %23 : vector<2x64xf32> to vector<1x2x64xf32>
    %30 = vector.shape_cast %29 : vector<1x2x64xf32> to vector<1x2x64xf32>
    %31 = vector.broadcast %30 : vector<1x2x64xf32> to vector<8x2x64xf32>
    %32 = vector.shape_cast %1 : vector<2x48xf32> to vector<1x2x48xf32>
    %33 = vector.shape_cast %32 : vector<1x2x48xf32> to vector<1x2x48xf32>
    %34 = vector.broadcast %33 : vector<1x2x48xf32> to vector<8x2x48xf32>
    "tpu.trace_start"() <{level = 10 : i32, message = "hbi,hie->hbe"}> : () -> ()
    %cst_19 = arith.constant dense<0.000000e+00> : vector<8x2x16xf32>
    %35 = tpu.matmul %31, %24, %cst_19 {dimension_numbers = #tpu.dot_dimension_numbers<[2], [1], [1], [2], [0, 0, 0, 1, 1, 2], [0], [0]>} : vector<8x2x64xf32>, vector<8x64x16xf32>, vector<8x2x16xf32> -> vector<8x2x16xf32>
    "tpu.trace_stop"() : () -> ()
    %36 = vector.broadcast %26 : vector<8x1x16xf32> to vector<8x2x16xf32>
    %37 = arith.addf %35, %36 : vector<8x2x16xf32>
    "tpu.trace_start"() <{level = 10 : i32, message = "hbi,hie->hbe"}> : () -> ()
    %cst_20 = arith.constant dense<0.000000e+00> : vector<8x2x16xf32>
    %38 = tpu.matmul %34, %25, %cst_20 {dimension_numbers = #tpu.dot_dimension_numbers<[2], [1], [1], [2], [0, 0, 0, 1, 1, 2], [0], [0]>} : vector<8x2x48xf32>, vector<8x48x16xf32>, vector<8x2x16xf32> -> vector<8x2x16xf32>
    "tpu.trace_stop"() : () -> ()
    %39 = vector.broadcast %27 : vector<8x1x16xf32> to vector<8x2x16xf32>
    %40 = arith.addf %38, %39 : vector<8x2x16xf32>
    "tpu.trace_start"() <{level = 10 : i32, message = "hbe,hce->hbc"}> : () -> ()
    %cst_21 = arith.constant dense<0.000000e+00> : vector<8x2x2xf32>
    %41 = tpu.matmul %37, %40, %cst_21 {dimension_numbers = #tpu.dot_dimension_numbers<[2], [2], [1], [1], [0, 0, 0, 1, 1, 1], [0], [0]>} : vector<8x2x16xf32>, vector<8x2x16xf32>, vector<8x2x2xf32> -> vector<8x2x2xf32>
    "tpu.trace_stop"() : () -> ()
    %cst_22 = arith.constant dense<0xFF800000> : vector<8x2xf32>
    %42 = vector.multi_reduction <maximumf>, %41, %cst_22 [2] : vector<8x2x2xf32> to vector<8x2xf32>
    %43 = vector.shape_cast %42 : vector<8x2xf32> to vector<8x2x1xf32>
    %44 = vector.broadcast %43 : vector<8x2x1xf32> to vector<8x2x2xf32>
    %45 = arith.subf %41, %44 : vector<8x2x2xf32>
    %46 = math.exp %45 : vector<8x2x2xf32>
    %cst_23 = arith.constant dense<0.000000e+00> : vector<8x2xf32>
    %47 = vector.multi_reduction <add>, %46, %cst_23 [2] : vector<8x2x2xf32> to vector<8x2xf32>
    %48 = vector.shape_cast %47 : vector<8x2xf32> to vector<8x2x1xf32>
    %49 = tpu.reciprocal %48 {approx = true} : vector<8x2x1xf32> -> vector<8x2x1xf32>
    %50 = vector.broadcast %49 : vector<8x2x1xf32> to vector<8x2x2xf32>
    %51 = arith.mulf %46, %50 : vector<8x2x2xf32>
    "tpu.trace_start"() <{level = 10 : i32, message = "hbc,hce->hbe"}> : () -> ()
    %cst_24 = arith.constant dense<0.000000e+00> : vector<8x2x16xf32>
    %52 = tpu.matmul %51, %40, %cst_24 {dimension_numbers = #tpu.dot_dimension_numbers<[2], [1], [1], [2], [0, 0, 0, 1, 1, 2], [0], [0]>} : vector<8x2x2xf32>, vector<8x2x16xf32>, vector<8x2x16xf32> -> vector<8x2x16xf32>
    "tpu.trace_stop"() : () -> ()
    "tpu.trace_start"() <{level = 10 : i32, message = "hbe,heo->hbo"}> : () -> ()
    %cst_25 = arith.constant dense<0.000000e+00> : vector<8x2x2xf32>
    %53 = tpu.matmul %52, %28, %cst_25 {dimension_numbers = #tpu.dot_dimension_numbers<[2], [1], [1], [2], [0, 0, 0, 1, 1, 2], [0], [0]>} : vector<8x2x16xf32>, vector<8x16x2xf32>, vector<8x2x2xf32> -> vector<8x2x2xf32>
    "tpu.trace_stop"() : () -> ()
    %cst_26 = arith.constant dense<0.000000e+00> : vector<2x2xf32>
    %54 = vector.multi_reduction <add>, %53, %cst_26 [0] : vector<8x2x2xf32> to vector<2x2xf32>
    %c7 = arith.constant 7 : index
    %c0_27 = arith.constant 0 : index
    %55 = vector.load %arg2[%c7, %c0_27] : memref<8x192xf32, #tpu.memory_space<vmem>>, vector<1x2xf32>
    %56 = vector.broadcast %55 : vector<1x2xf32> to vector<2x2xf32>
    %57 = arith.addf %54, %56 : vector<2x2xf32>
    %c0_28 = arith.constant 0 : index
    %c0_29 = arith.constant 0 : index
    %58 = vector.load %arg4[%c0_28, %c0_29] : memref<2x2xf32, #tpu.memory_space<vmem>>, vector<2x2xf32>
    tpu.vector_store %arg4[%c0_28, %c0_29], %57 {strides = array<i32>} : memref<2x2xf32, #tpu.memory_space<vmem>>, vector<2x2xf32>,
    return
  }
}

</mosaic_0001>

<llo_original>
// kernel: squeeze.3
$region0: #{squeeze.3}
  %s0 = inlined_call_operand.vmem [shape: f32[2,1,8,6], index: 0, kind: input, shape index: {}]
  %s1 = inlined_call_operand.vmem [shape: f32[2,48], index: 1, kind: output, shape index: {}]
  $region1: #{squeeze.3} parent=0
    #allocation0 [shape = 'u8[4096]{0}', space=vmem, size = 0x1000, scoped, tag = 'scoped mem for output reshape']
    %s2 = smov 3
    %v3 = vld [vmem:[%s0] ss:$8 sm:%s2]
    %vm4 = vcmask 48128
    %5 = vst.msk [vmem:[#allocation0] sm:$0x3] %vm4, %v3
    %s6 = scalar_lea.vmem %s0, 7
    %s7 = smov 3
    %v8 = vld [vmem:[%s6] ss:$8 sm:%s7]
    %9 = vrot.lane.b32.xlu0 %v8, 42
    %v10 = vpop.permute.xlu0 %9
    %vm11 = vcmask 392528
    %12 = vst.msk [vmem:[#allocation0] sm:$0x3] %vm11, %v10
    %s13 = scalar_lea.vmem %s0, 6
    %s14 = smov 3
    %v15 = vld [vmem:[%s13] ss:$8 sm:%s14]
    %16 = vrot.lane.b32.xlu0 %v15, 36
    %v17 = vpop.permute.xlu0 %16
    %vm18 = vcmask 343328
    %19 = vst.msk [vmem:[#allocation0] sm:$0x3] %vm18, %v17
    %s20 = scalar_lea.vmem %s0, 5
    %s21 = smov 3
    %v22 = vld [vmem:[%s20] ss:$8 sm:%s21]
    %23 = vrot.lane.b32.xlu0 %v22, 30
    %v24 = vpop.permute.xlu0 %23
    %vm25 = vcmask 294128
    %26 = vst.msk [vmem:[#allocation0] sm:$0x3] %vm25, %v24
    %s27 = scalar_lea.vmem %s0, 4
    %s28 = smov 3
    %v29 = vld [vmem:[%s27] ss:$8 sm:%s28]
    %30 = vrot.lane.b32.xlu0 %v29, 24
    %v31 = vpop.permute.xlu0 %30
    %vm32 = vcmask 244928
    %33 = vst.msk [vmem:[#allocation0] sm:$0x3] %vm32, %v31
    %s34 = scalar_lea.vmem %s0, 3
    %s35 = smov 3
    %v36 = vld [vmem:[%s34] ss:$8 sm:%s35]
    %37 = vrot.lane.b32.xlu0 %v36, 18
    %v38 = vpop.permute.xlu0 %37
    %vm39 = vcmask 195728
    %40 = vst.msk [vmem:[#allocation0] sm:$0x3] %vm39, %v38
    %s41 = scalar_lea.vmem %s0, 2
    %s42 = smov 3
    %v43 = vld [vmem:[%s41] ss:$8 sm:%s42]
    %44 = vrot.lane.b32.xlu0 %v43, 12
    %v45 = vpop.permute.xlu0 %44
    %vm46 = vcmask 146528
    %47 = vst.msk [vmem:[#allocation0] sm:$0x3] %vm46, %v45
    %s48 = scalar_lea.vmem %s0, 1
    %s49 = smov 3
    %v50 = vld [vmem:[%s48] ss:$8 sm:%s49]
    %51 = vrot.lane.b32.xlu0 %v50, 6
    %v52 = vpop.permute.xlu0 %51
    %vm53 = vcmask 97328
    %54 = vst.msk [vmem:[#allocation0] sm:$0x3] %vm53, %v52
    %s56 = sshllo.u32 0, 2
    %v58 = vld [vmem:[#allocation0] sm:%s56]
    %s59 = sshllo.u32 0, 2
    %60 = vst [vmem:[%s1] sm:%s59] %v58

// kernel: lstm_att_forward.1
$region0: #{lstm_att_forward.1}
  #allocation0 [shape = 'u32[]', space=smem, size = 0x4, offset = 0x4, fixed_abs, tag = 'smem constant byte address 0x4 - core index']
  #allocation1 [shape = 'u32[144,128]{1,0:T(1,128)}', space=vmem, size = 0x12000, scoped, tag = 'internal scratch']
  %s0 = inlined_call_operand.vmem [shape: f32[2,6], index: 0, kind: input, shape index: {}]
  %s1 = inlined_call_operand.vmem [shape: f32[2,48], index: 1, kind: input, shape index: {}]
  %s2 = inlined_call_operand.vmem [shape: f32[8,192], index: 2, kind: input, shape index: {}]
  %s3 = inlined_call_operand.vmem [shape: f32[8,144,16], index: 3, kind: input, shape index: {}]
  %s4 = inlined_call_operand.hbm [shape: f32[2,2], index: 4, kind: output, shape index: {}]
  %s5 = sld [smem:[#allocation0]]
  $region26: #{lstm_att_forward.1} parent=0
    _
  %s7 = ssub.s32 1, %s5
  %s8 = scalar_select 0, %s7, %s5
  $region1: #{lstm_att_forward.1} parent=0
    #allocation2 [shape = 'u8[1024]{0}', space=vmem, size = 0x400, scoped, tag = 'output window, operand 0, single buffered']
    #allocation3 [shape = 's32[1]{0}', space=sflag, size = 0x4, scoped, tag = 'scoped memory for lstm_att_forward.1']
    %9 = vsyncpa [#allocation3], 0
    // Predicated region
    $region2: #{lstm_att_forward.1} parent=1 // pred_check
      _
    $region3: #{lstm_att_forward.1} parent=1 // pred_check_branch
      %11 = sbr.rel (0) target = $region5
    $region4: #{lstm_att_forward.1} parent=1 // pred_region
      _
    $region5: #{lstm_att_forward.1} parent=1 // pred_fallthru
      _
    // Predicated region
    $region6: #{lstm_att_forward.1} parent=1 // pred_check
      _
    $region7: #{lstm_att_forward.1} parent=1 // pred_check_branch
      %13 = sbr.rel (0) target = $region9
    $region8: #{lstm_att_forward.1} parent=1 // pred_region
      _
    $region9: #{lstm_att_forward.1} parent=1 // pred_fallthru
      _
    // Predicated region
    $region10: #{lstm_att_forward.1} parent=1 // pred_check
      _
    $region11: #{lstm_att_forward.1} parent=1 // pred_check_branch
      %15 = sbr.rel (0) target = $region13
    $region12: #{lstm_att_forward.1} parent=1 // pred_region
      _
    $region13: #{lstm_att_forward.1} parent=1 // pred_fallthru
      _
    // Predicated region
    $region14: #{lstm_att_forward.1} parent=1 // pred_check
      _
    $region15: #{lstm_att_forward.1} parent=1 // pred_check_branch
      %17 = sbr.rel (0) target = $region17
    $region16: #{lstm_att_forward.1} parent=1 // pred_region
      _
    $region17: #{lstm_att_forward.1} parent=1 // pred_fallthru
      _
    %v18 = vld [vmem:[%s0] sm:$0x3]
    %v19 = vld [vmem:[%s1] sm:$0x3]
    %v20 = vld [vmem:[%s2] sm:$0x3f]
    %v21 = vld [vmem:[%s2 + $0x8] sm:$0x3f]
    %s22 = scalar_lea.vmem %s2, 6
    %v23 = vld [vmem:[%s22] ss:$8 sm:$0x3]
    %v25 = vlaneseq
    %v26 = vshrl.u32 %v25, 7
    %v27 = vsub.s32 0, %v26
    %v28 = vrot.slane %v23, %v27
    %v29 = vlaneseq
    %v30 = vshrl.u32 %v29, 7
    %v31 = vsub.s32 1, %v30
    %v32 = vrot.slane %v23, %v31
    %vm35 = vcmask 48128
    %v37 = vsel %vm35, %v18, 0
    %vm39 = vcmask 1045504
    %v41 = vsel %vm39, %v20, 0
    %v44 = vsel %vm39, %v21, 0
    %46 = vmatprep.subr.mxu0 %v44
    %47 = vmatpush1.msra.mxu0 %v41
    %48 = vmatprep.subr.mxu0 0.0
    %49 = vmatpush1.msra.mxu0 0.0
    %50 = vmatprep.subr.mxu0 0.0
    %51 = vmatpush1.msra.mxu0 0.0
    %52 = vmatprep.subr.mxu0 0.0
    %53 = vmatpush1.msra.mxu0 0.0
    %54 = vmatprep.subr.mxu0 0.0
    %55 = vmatpush1.msra.mxu0 0.0
    %56 = vmatprep.subr.mxu0 0.0
    %57 = vmatpush1.msra.mxu0 0.0
    %58 = vmatprep.subr.mxu0 0.0
    %59 = vmatpush1.msra.mxu0 0.0
    %60 = vmatprep.subr.mxu0 0.0
    %61 = vmatpush1.msra.mxu0 0.0
    %62 = vmatprep.subr.mxu0 0.0
    %63 = vmatpush1.msra.mxu0 0.0
    %64 = vmatprep.subr.mxu0 0.0
    %65 = vmatpush1.msra.mxu0 0.0
    %66 = vmatprep.subr.mxu0 0.0
    %67 = vmatpush1.msra.mxu0 0.0
    %68 = vmatprep.subr.mxu0 0.0
    %69 = vmatpush1.msra.mxu0 0.0
    %70 = vmatprep.subr.mxu0 0.0
    %71 = vmatpush1.msra.mxu0 0.0
    %72 = vmatprep.subr.mxu0 0.0
    %73 = vmatpush1.msra.mxu0 0.0
    %74 = vmatprep.subr.mxu0 0.0
    %75 = vmatpush1.msra.mxu0 0.0
    %76 = vmatprep.subr.mxu0 0.0
    %77 = vmatpush1.msra.mxu0 0.0
    %78 = vmatprep.subr.mxu0 0.0
    %79 = vmatpush1.msra.mxu0 0.0
    %80 = vmatprep.subr.mxu0 0.0
    %81 = vmatpush1.msra.mxu0 0.0
    %82 = vmatprep.subr.mxu0 0.0
    %83 = vmatpush1.msra.mxu0 0.0
    %84 = vmatprep.subr.mxu0 0.0
    %85 = vmatpush1.msra.mxu0 0.0
    %86 = vmatprep.subr.mxu0 0.0
    %87 = vmatpush1.msra.mxu0 0.0
    %88 = vmatprep.subr.mxu0 0.0
    %89 = vmatpush1.msra.mxu0 0.0
    %90 = vmatprep.subr.mxu0 0.0
    %91 = vmatpush1.msra.mxu0 0.0
    %92 = vmatprep.subr.mxu0 0.0
    %93 = vmatpush1.msra.mxu0 0.0
    %94 = vmatprep.subr.mxu0 0.0
    %95 = vmatpush1.msra.mxu0 0.0
    %96 = vmatprep.subr.mxu0 0.0
    %97 = vmatpush1.msra.mxu0 0.0
    %98 = vmatprep.subr.mxu0 0.0
    %99 = vmatpush1.msra.mxu0 0.0
    %100 = vmatprep.subr.mxu0 0.0
    %101 = vmatpush1.msra.mxu0 0.0
    %102 = vmatprep.subr.mxu0 0.0
    %103 = vmatpush1.msra.mxu0 0.0
    %104 = vmatprep.subr.mxu0 0.0
    %105 = vmatpush1.msra.mxu0 0.0
    %106 = vmatprep.subr.mxu0 0.0
    %107 = vmatpush1.msra.mxu0 0.0
    %108 = vmatprep.subr.mxu0 0.0
    %109 = vmatpush1.msra.mxu0 0.0
    %110 = vmatprep.mubr.f32.mxu0 0.0
    %111 = vmatmul.mubr.f32.gmra.mrb[0].mxu0 %v37
    %v112 = vpop.f32.mrb[0].mxu0
    %v113 = vadd.f32 %v28, %v112
    %v114 = vpop.f32.mrb[0].mxu0
    %v115 = vadd.f32 %v32, %v114
    %116 = vdwg.mxu0
    %v117 = vxor.u32 %v113, 2147483648
    %v118 = vmul.f32 %v117, 1.442695
    %v119 = vpow.pop %v118
    %v120 = vadd.f32 %v119, 1.0
    %v121 = vrcp.pop %v120
    %v122 = vmul.f32 1.0, %v121
    %v123 = vtanh.pop %v113
    %v124 = vxor.u32 %v115, 2147483648
    %v125 = vmul.f32 %v124, 1.442695
    %v126 = vpow.pop %v125
    %v127 = vadd.f32 %v126, 1.0
    %v128 = vrcp.pop %v127
    %v129 = vmul.f32 1.0, %v128
    %131 = vrot.lane.b32.xlu0 %v123, 64
    %v132 = vpop.permute.xlu0 %131
    %v134 = vmul.f32 %v122, %v132
    %v135 = vtanh.pop %v134
    %v136 = vmul.f32 %v129, %v135
    %v137 = vld [vmem:[%s3] sm:$0xff]
    %v138 = vld [vmem:[%s3 + $0x8] sm:$0xff]
    %v139 = vld [vmem:[%s3 + $0x10] sm:$0xff]
    %v140 = vld [vmem:[%s3 + $0x18] sm:$0xff]
    %v141 = vld [vmem:[%s3 + $0x20] sm:$0xff]
    %v142 = vld [vmem:[%s3 + $0x28] sm:$0xff]
    %v143 = vld [vmem:[%s3 + $0x30] sm:$0xff]
    %v144 = vld [vmem:[%s3 + $0x38] sm:$0xff]
    %v145 = vld [vmem:[%s3 + $0x90] sm:$0xff]
    %v146 = vld [vmem:[%s3 + $0x98] sm:$0xff]
    %v147 = vld [vmem:[%s3 + $0xa0] sm:$0xff]
    %v148 = vld [vmem:[%s3 + $0xa8] sm:$0xff]
    %v149 = vld [vmem:[%s3 + $0xb0] sm:$0xff]
    %v150 = vld [vmem:[%s3 + $0xb8] sm:$0xff]
    %v151 = vld [vmem:[%s3 + $0xc0] sm:$0xff]
    %v152 = vld [vmem:[%s3 + $0xc8] sm:$0xff]
    %v153 = vld [vmem:[%s3 + $0x120] sm:$0xff]
    %v154 = vld [vmem:[%s3 + $0x128] sm:$0xff]
    %v155 = vld [vmem:[%s3 + $0x130] sm:$0xff]
    %v156 = vld [vmem:[%s3 + $0x138] sm:$0xff]
    %v157 = vld [vmem:[%s3 + $0x140] sm:$0xff]
    %v158 = vld [vmem:[%s3 + $0x148] sm:$0xff]
    %v159 = vld [vmem:[%s3 + $0x150] sm:$0xff]
    %v160 = vld [vmem:[%s3 + $0x158] sm:$0xff]
    %v161 = vld [vmem:[%s3 + $0x1b0] sm:$0xff]
    %v162 = vld [vmem:[%s3 + $0x1b8] sm:$0xff]
    %v163 = vld [vmem:[%s3 + $0x1c0] sm:$0xff]
    %v164 = vld [vmem:[%s3 + $0x1c8] sm:$0xff]
    %v165 = vld [vmem:[%s3 + $0x1d0] sm:$0xff]
    %v166 = vld [vmem:[%s3 + $0x1d8] sm:$0xff]
    %v167 = vld [vmem:[%s3 + $0x1e0] sm:$0xff]
    %v168 = vld [vmem:[%s3 + $0x1e8] sm:$0xff]
    %v169 = vld [vmem:[%s3 + $0x240] sm:$0xff]
    %v170 = vld [vmem:[%s3 + $0x248] sm:$0xff]
    %v171 = vld [vmem:[%s3 + $0x250] sm:$0xff]
    %v172 = vld [vmem:[%s3 + $0x258] sm:$0xff]
    %v173 = vld [vmem:[%s3 + $0x260] sm:$0xff]
    %v174 = vld [vmem:[%s3 + $0x268] sm:$0xff]
    %v175 = vld [vmem:[%s3 + $0x270] sm:$0xff]
    %v176 = vld [vmem:[%s3 + $0x278] sm:$0xff]
    %v177 = vld [vmem:[%s3 + $0x2d0] sm:$0xff]
    %v178 = vld [vmem:[%s3 + $0x2d8] sm:$0xff]
    %v179 = vld [vmem:[%s3 + $0x2e0] sm:$0xff]
    %v180 = vld [vmem:[%s3 + $0x2e8] sm:$0xff]
    %v181 = vld [vmem:[%s3 + $0x2f0] sm:$0xff]
    %v182 = vld [vmem:[%s3 + $0x2f8] sm:$0xff]
    %v183 = vld [vmem:[%s3 + $0x300] sm:$0xff]
    %v184 = vld [vmem:[%s3 + $0x308] sm:$0xff]
    %v185 = vld [vmem:[%s3 + $0x360] sm:$0xff]
    %v186 = vld [vmem:[%s3 + $0x368] sm:$0xff]
    %v187 = vld [vmem:[%s3 + $0x370] sm:$0xff]
    %v188 = vld [vmem:[%s3 + $0x378] sm:$0xff]
    %v189 = vld [vmem:[%s3 + $0x380] sm:$0xff]
    %v190 = vld [vmem:[%s3 + $0x388] sm:$0xff]
    %v191 = vld [vmem:[%s3 + $0x390] sm:$0xff]
    %v192 = vld [vmem:[%s3 + $0x398] sm:$0xff]
    %v193 = vld [vmem:[%s3 + $0x3f0] sm:$0xff]
    %v194 = vld [vmem:[%s3 + $0x3f8] sm:$0xff]
    %v195 = vld [vmem:[%s3 + $0x400] sm:$0xff]
    %v196 = vld [vmem:[%s3 + $0x408] sm:$0xff]
    %v197 = vld [vmem:[%s3 + $0x410] sm:$0xff]
    %v198 = vld [vmem:[%s3 + $0x418] sm:$0xff]
    %v199 = vld [vmem:[%s3 + $0x420] sm:$0xff]
    %v200 = vld [vmem:[%s3 + $0x428] sm:$0xff]
    %v201 = vld [vmem:[%s3 + $0x40] sm:$0xff]
    %v202 = vld [vmem:[%s3 + $0x48] sm:$0xff]
    %v203 = vld [vmem:[%s3 + $0x50] sm:$0xff]
    %v204 = vld [vmem:[%s3 + $0x58] sm:$0xff]
    %v205 = vld [vmem:[%s3 + $0x60] sm:$0xff]
    %v206 = vld [vmem:[%s3 + $0x68] sm:$0xff]
    %v207 = vld [vmem:[%s3 + $0xd0] sm:$0xff]
    %v208 = vld [vmem:[%s3 + $0xd8] sm:$0xff]
    %v209 = vld [vmem:[%s3 + $0xe0] sm:$0xff]
    %v210 = vld [vmem:[%s3 + $0xe8] sm:$0xff]
    %v211 = vld [vmem:[%s3 + $0xf0] sm:$0xff]
    %v212 = vld [vmem:[%s3 + $0xf8] sm:$0xff]
    %v213 = vld [vmem:[%s3 + $0x160] sm:$0xff]
    %v214 = vld [vmem:[%s3 + $0x168] sm:$0xff]
    %v215 = vld [vmem:[%s3 + $0x170] sm:$0xff]
    %v216 = vld [vmem:[%s3 + $0x178] sm:$0xff]
    %v217 = vld [vmem:[%s3 + $0x180] sm:$0xff]
    %v218 = vld [vmem:[%s3 + $0x188] sm:$0xff]
    %v219 = vld [vmem:[%s3 + $0x1f0] sm:$0xff]
    %v220 = vld [vmem:[%s3 + $0x1f8] sm:$0xff]
    %v221 = vld [vmem:[%s3 + $0x200] sm:$0xff]
    %v222 = vld [vmem:[%s3 + $0x208] sm:$0xff]
    %v223 = vld [vmem:[%s3 + $0x210] sm:$0xff]
    %v224 = vld [vmem:[%s3 + $0x218] sm:$0xff]
    %v225 = vld [vmem:[%s3 + $0x280] sm:$0xff]
    %v226 = vld [vmem:[%s3 + $0x288] sm:$0xff]
    %v227 = vld [vmem:[%s3 + $0x290] sm:$0xff]
    %v228 = vld [vmem:[%s3 + $0x298] sm:$0xff]
    %v229 = vld [vmem:[%s3 + $0x2a0] sm:$0xff]
    %v230 = vld [vmem:[%s3 + $0x2a8] sm:$0xff]
    %v231 = vld [vmem:[%s3 + $0x310] sm:$0xff]
    %v232 = vld [vmem:[%s3 + $0x318] sm:$0xff]
    %v233 = vld [vmem:[%s3 + $0x320] sm:$0xff]
    %v234 = vld [vmem:[%s3 + $0x328] sm:$0xff]
    %v235 = vld [vmem:[%s3 + $0x330] sm:$0xff]
    %v236 = vld [vmem:[%s3 + $0x338] sm:$0xff]
    %v237 = vld [vmem:[%s3 + $0x3a0] sm:$0xff]
    %v238 = vld [vmem:[%s3 + $0x3a8] sm:$0xff]
    %v239 = vld [vmem:[%s3 + $0x3b0] sm:$0xff]
    %v240 = vld [vmem:[%s3 + $0x3b8] sm:$0xff]
    %v241 = vld [vmem:[%s3 + $0x3c0] sm:$0xff]
    %v242 = vld [vmem:[%s3 + $0x3c8] sm:$0xff]
    %v243 = vld [vmem:[%s3 + $0x430] sm:$0xff]
    %v244 = vld [vmem:[%s3 + $0x438] sm:$0xff]
    %v245 = vld [vmem:[%s3 + $0x440] sm:$0xff]
    %v246 = vld [vmem:[%s3 + $0x448] sm:$0xff]
    %v247 = vld [vmem:[%s3 + $0x450] sm:$0xff]
    %v248 = vld [vmem:[%s3 + $0x458] sm:$0xff]
    %v249 = vld [vmem:[%s3 + $0x70] sm:$0x1]
    %v250 = vld [vmem:[%s3 + $0x100] sm:$0x1]
    %v251 = vld [vmem:[%s3 + $0x190] sm:$0x1]
    %v252 = vld [vmem:[%s3 + $0x220] sm:$0x1]
    %v253 = vld [vmem:[%s3 + $0x2b0] sm:$0x1]
    %v254 = vld [vmem:[%s3 + $0x340] sm:$0x1]
    %v255 = vld [vmem:[%s3 + $0x3d0] sm:$0x1]
    %v256 = vld [vmem:[%s3 + $0x460] sm:$0x1]
    %v257 = vld [vmem:[%s3 + $0x78] sm:$0x1]
    %v258 = vld [vmem:[%s3 + $0x108] sm:$0x1]
    %v259 = vld [vmem:[%s3 + $0x198] sm:$0x1]
    %v260 = vld [vmem:[%s3 + $0x228] sm:$0x1]
    %v261 = vld [vmem:[%s3 + $0x2b8] sm:$0x1]
    %v262 = vld [vmem:[%s3 + $0x348] sm:$0x1]
    %v263 = vld [vmem:[%s3 + $0x3d8] sm:$0x1]
    %v264 = vld [vmem:[%s3 + $0x468] sm:$0x1]
    %v265 = vld [vmem:[%s3 + $0x80] sm:$0xff]
    %v266 = vld [vmem:[%s3 + $0x88] sm:$0xff]
    %v267 = vld [vmem:[%s3 + $0x110] sm:$0xff]
    %v268 = vld [vmem:[%s3 + $0x118] sm:$0xff]
    %v269 = vld [vmem:[%s3 + $0x1a0] sm:$0xff]
    %v270 = vld [vmem:[%s3 + $0x1a8] sm:$0xff]
    %v271 = vld [vmem:[%s3 + $0x230] sm:$0xff]
    %v272 = vld [vmem:[%s3 + $0x238] sm:$0xff]
    %v273 = vld [vmem:[%s3 + $0x2c0] sm:$0xff]
    %v274 = vld [vmem:[%s3 + $0x2c8] sm:$0xff]
    %v275 = vld [vmem:[%s3 + $0x350] sm:$0xff]
    %v276 = vld [vmem:[%s3 + $0x358] sm:$0xff]
    %v277 = vld [vmem:[%s3 + $0x3e0] sm:$0xff]
    %v278 = vld [vmem:[%s3 + $0x3e8] sm:$0xff]
    %v279 = vld [vmem:[%s3 + $0x470] sm:$0xff]
    %v280 = vld [vmem:[%s3 + $0x478] sm:$0xff]
    %v281 = vlaneseq
    %v282 = vshrl.u32 %v281, 7
    %v283 = vsub.s32 0, %v282
    %v284 = vrot.slane %v249, %v283
    %v285 = vlaneseq
    %v286 = vshrl.u32 %v285, 7
    %v287 = vsub.s32 0, %v286
    %v288 = vrot.slane %v250, %v287
    %v289 = vlaneseq
    %v290 = vshrl.u32 %v289, 7
    %v291 = vsub.s32 0, %v290
    %v292 = vrot.slane %v251, %v291
    %v293 = vlaneseq
    %v294 = vshrl.u32 %v293, 7
    %v295 = vsub.s32 0, %v294
    %v296 = vrot.slane %v252, %v295
    %v297 = vlaneseq
    %v298 = vshrl.u32 %v297, 7
    %v299 = vsub.s32 0, %v298
    %v300 = vrot.slane %v253, %v299
    %v301 = vlaneseq
    %v302 = vshrl.u32 %v301, 7
    %v303 = vsub.s32 0, %v302
    %v304 = vrot.slane %v254, %v303
    %v305 = vlaneseq
    %v306 = vshrl.u32 %v305, 7
    %v307 = vsub.s32 0, %v306
    %v308 = vrot.slane %v255, %v307
    %v309 = vlaneseq
    %v310 = vshrl.u32 %v309, 7
    %v311 = vsub.s32 0, %v310
    %v312 = vrot.slane %v256, %v311
    %vm313 = vcmask 523264
    %v315 = vsel %vm313, %v136, 0
    %317 = vmatprep.subr.mxu0 0.0
    %318 = vmatpush1.msra.mxu0 %v137
    %319 = vmatprep.subr.mxu0 0.0
    %320 = vmatpush1.msra.mxu0 %v138
    %321 = vmatprep.subr.mxu0 0.0
    %322 = vmatpush1.msra.mxu0 %v139
    %323 = vmatprep.subr.mxu0 0.0
    %324 = vmatpush1.msra.mxu0 %v140
    %325 = vmatprep.subr.mxu0 0.0
    %326 = vmatpush1.msra.mxu0 %v141
    %327 = vmatprep.subr.mxu0 0.0
    %328 = vmatpush1.msra.mxu0 %v142
    %329 = vmatprep.subr.mxu0 0.0
    %330 = vmatpush1.msra.mxu0 %v143
    %331 = vmatprep.subr.mxu0 0.0
    %332 = vmatpush1.msra.mxu0 %v144
    %333 = vmatprep.subr.mxu0 0.0
    %334 = vmatpush1.msra.mxu0 0.0
    %335 = vmatprep.subr.mxu0 0.0
    %336 = vmatpush1.msra.mxu0 0.0
    %337 = vmatprep.subr.mxu0 0.0
    %338 = vmatpush1.msra.mxu0 0.0
    %339 = vmatprep.subr.mxu0 0.0
    %340 = vmatpush1.msra.mxu0 0.0
    %341 = vmatprep.subr.mxu0 0.0
    %342 = vmatpush1.msra.mxu0 0.0
    %343 = vmatprep.subr.mxu0 0.0
    %344 = vmatpush1.msra.mxu0 0.0
    %345 = vmatprep.subr.mxu0 0.0
    %346 = vmatpush1.msra.mxu0 0.0
    %347 = vmatprep.subr.mxu0 0.0
    %348 = vmatpush1.msra.mxu0 0.0
    %349 = vmatprep.subr.mxu0 0.0
    %350 = vmatpush1.msra.mxu0 0.0
    %351 = vmatprep.subr.mxu0 0.0
    %352 = vmatpush1.msra.mxu0 0.0
    %353 = vmatprep.subr.mxu0 0.0
    %354 = vmatpush1.msra.mxu0 0.0
    %355 = vmatprep.subr.mxu0 0.0
    %356 = vmatpush1.msra.mxu0 0.0
    %357 = vmatprep.subr.mxu0 0.0
    %358 = vmatpush1.msra.mxu0 0.0
    %359 = vmatprep.subr.mxu0 0.0
    %360 = vmatpush1.msra.mxu0 0.0
    %361 = vmatprep.subr.mxu0 0.0
    %362 = vmatpush1.msra.mxu0 0.0
    %363 = vmatprep.subr.mxu0 0.0
    %364 = vmatpush1.msra.mxu0 0.0
    %365 = vmatprep.subr.mxu0 0.0
    %366 = vmatpush1.msra.mxu0 0.0
    %367 = vmatprep.subr.mxu0 0.0
    %368 = vmatpush1.msra.mxu0 0.0
    %369 = vmatprep.subr.mxu0 0.0
    %370 = vmatpush1.msra.mxu0 0.0
    %371 = vmatprep.subr.mxu0 0.0
    %372 = vmatpush1.msra.mxu0 0.0
    %373 = vmatprep.subr.mxu0 0.0
    %374 = vmatpush1.msra.mxu0 0.0
    %375 = vmatprep.subr.mxu0 0.0
    %376 = vmatpush1.msra.mxu0 0.0
    %377 = vmatprep.subr.mxu0 0.0
    %378 = vmatpush1.msra.mxu0 0.0
    %379 = vmatprep.subr.mxu0 0.0
    %380 = vmatpush1.msra.mxu0 0.0
    %381 = vmatprep.mubr.f32.mxu0 0.0
    %382 = vmatmul.mubr.f32.gmra.mrb[0].mxu0 %v315
    %v383 = vpop.f32.mrb[0].mxu0
    %v384 = vadd.f32 %v284, %v383
    %v385 = vpop.f32.mrb[0].mxu0
    %386 = vdwg.mxu0
    %387 = vmatprep.subr.mxu0 0.0
    %388 = vmatpush1.msra.mxu0 %v145
    %389 = vmatprep.subr.mxu0 0.0
    %390 = vmatpush1.msra.mxu0 %v146
    %391 = vmatprep.subr.mxu0 0.0
    %392 = vmatpush1.msra.mxu0 %v147
    %393 = vmatprep.subr.mxu0 0.0
    %394 = vmatpush1.msra.mxu0 %v148
    %395 = vmatprep.subr.mxu0 0.0
    %396 = vmatpush1.msra.mxu0 %v149
    %397 = vmatprep.subr.mxu0 0.0
    %398 = vmatpush1.msra.mxu0 %v150
    %399 = vmatprep.subr.mxu0 0.0
    %400 = vmatpush1.msra.mxu0 %v151
    %401 = vmatprep.subr.mxu0 0.0
    %402 = vmatpush1.msra.mxu0 %v152
    %403 = vmatprep.subr.mxu0 0.0
    %404 = vmatpush1.msra.mxu0 0.0
    %405 = vmatprep.subr.mxu0 0.0
    %406 = vmatpush1.msra.mxu0 0.0
    %407 = vmatprep.subr.mxu0 0.0
    %408 = vmatpush1.msra.mxu0 0.0
    %409 = vmatprep.subr.mxu0 0.0
    %410 = vmatpush1.msra.mxu0 0.0
    %411 = vmatprep.subr.mxu0 0.0
    %412 = vmatpush1.msra.mxu0 0.0
    %413 = vmatprep.subr.mxu0 0.0
    %414 = vmatpush1.msra.mxu0 0.0
    %415 = vmatprep.subr.mxu0 0.0
    %416 = vmatpush1.msra.mxu0 0.0
    %417 = vmatprep.subr.mxu0 0.0
    %418 = vmatpush1.msra.mxu0 0.0
    %419 = vmatprep.subr.mxu0 0.0
    %420 = vmatpush1.msra.mxu0 0.0
    %421 = vmatprep.subr.mxu0 0.0
    %422 = vmatpush1.msra.mxu0 0.0
    %423 = vmatprep.subr.mxu0 0.0
    %424 = vmatpush1.msra.mxu0 0.0
    %425 = vmatprep.subr.mxu0 0.0
    %426 = vmatpush1.msra.mxu0 0.0
    %427 = vmatprep.subr.mxu0 0.0
    %428 = vmatpush1.msra.mxu0 0.0
    %429 = vmatprep.subr.mxu0 0.0
    %430 = vmatpush1.msra.mxu0 0.0
    %431 = vmatprep.subr.mxu0 0.0
    %432 = vmatpush1.msra.mxu0 0.0
    %433 = vmatprep.subr.mxu0 0.0
    %434 = vmatpush1.msra.mxu0 0.0
    %435 = vmatprep.subr.mxu0 0.0
    %436 = vmatpush1.msra.mxu0 0.0
    %437 = vmatprep.subr.mxu0 0.0
    %438 = vmatpush1.msra.mxu0 0.0
    %439 = vmatprep.subr.mxu0 0.0
    %440 = vmatpush1.msra.mxu0 0.0
    %441 = vmatprep.subr.mxu0 0.0
    %442 = vmatpush1.msra.mxu0 0.0
    %443 = vmatprep.subr.mxu0 0.0
    %444 = vmatpush1.msra.mxu0 0.0
    %445 = vmatprep.subr.mxu0 0.0
    %446 = vmatpush1.msra.mxu0 0.0
    %447 = vmatprep.subr.mxu0 0.0
    %448 = vmatpush1.msra.mxu0 0.0
    %449 = vmatprep.subr.mxu0 0.0
    %450 = vmatpush1.msra.mxu0 0.0
    %451 = vmatprep.mubr.f32.mxu0 0.0
    %452 = vmatmul.mubr.f32.gmra.mrb[0].mxu0 %v315
    %v453 = vpop.f32.mrb[0].mxu0
    %v454 = vadd.f32 %v288, %v453
    %v455 = vpop.f32.mrb[0].mxu0
    %456 = vdwg.mxu0
    %457 = vmatprep.subr.mxu0 0.0
    %458 = vmatpush1.msra.mxu0 %v153
    %459 = vmatprep.subr.mxu0 0.0
    %460 = vmatpush1.msra.mxu0 %v154
    %461 = vmatprep.subr.mxu0 0.0
    %462 = vmatpush1.msra.mxu0 %v155
    %463 = vmatprep.subr.mxu0 0.0
    %464 = vmatpush1.msra.mxu0 %v156
    %465 = vmatprep.subr.mxu0 0.0
    %466 = vmatpush1.msra.mxu0 %v157
    %467 = vmatprep.subr.mxu0 0.0
    %468 = vmatpush1.msra.mxu0 %v158
    %469 = vmatprep.subr.mxu0 0.0
    %470 = vmatpush1.msra.mxu0 %v159
    %471 = vmatprep.subr.mxu0 0.0
    %472 = vmatpush1.msra.mxu0 %v160
    %473 = vmatprep.subr.mxu0 0.0
    %474 = vmatpush1.msra.mxu0 0.0
    %475 = vmatprep.subr.mxu0 0.0
    %476 = vmatpush1.msra.mxu0 0.0
    %477 = vmatprep.subr.mxu0 0.0
    %478 = vmatpush1.msra.mxu0 0.0
    %479 = vmatprep.subr.mxu0 0.0
    %480 = vmatpush1.msra.mxu0 0.0
    %481 = vmatprep.subr.mxu0 0.0
    %482 = vmatpush1.msra.mxu0 0.0
    %483 = vmatprep.subr.mxu0 0.0
    %484 = vmatpush1.msra.mxu0 0.0
    %485 = vmatprep.subr.mxu0 0.0
    %486 = vmatpush1.msra.mxu0 0.0
    %487 = vmatprep.subr.mxu0 0.0
    %488 = vmatpush1.msra.mxu0 0.0
    %489 = vmatprep.subr.mxu0 0.0
    %490 = vmatpush1.msra.mxu0 0.0
    %491 = vmatprep.subr.mxu0 0.0
    %492 = vmatpush1.msra.mxu0 0.0
    %493 = vmatprep.subr.mxu0 0.0
    %494 = vmatpush1.msra.mxu0 0.0
    %495 = vmatprep.subr.mxu0 0.0
    %496 = vmatpush1.msra.mxu0 0.0
    %497 = vmatprep.subr.mxu0 0.0
    %498 = vmatpush1.msra.mxu0 0.0
    %499 = vmatprep.subr.mxu0 0.0
    %500 = vmatpush1.msra.mxu0 0.0
    %501 = vmatprep.subr.mxu0 0.0
    %502 = vmatpush1.msra.mxu0 0.0
    %503 = vmatprep.subr.mxu0 0.0
    %504 = vmatpush1.msra.mxu0 0.0
    %505 = vmatprep.subr.mxu0 0.0
    %506 = vmatpush1.msra.mxu0 0.0
    %507 = vmatprep.subr.mxu0 0.0
    %508 = vmatpush1.msra.mxu0 0.0
    %509 = vmatprep.subr.mxu0 0.0
    %510 = vmatpush1.msra.mxu0 0.0
    %511 = vmatprep.subr.mxu0 0.0
    %512 = vmatpush1.msra.mxu0 0.0
    %513 = vmatprep.subr.mxu0 0.0
    %514 = vmatpush1.msra.mxu0 0.0
    %515 = vmatprep.subr.mxu0 0.0
    %516 = vmatpush1.msra.mxu0 0.0
    %517 = vmatprep.subr.mxu0 0.0
    %518 = vmatpush1.msra.mxu0 0.0
    %519 = vmatprep.subr.mxu0 0.0
    %520 = vmatpush1.msra.mxu0 0.0
    %521 = vmatprep.mubr.f32.mxu0 0.0
    %522 = vmatmul.mubr.f32.gmra.mrb[0].mxu0 %v315
    %v523 = vpop.f32.mrb[0].mxu0
    %v524 = vadd.f32 %v292, %v523
    %v525 = vpop.f32.mrb[0].mxu0
    %526 = vdwg.mxu0
    %527 = vmatprep.subr.mxu0 0.0
    %528 = vmatpush1.msra.mxu0 %v161
    %529 = vmatprep.subr.mxu0 0.0
    %530 = vmatpush1.msra.mxu0 %v162
    %531 = vmatprep.subr.mxu0 0.0
    %532 = vmatpush1.msra.mxu0 %v163
    %533 = vmatprep.subr.mxu0 0.0
    %534 = vmatpush1.msra.mxu0 %v164
    %535 = vmatprep.subr.mxu0 0.0
    %536 = vmatpush1.msra.mxu0 %v165
    %537 = vmatprep.subr.mxu0 0.0
    %538 = vmatpush1.msra.mxu0 %v166
    %539 = vmatprep.subr.mxu0 0.0
    %540 = vmatpush1.msra.mxu0 %v167
    %541 = vmatprep.subr.mxu0 0.0
    %542 = vmatpush1.msra.mxu0 %v168
    %543 = vmatprep.subr.mxu0 0.0
    %544 = vmatpush1.msra.mxu0 0.0
    %545 = vmatprep.subr.mxu0 0.0
    %546 = vmatpush1.msra.mxu0 0.0
    %547 = vmatprep.subr.mxu0 0.0
    %548 = vmatpush1.msra.mxu0 0.0
    %549 = vmatprep.subr.mxu0 0.0
    %550 = vmatpush1.msra.mxu0 0.0
    %551 = vmatprep.subr.mxu0 0.0
    %552 = vmatpush1.msra.mxu0 0.0
    %553 = vmatprep.subr.mxu0 0.0
    %554 = vmatpush1.msra.mxu0 0.0
    %555 = vmatprep.subr.mxu0 0.0
    %556 = vmatpush1.msra.mxu0 0.0
    %557 = vmatprep.subr.mxu0 0.0
    %558 = vmatpush1.msra.mxu0 0.0
    %559 = vmatprep.subr.mxu0 0.0
    %560 = vmatpush1.msra.mxu0 0.0
    %561 = vmatprep.subr.mxu0 0.0
    %562 = vmatpush1.msra.mxu0 0.0
    %563 = vmatprep.subr.mxu0 0.0
    %564 = vmatpush1.msra.mxu0 0.0
    %565 = vmatprep.subr.mxu0 0.0
    %566 = vmatpush1.msra.mxu0 0.0
    %567 = vmatprep.subr.mxu0 0.0
    %568 = vmatpush1.msra.mxu0 0.0
    %569 = vmatprep.subr.mxu0 0.0
    %570 = vmatpush1.msra.mxu0 0.0
    %571 = vmatprep.subr.mxu0 0.0
    %572 = vmatpush1.msra.mxu0 0.0
    %573 = vmatprep.subr.mxu0 0.0
    %574 = vmatpush1.msra.mxu0 0.0
    %575 = vmatprep.subr.mxu0 0.0
    %576 = vmatpush1.msra.mxu0 0.0
    %577 = vmatprep.subr.mxu0 0.0
    %578 = vmatpush1.msra.mxu0 0.0
    %579 = vmatprep.subr.mxu0 0.0
    %580 = vmatpush1.msra.mxu0 0.0
    %581 = vmatprep.subr.mxu0 0.0
    %582 = vmatpush1.msra.mxu0 0.0
    %583 = vmatprep.subr.mxu0 0.0
    %584 = vmatpush1.msra.mxu0 0.0
    %585 = vmatprep.subr.mxu0 0.0
    %586 = vmatpush1.msra.mxu0 0.0
    %587 = vmatprep.subr.mxu0 0.0
    %588 = vmatpush1.msra.mxu0 0.0
    %589 = vmatprep.subr.mxu0 0.0
    %590 = vmatpush1.msra.mxu0 0.0
    %591 = vmatprep.mubr.f32.mxu0 0.0
    %592 = vmatmul.mubr.f32.gmra.mrb[0].mxu0 %v315
    %v593 = vpop.f32.mrb[0].mxu0
    %v594 = vadd.f32 %v296, %v593
    %v595 = vpop.f32.mrb[0].mxu0
    %596 = vdwg.mxu0
    %597 = vmatprep.subr.mxu0 0.0
    %598 = vmatpush1.msra.mxu0 %v169
    %599 = vmatprep.subr.mxu0 0.0
    %600 = vmatpush1.msra.mxu0 %v170
    %601 = vmatprep.subr.mxu0 0.0
    %602 = vmatpush1.msra.mxu0 %v171
    %603 = vmatprep.subr.mxu0 0.0
    %604 = vmatpush1.msra.mxu0 %v172
    %605 = vmatprep.subr.mxu0 0.0
    %606 = vmatpush1.msra.mxu0 %v173
    %607 = vmatprep.subr.mxu0 0.0
    %608 = vmatpush1.msra.mxu0 %v174
    %609 = vmatprep.subr.mxu0 0.0
    %610 = vmatpush1.msra.mxu0 %v175
    %611 = vmatprep.subr.mxu0 0.0
    %612 = vmatpush1.msra.mxu0 %v176
    %613 = vmatprep.subr.mxu0 0.0
    %614 = vmatpush1.msra.mxu0 0.0
    %615 = vmatprep.subr.mxu0 0.0
    %616 = vmatpush1.msra.mxu0 0.0
    %617 = vmatprep.subr.mxu0 0.0
    %618 = vmatpush1.msra.mxu0 0.0
    %619 = vmatprep.subr.mxu0 0.0
    %620 = vmatpush1.msra.mxu0 0.0
    %621 = vmatprep.subr.mxu0 0.0
    %622 = vmatpush1.msra.mxu0 0.0
    %623 = vmatprep.subr.mxu0 0.0
    %624 = vmatpush1.msra.mxu0 0.0
    %625 = vmatprep.subr.mxu0 0.0
    %626 = vmatpush1.msra.mxu0 0.0
    %627 = vmatprep.subr.mxu0 0.0
    %628 = vmatpush1.msra.mxu0 0.0
    %629 = vmatprep.subr.mxu0 0.0
    %630 = vmatpush1.msra.mxu0 0.0
    %631 = vmatprep.subr.mxu0 0.0
    %632 = vmatpush1.msra.mxu0 0.0
    %633 = vmatprep.subr.mxu0 0.0
    %634 = vmatpush1.msra.mxu0 0.0
    %635 = vmatprep.subr.mxu0 0.0
    %636 = vmatpush1.msra.mxu0 0.0
    %637 = vmatprep.subr.mxu0 0.0
    %638 = vmatpush1.msra.mxu0 0.0
    %639 = vmatprep.subr.mxu0 0.0
    %640 = vmatpush1.msra.mxu0 0.0
    %641 = vmatprep.subr.mxu0 0.0
    %642 = vmatpush1.msra.mxu0 0.0
    %643 = vmatprep.subr.mxu0 0.0
    %644 = vmatpush1.msra.mxu0 0.0
    %645 = vmatprep.subr.mxu0 0.0
    %646 = vmatpush1.msra.mxu0 0.0
    %647 = vmatprep.subr.mxu0 0.0
    %648 = vmatpush1.msra.mxu0 0.0
    %649 = vmatprep.subr.mxu0 0.0
    %650 = vmatpush1.msra.mxu0 0.0
    %651 = vmatprep.subr.mxu0 0.0
    %652 = vmatpush1.msra.mxu0 0.0
    %653 = vmatprep.subr.mxu0 0.0
    %654 = vmatpush1.msra.mxu0 0.0
    %655 = vmatprep.subr.mxu0 0.0
    %656 = vmatpush1.msra.mxu0 0.0
    %657 = vmatprep.subr.mxu0 0.0
    %658 = vmatpush1.msra.mxu0 0.0
    %659 = vmatprep.subr.mxu0 0.0
    %660 = vmatpush1.msra.mxu0 0.0
    %661 = vmatprep.mubr.f32.mxu0 0.0
    %662 = vmatmul.mubr.f32.gmra.mrb[0].mxu0 %v315
    %v663 = vpop.f32.mrb[0].mxu0
    %v664 = vadd.f32 %v300, %v663
    %v665 = vpop.f32.mrb[0].mxu0
    %666 = vdwg.mxu0
    %667 = vmatprep.subr.mxu0 0.0
    %668 = vmatpush1.msra.mxu0 %v177
    %669 = vmatprep.subr.mxu0 0.0
    %670 = vmatpush1.msra.mxu0 %v178
    %671 = vmatprep.subr.mxu0 0.0
    %672 = vmatpush1.msra.mxu0 %v179
    %673 = vmatprep.subr.mxu0 0.0
    %674 = vmatpush1.msra.mxu0 %v180
    %675 = vmatprep.subr.mxu0 0.0
    %676 = vmatpush1.msra.mxu0 %v181
    %677 = vmatprep.subr.mxu0 0.0
    %678 = vmatpush1.msra.mxu0 %v182
    %679 = vmatprep.subr.mxu0 0.0
    %680 = vmatpush1.msra.mxu0 %v183
    %681 = vmatprep.subr.mxu0 0.0
    %682 = vmatpush1.msra.mxu0 %v184
    %683 = vmatprep.subr.mxu0 0.0
    %684 = vmatpush1.msra.mxu0 0.0
    %685 = vmatprep.subr.mxu0 0.0
    %686 = vmatpush1.msra.mxu0 0.0
    %687 = vmatprep.subr.mxu0 0.0
    %688 = vmatpush1.msra.mxu0 0.0
    %689 = vmatprep.subr.mxu0 0.0
    %690 = vmatpush1.msra.mxu0 0.0
    %691 = vmatprep.subr.mxu0 0.0
    %692 = vmatpush1.msra.mxu0 0.0
    %693 = vmatprep.subr.mxu0 0.0
    %694 = vmatpush1.msra.mxu0 0.0
    %695 = vmatprep.subr.mxu0 0.0
    %696 = vmatpush1.msra.mxu0 0.0
    %697 = vmatprep.subr.mxu0 0.0
    %698 = vmatpush1.msra.mxu0 0.0
    %699 = vmatprep.subr.mxu0 0.0
    %700 = vmatpush1.msra.mxu0 0.0
    %701 = vmatprep.subr.mxu0 0.0
    %702 = vmatpush1.msra.mxu0 0.0
    %703 = vmatprep.subr.mxu0 0.0
    %704 = vmatpush1.msra.mxu0 0.0
    %705 = vmatprep.subr.mxu0 0.0
    %706 = vmatpush1.msra.mxu0 0.0
    %707 = vmatprep.subr.mxu0 0.0
    %708 = vmatpush1.msra.mxu0 0.0
    %709 = vmatprep.subr.mxu0 0.0
    %710 = vmatpush1.msra.mxu0 0.0
    %711 = vmatprep.subr.mxu0 0.0
    %712 = vmatpush1.msra.mxu0 0.0
    %713 = vmatprep.subr.mxu0 0.0
    %714 = vmatpush1.msra.mxu0 0.0
    %715 = vmatprep.subr.mxu0 0.0
    %716 = vmatpush1.msra.mxu0 0.0
    %717 = vmatprep.subr.mxu0 0.0
    %718 = vmatpush1.msra.mxu0 0.0
    %719 = vmatprep.subr.mxu0 0.0
    %720 = vmatpush1.msra.mxu0 0.0
    %721 = vmatprep.subr.mxu0 0.0
    %722 = vmatpush1.msra.mxu0 0.0
    %723 = vmatprep.subr.mxu0 0.0
    %724 = vmatpush1.msra.mxu0 0.0
    %725 = vmatprep.subr.mxu0 0.0
    %726 = vmatpush1.msra.mxu0 0.0
    %727 = vmatprep.subr.mxu0 0.0
    %728 = vmatpush1.msra.mxu0 0.0
    %729 = vmatprep.subr.mxu0 0.0
    %730 = vmatpush1.msra.mxu0 0.0
    %731 = vmatprep.mubr.f32.mxu0 0.0
    %732 = vmatmul.mubr.f32.gmra.mrb[0].mxu0 %v315
    %v733 = vpop.f32.mrb[0].mxu0
    %v734 = vadd.f32 %v304, %v733
    %v735 = vpop.f32.mrb[0].mxu0
    %736 = vdwg.mxu0
    %737 = vmatprep.subr.mxu0 0.0
    %738 = vmatpush1.msra.mxu0 %v185
    %739 = vmatprep.subr.mxu0 0.0
    %740 = vmatpush1.msra.mxu0 %v186
    %741 = vmatprep.subr.mxu0 0.0
    %742 = vmatpush1.msra.mxu0 %v187
    %743 = vmatprep.subr.mxu0 0.0
    %744 = vmatpush1.msra.mxu0 %v188
    %745 = vmatprep.subr.mxu0 0.0
    %746 = vmatpush1.msra.mxu0 %v189
    %747 = vmatprep.subr.mxu0 0.0
    %748 = vmatpush1.msra.mxu0 %v190
    %749 = vmatprep.subr.mxu0 0.0
    %750 = vmatpush1.msra.mxu0 %v191
    %751 = vmatprep.subr.mxu0 0.0
    %752 = vmatpush1.msra.mxu0 %v192
    %753 = vmatprep.subr.mxu0 0.0
    %754 = vmatpush1.msra.mxu0 0.0
    %755 = vmatprep.subr.mxu0 0.0
    %756 = vmatpush1.msra.mxu0 0.0
    %757 = vmatprep.subr.mxu0 0.0
    %758 = vmatpush1.msra.mxu0 0.0
    %759 = vmatprep.subr.mxu0 0.0
    %760 = vmatpush1.msra.mxu0 0.0
    %761 = vmatprep.subr.mxu0 0.0
    %762 = vmatpush1.msra.mxu0 0.0
    %763 = vmatprep.subr.mxu0 0.0
    %764 = vmatpush1.msra.mxu0 0.0
    %765 = vmatprep.subr.mxu0 0.0
    %766 = vmatpush1.msra.mxu0 0.0
    %767 = vmatprep.subr.mxu0 0.0
    %768 = vmatpush1.msra.mxu0 0.0
    %769 = vmatprep.subr.mxu0 0.0
    %770 = vmatpush1.msra.mxu0 0.0
    %771 = vmatprep.subr.mxu0 0.0
    %772 = vmatpush1.msra.mxu0 0.0
    %773 = vmatprep.subr.mxu0 0.0
    %774 = vmatpush1.msra.mxu0 0.0
    %775 = vmatprep.subr.mxu0 0.0
    %776 = vmatpush1.msra.mxu0 0.0
    %777 = vmatprep.subr.mxu0 0.0
    %778 = vmatpush1.msra.mxu0 0.0
    %779 = vmatprep.subr.mxu0 0.0
    %780 = vmatpush1.msra.mxu0 0.0
    %781 = vmatprep.subr.mxu0 0.0
    %782 = vmatpush1.msra.mxu0 0.0
    %783 = vmatprep.subr.mxu0 0.0
    %784 = vmatpush1.msra.mxu0 0.0
    %785 = vmatprep.subr.mxu0 0.0
    %786 = vmatpush1.msra.mxu0 0.0
    %787 = vmatprep.subr.mxu0 0.0
    %788 = vmatpush1.msra.mxu0 0.0
    %789 = vmatprep.subr.mxu0 0.0
    %790 = vmatpush1.msra.mxu0 0.0
    %791 = vmatprep.subr.mxu0 0.0
    %792 = vmatpush1.msra.mxu0 0.0
    %793 = vmatprep.subr.mxu0 0.0
    %794 = vmatpush1.msra.mxu0 0.0
    %795 = vmatprep.subr.mxu0 0.0
    %796 = vmatpush1.msra.mxu0 0.0
    %797 = vmatprep.subr.mxu0 0.0
    %798 = vmatpush1.msra.mxu0 0.0
    %799 = vmatprep.subr.mxu0 0.0
    %800 = vmatpush1.msra.mxu0 0.0
    %801 = vmatprep.mubr.f32.mxu0 0.0
    %802 = vmatmul.mubr.f32.gmra.mrb[0].mxu0 %v315
    %v803 = vpop.f32.mrb[0].mxu0
    %v804 = vadd.f32 %v308, %v803
    %v805 = vpop.f32.mrb[0].mxu0
    %806 = vdwg.mxu0
    %807 = vmatprep.subr.mxu0 0.0
    %808 = vmatpush1.msra.mxu0 %v193
    %809 = vmatprep.subr.mxu0 0.0
    %810 = vmatpush1.msra.mxu0 %v194
    %811 = vmatprep.subr.mxu0 0.0
    %812 = vmatpush1.msra.mxu0 %v195
    %813 = vmatprep.subr.mxu0 0.0
    %814 = vmatpush1.msra.mxu0 %v196
    %815 = vmatprep.subr.mxu0 0.0
    %816 = vmatpush1.msra.mxu0 %v197
    %817 = vmatprep.subr.mxu0 0.0
    %818 = vmatpush1.msra.mxu0 %v198
    %819 = vmatprep.subr.mxu0 0.0
    %820 = vmatpush1.msra.mxu0 %v199
    %821 = vmatprep.subr.mxu0 0.0
    %822 = vmatpush1.msra.mxu0 %v200
    %823 = vmatprep.subr.mxu0 0.0
    %824 = vmatpush1.msra.mxu0 0.0
    %825 = vmatprep.subr.mxu0 0.0
    %826 = vmatpush1.msra.mxu0 0.0
    %827 = vmatprep.subr.mxu0 0.0
    %828 = vmatpush1.msra.mxu0 0.0
    %829 = vmatprep.subr.mxu0 0.0
    %830 = vmatpush1.msra.mxu0 0.0
    %831 = vmatprep.subr.mxu0 0.0
    %832 = vmatpush1.msra.mxu0 0.0
    %833 = vmatprep.subr.mxu0 0.0
    %834 = vmatpush1.msra.mxu0 0.0
    %835 = vmatprep.subr.mxu0 0.0
    %836 = vmatpush1.msra.mxu0 0.0
    %837 = vmatprep.subr.mxu0 0.0
    %838 = vmatpush1.msra.mxu0 0.0
    %839 = vmatprep.subr.mxu0 0.0
    %840 = vmatpush1.msra.mxu0 0.0
    %841 = vmatprep.subr.mxu0 0.0
    %842 = vmatpush1.msra.mxu0 0.0
    %843 = vmatprep.subr.mxu0 0.0
    %844 = vmatpush1.msra.mxu0 0.0
    %845 = vmatprep.subr.mxu0 0.0
    %846 = vmatpush1.msra.mxu0 0.0
    %847 = vmatprep.subr.mxu0 0.0
    %848 = vmatpush1.msra.mxu0 0.0
    %849 = vmatprep.subr.mxu0 0.0
    %850 = vmatpush1.msra.mxu0 0.0
    %851 = vmatprep.subr.mxu0 0.0
    %852 = vmatpush1.msra.mxu0 0.0
    %853 = vmatprep.subr.mxu0 0.0
    %854 = vmatpush1.msra.mxu0 0.0
    %855 = vmatprep.subr.mxu0 0.0
    %856 = vmatpush1.msra.mxu0 0.0
    %857 = vmatprep.subr.mxu0 0.0
    %858 = vmatpush1.msra.mxu0 0.0
    %859 = vmatprep.subr.mxu0 0.0
    %860 = vmatpush1.msra.mxu0 0.0
    %861 = vmatprep.subr.mxu0 0.0
    %862 = vmatpush1.msra.mxu0 0.0
    %863 = vmatprep.subr.mxu0 0.0
    %864 = vmatpush1.msra.mxu0 0.0
    %865 = vmatprep.subr.mxu0 0.0
    %866 = vmatpush1.msra.mxu0 0.0
    %867 = vmatprep.subr.mxu0 0.0
    %868 = vmatpush1.msra.mxu0 0.0
    %869 = vmatprep.subr.mxu0 0.0
    %870 = vmatpush1.msra.mxu0 0.0
    %871 = vmatprep.mubr.f32.mxu0 0.0
    %872 = vmatmul.mubr.f32.gmra.mrb[0].mxu0 %v315
    %v873 = vpop.f32.mrb[0].mxu0
    %v874 = vadd.f32 %v312, %v873
    %v875 = vpop.f32.mrb[0].mxu0
    %876 = vdwg.mxu0
    %v877 = vlaneseq
    %v878 = vshrl.u32 %v877, 7
    %v879 = vsub.s32 0, %v878
    %v880 = vrot.slane %v257, %v879
    %v881 = vlaneseq
    %v882 = vshrl.u32 %v881, 7
    %v883 = vsub.s32 0, %v882
    %v884 = vrot.slane %v258, %v883
    %v885 = vlaneseq
    %v886 = vshrl.u32 %v885, 7
    %v887 = vsub.s32 0, %v886
    %v888 = vrot.slane %v259, %v887
    %v889 = vlaneseq
    %v890 = vshrl.u32 %v889, 7
    %v891 = vsub.s32 0, %v890
    %v892 = vrot.slane %v260, %v891
    %v893 = vlaneseq
    %v894 = vshrl.u32 %v893, 7
    %v895 = vsub.s32 0, %v894
    %v896 = vrot.slane %v261, %v895
    %v897 = vlaneseq
    %v898 = vshrl.u32 %v897, 7
    %v899 = vsub.s32 0, %v898
    %v900 = vrot.slane %v262, %v899
    %v901 = vlaneseq
    %v902 = vshrl.u32 %v901, 7
    %v903 = vsub.s32 0, %v902
    %v904 = vrot.slane %v263, %v903
    %v905 = vlaneseq
    %v906 = vshrl.u32 %v905, 7
    %v907 = vsub.s32 0, %v906
    %v908 = vrot.slane %v264, %v907
    %vm909 = vcmask 392192
    %v911 = vsel %vm909, %v19, 0
    %913 = vmatprep.subr.mxu0 0.0
    %914 = vmatpush1.msra.mxu0 %v201
    %915 = vmatprep.subr.mxu0 0.0
    %916 = vmatpush1.msra.mxu0 %v202
    %917 = vmatprep.subr.mxu0 0.0
    %918 = vmatpush1.msra.mxu0 %v203
    %919 = vmatprep.subr.mxu0 0.0
    %920 = vmatpush1.msra.mxu0 %v204
    %921 = vmatprep.subr.mxu0 0.0
    %922 = vmatpush1.msra.mxu0 %v205
    %923 = vmatprep.subr.mxu0 0.0
    %924 = vmatpush1.msra.mxu0 %v206
    %925 = vmatprep.subr.mxu0 0.0
    %926 = vmatpush1.msra.mxu0 0.0
    %927 = vmatprep.subr.mxu0 0.0
    %928 = vmatpush1.msra.mxu0 0.0
    %929 = vmatprep.subr.mxu0 0.0
    %930 = vmatpush1.msra.mxu0 0.0
    %931 = vmatprep.subr.mxu0 0.0
    %932 = vmatpush1.msra.mxu0 0.0
    %933 = vmatprep.subr.mxu0 0.0
    %934 = vmatpush1.msra.mxu0 0.0
    %935 = vmatprep.subr.mxu0 0.0
    %936 = vmatpush1.msra.mxu0 0.0
    %937 = vmatprep.subr.mxu0 0.0
    %938 = vmatpush1.msra.mxu0 0.0
    %939 = vmatprep.subr.mxu0 0.0
    %940 = vmatpush1.msra.mxu0 0.0
    %941 = vmatprep.subr.mxu0 0.0
    %942 = vmatpush1.msra.mxu0 0.0
    %943 = vmatprep.subr.mxu0 0.0
    %944 = vmatpush1.msra.mxu0 0.0
    %945 = vmatprep.subr.mxu0 0.0
    %946 = vmatpush1.msra.mxu0 0.0
    %947 = vmatprep.subr.mxu0 0.0
    %948 = vmatpush1.msra.mxu0 0.0
    %949 = vmatprep.subr.mxu0 0.0
    %950 = vmatpush1.msra.mxu0 0.0
    %951 = vmatprep.subr.mxu0 0.0
    %952 = vmatpush1.msra.mxu0 0.0
    %953 = vmatprep.subr.mxu0 0.0
    %954 = vmatpush1.msra.mxu0 0.0
    %955 = vmatprep.subr.mxu0 0.0
    %956 = vmatpush1.msra.mxu0 0.0
    %957 = vmatprep.subr.mxu0 0.0
    %958 = vmatpush1.msra.mxu0 0.0
    %959 = vmatprep.subr.mxu0 0.0
    %960 = vmatpush1.msra.mxu0 0.0
    %961 = vmatprep.subr.mxu0 0.0
    %962 = vmatpush1.msra.mxu0 0.0
    %963 = vmatprep.subr.mxu0 0.0
    %964 = vmatpush1.msra.mxu0 0.0
    %965 = vmatprep.subr.mxu0 0.0
    %966 = vmatpush1.msra.mxu0 0.0
    %967 = vmatprep.subr.mxu0 0.0
    %968 = vmatpush1.msra.mxu0 0.0
    %969 = vmatprep.subr.mxu0 0.0
    %970 = vmatpush1.msra.mxu0 0.0
    %971 = vmatprep.subr.mxu0 0.0
    %972 = vmatpush1.msra.mxu0 0.0
    %973 = vmatprep.subr.mxu0 0.0
    %974 = vmatpush1.msra.mxu0 0.0
    %975 = vmatprep.subr.mxu0 0.0
    %976 = vmatpush1.msra.mxu0 0.0
    %977 = vmatprep.mubr.f32.mxu0 0.0
    %978 = vmatmul.mubr.f32.gmra.mrb[0].mxu0 %v911
    %v979 = vpop.f32.mrb[0].mxu0
    %v980 = vadd.f32 %v880, %v979
    %v981 = vpop.f32.mrb[0].mxu0
    %982 = vdwg.mxu0
    %983 = vmatprep.subr.mxu0 0.0
    %984 = vmatpush1.msra.mxu0 %v207
    %985 = vmatprep.subr.mxu0 0.0
    %986 = vmatpush1.msra.mxu0 %v208
    %987 = vmatprep.subr.mxu0 0.0
    %988 = vmatpush1.msra.mxu0 %v209
    %989 = vmatprep.subr.mxu0 0.0
    %990 = vmatpush1.msra.mxu0 %v210
    %991 = vmatprep.subr.mxu0 0.0
    %992 = vmatpush1.msra.mxu0 %v211
    %993 = vmatprep.subr.mxu0 0.0
    %994 = vmatpush1.msra.mxu0 %v212
    %995 = vmatprep.subr.mxu0 0.0
    %996 = vmatpush1.msra.mxu0 0.0
    %997 = vmatprep.subr.mxu0 0.0
    %998 = vmatpush1.msra.mxu0 0.0
    %999 = vmatprep.subr.mxu0 0.0
    %1000 = vmatpush1.msra.mxu0 0.0
    %1001 = vmatprep.subr.mxu0 0.0
    %1002 = vmatpush1.msra.mxu0 0.0
    %1003 = vmatprep.subr.mxu0 0.0
    %1004 = vmatpush1.msra.mxu0 0.0
    %1005 = vmatprep.subr.mxu0 0.0
    %1006 = vmatpush1.msra.mxu0 0.0
    %1007 = vmatprep.subr.mxu0 0.0
    %1008 = vmatpush1.msra.mxu0 0.0
    %1009 = vmatprep.subr.mxu0 0.0
    %1010 = vmatpush1.msra.mxu0 0.0
    %1011 = vmatprep.subr.mxu0 0.0
    %1012 = vmatpush1.msra.mxu0 0.0
    %1013 = vmatprep.subr.mxu0 0.0
    %1014 = vmatpush1.msra.mxu0 0.0
    %1015 = vmatprep.subr.mxu0 0.0
    %1016 = vmatpush1.msra.mxu0 0.0
    %1017 = vmatprep.subr.mxu0 0.0
    %1018 = vmatpush1.msra.mxu0 0.0
    %1019 = vmatprep.subr.mxu0 0.0
    %1020 = vmatpush1.msra.mxu0 0.0
    %1021 = vmatprep.subr.mxu0 0.0
    %1022 = vmatpush1.msra.mxu0 0.0
    %1023 = vmatprep.subr.mxu0 0.0
    %1024 = vmatpush1.msra.mxu0 0.0
    %1025 = vmatprep.subr.mxu0 0.0
    %1026 = vmatpush1.msra.mxu0 0.0
    %1027 = vmatprep.subr.mxu0 0.0
    %1028 = vmatpush1.msra.mxu0 0.0
    %1029 = vmatprep.subr.mxu0 0.0
    %1030 = vmatpush1.msra.mxu0 0.0
    %1031 = vmatprep.subr.mxu0 0.0
    %1032 = vmatpush1.msra.mxu0 0.0
    %1033 = vmatprep.subr.mxu0 0.0
    %1034 = vmatpush1.msra.mxu0 0.0
    %1035 = vmatprep.subr.mxu0 0.0
    %1036 = vmatpush1.msra.mxu0 0.0
    %1037 = vmatprep.subr.mxu0 0.0
    %1038 = vmatpush1.msra.mxu0 0.0
    %1039 = vmatprep.subr.mxu0 0.0
    %1040 = vmatpush1.msra.mxu0 0.0
    %1041 = vmatprep.subr.mxu0 0.0
    %1042 = vmatpush1.msra.mxu0 0.0
    %1043 = vmatprep.subr.mxu0 0.0
    %1044 = vmatpush1.msra.mxu0 0.0
    %1045 = vmatprep.subr.mxu0 0.0
    %1046 = vmatpush1.msra.mxu0 0.0
    %1047 = vmatprep.mubr.f32.mxu0 0.0
    %1048 = vmatmul.mubr.f32.gmra.mrb[0].mxu0 %v911
    %v1049 = vpop.f32.mrb[0].mxu0
    %v1050 = vadd.f32 %v884, %v1049
    %v1051 = vpop.f32.mrb[0].mxu0
    %1052 = vdwg.mxu0
    %1053 = vmatprep.subr.mxu0 0.0
    %1054 = vmatpush1.msra.mxu0 %v213
    %1055 = vmatprep.subr.mxu0 0.0
    %1056 = vmatpush1.msra.mxu0 %v214
    %1057 = vmatprep.subr.mxu0 0.0
    %1058 = vmatpush1.msra.mxu0 %v215
    %1059 = vmatprep.subr.mxu0 0.0
    %1060 = vmatpush1.msra.mxu0 %v216
    %1061 = vmatprep.subr.mxu0 0.0
    %1062 = vmatpush1.msra.mxu0 %v217
    %1063 = vmatprep.subr.mxu0 0.0
    %1064 = vmatpush1.msra.mxu0 %v218
    %1065 = vmatprep.subr.mxu0 0.0
    %1066 = vmatpush1.msra.mxu0 0.0
    %1067 = vmatprep.subr.mxu0 0.0
    %1068 = vmatpush1.msra.mxu0 0.0
    %1069 = vmatprep.subr.mxu0 0.0
    %1070 = vmatpush1.msra.mxu0 0.0
    %1071 = vmatprep.subr.mxu0 0.0
    %1072 = vmatpush1.msra.mxu0 0.0
    %1073 = vmatprep.subr.mxu0 0.0
    %1074 = vmatpush1.msra.mxu0 0.0
    %1075 = vmatprep.subr.mxu0 0.0
    %1076 = vmatpush1.msra.mxu0 0.0
    %1077 = vmatprep.subr.mxu0 0.0
    %1078 = vmatpush1.msra.mxu0 0.0
    %1079 = vmatprep.subr.mxu0 0.0
    %1080 = vmatpush1.msra.mxu0 0.0
    %1081 = vmatprep.subr.mxu0 0.0
    %1082 = vmatpush1.msra.mxu0 0.0
    %1083 = vmatprep.subr.mxu0 0.0
    %1084 = vmatpush1.msra.mxu0 0.0
    %1085 = vmatprep.subr.mxu0 0.0
    %1086 = vmatpush1.msra.mxu0 0.0
    %1087 = vmatprep.subr.mxu0 0.0
    %1088 = vmatpush1.msra.mxu0 0.0
    %1089 = vmatprep.subr.mxu0 0.0
    %1090 = vmatpush1.msra.mxu0 0.0
    %1091 = vmatprep.subr.mxu0 0.0
    %1092 = vmatpush1.msra.mxu0 0.0
    %1093 = vmatprep.subr.mxu0 0.0
    %1094 = vmatpush1.msra.mxu0 0.0
    %1095 = vmatprep.subr.mxu0 0.0
    %1096 = vmatpush1.msra.mxu0 0.0
    %1097 = vmatprep.subr.mxu0 0.0
    %1098 = vmatpush1.msra.mxu0 0.0
    %1099 = vmatprep.subr.mxu0 0.0
    %1100 = vmatpush1.msra.mxu0 0.0
    %1101 = vmatprep.subr.mxu0 0.0
    %1102 = vmatpush1.msra.mxu0 0.0
    %1103 = vmatprep.subr.mxu0 0.0
    %1104 = vmatpush1.msra.mxu0 0.0
    %1105 = vmatprep.subr.mxu0 0.0
    %1106 = vmatpush1.msra.mxu0 0.0
    %1107 = vmatprep.subr.mxu0 0.0
    %1108 = vmatpush1.msra.mxu0 0.0
    %1109 = vmatprep.subr.mxu0 0.0
    %1110 = vmatpush1.msra.mxu0 0.0
    %1111 = vmatprep.subr.mxu0 0.0
    %1112 = vmatpush1.msra.mxu0 0.0
    %1113 = vmatprep.subr.mxu0 0.0
    %1114 = vmatpush1.msra.mxu0 0.0
    %1115 = vmatprep.subr.mxu0 0.0
    %1116 = vmatpush1.msra.mxu0 0.0
    %1117 = vmatprep.mubr.f32.mxu0 0.0
    %1118 = vmatmul.mubr.f32.gmra.mrb[0].mxu0 %v911
    %v1119 = vpop.f32.mrb[0].mxu0
    %v1120 = vadd.f32 %v888, %v1119
    %v1121 = vpop.f32.mrb[0].mxu0
    %1122 = vdwg.mxu0
    %1123 = vmatprep.subr.mxu0 0.0
    %1124 = vmatpush1.msra.mxu0 %v219
    %1125 = vmatprep.subr.mxu0 0.0
    %1126 = vmatpush1.msra.mxu0 %v220
    %1127 = vmatprep.subr.mxu0 0.0
    %1128 = vmatpush1.msra.mxu0 %v221
    %1129 = vmatprep.subr.mxu0 0.0
    %1130 = vmatpush1.msra.mxu0 %v222
    %1131 = vmatprep.subr.mxu0 0.0
    %1132 = vmatpush1.msra.mxu0 %v223
    %1133 = vmatprep.subr.mxu0 0.0
    %1134 = vmatpush1.msra.mxu0 %v224
    %1135 = vmatprep.subr.mxu0 0.0
    %1136 = vmatpush1.msra.mxu0 0.0
    %1137 = vmatprep.subr.mxu0 0.0
    %1138 = vmatpush1.msra.mxu0 0.0
    %1139 = vmatprep.subr.mxu0 0.0
    %1140 = vmatpush1.msra.mxu0 0.0
    %1141 = vmatprep.subr.mxu0 0.0
    %1142 = vmatpush1.msra.mxu0 0.0
    %1143 = vmatprep.subr.mxu0 0.0
    %1144 = vmatpush1.msra.mxu0 0.0
    %1145 = vmatprep.subr.mxu0 0.0
    %1146 = vmatpush1.msra.mxu0 0.0
    %1147 = vmatprep.subr.mxu0 0.0
    %1148 = vmatpush1.msra.mxu0 0.0
    %1149 = vmatprep.subr.mxu0 0.0
    %1150 = vmatpush1.msra.mxu0 0.0
    %1151 = vmatprep.subr.mxu0 0.0
    %1152 = vmatpush1.msra.mxu0 0.0
    %1153 = vmatprep.subr.mxu0 0.0
    %1154 = vmatpush1.msra.mxu0 0.0
    %1155 = vmatprep.subr.mxu0 0.0
    %1156 = vmatpush1.msra.mxu0 0.0
    %1157 = vmatprep.subr.mxu0 0.0
    %1158 = vmatpush1.msra.mxu0 0.0
    %1159 = vmatprep.subr.mxu0 0.0
    %1160 = vmatpush1.msra.mxu0 0.0
    %1161 = vmatprep.subr.mxu0 0.0
    %1162 = vmatpush1.msra.mxu0 0.0
    %1163 = vmatprep.subr.mxu0 0.0
    %1164 = vmatpush1.msra.mxu0 0.0
    %1165 = vmatprep.subr.mxu0 0.0
    %1166 = vmatpush1.msra.mxu0 0.0
    %1167 = vmatprep.subr.mxu0 0.0
    %1168 = vmatpush1.msra.mxu0 0.0
    %1169 = vmatprep.subr.mxu0 0.0
    %1170 = vmatpush1.msra.mxu0 0.0
    %1171 = vmatprep.subr.mxu0 0.0
    %1172 = vmatpush1.msra.mxu0 0.0
    %1173 = vmatprep.subr.mxu0 0.0
    %1174 = vmatpush1.msra.mxu0 0.0
    %1175 = vmatprep.subr.mxu0 0.0
    %1176 = vmatpush1.msra.mxu0 0.0
    %1177 = vmatprep.subr.mxu0 0.0
    %1178 = vmatpush1.msra.mxu0 0.0
    %1179 = vmatprep.subr.mxu0 0.0
    %1180 = vmatpush1.msra.mxu0 0.0
    %1181 = vmatprep.subr.mxu0 0.0
    %1182 = vmatpush1.msra.mxu0 0.0
    %1183 = vmatprep.subr.mxu0 0.0
    %1184 = vmatpush1.msra.mxu0 0.0
    %1185 = vmatprep.subr.mxu0 0.0
    %1186 = vmatpush1.msra.mxu0 0.0
    %1187 = vmatprep.mubr.f32.mxu0 0.0
    %1188 = vmatmul.mubr.f32.gmra.mrb[0].mxu0 %v911
    %v1189 = vpop.f32.mrb[0].mxu0
    %v1190 = vadd.f32 %v892, %v1189
    %v1191 = vpop.f32.mrb[0].mxu0
    %1192 = vdwg.mxu0
    %1193 = vmatprep.subr.mxu0 0.0
    %1194 = vmatpush1.msra.mxu0 %v225
    %1195 = vmatprep.subr.mxu0 0.0
    %1196 = vmatpush1.msra.mxu0 %v226
    %1197 = vmatprep.subr.mxu0 0.0
    %1198 = vmatpush1.msra.mxu0 %v227
    %1199 = vmatprep.subr.mxu0 0.0
    %1200 = vmatpush1.msra.mxu0 %v228
    %1201 = vmatprep.subr.mxu0 0.0
    %1202 = vmatpush1.msra.mxu0 %v229
    %1203 = vmatprep.subr.mxu0 0.0
    %1204 = vmatpush1.msra.mxu0 %v230
    %1205 = vmatprep.subr.mxu0 0.0
    %1206 = vmatpush1.msra.mxu0 0.0
    %1207 = vmatprep.subr.mxu0 0.0
    %1208 = vmatpush1.msra.mxu0 0.0
    %1209 = vmatprep.subr.mxu0 0.0
    %1210 = vmatpush1.msra.mxu0 0.0
    %1211 = vmatprep.subr.mxu0 0.0
    %1212 = vmatpush1.msra.mxu0 0.0
    %1213 = vmatprep.subr.mxu0 0.0
    %1214 = vmatpush1.msra.mxu0 0.0
    %1215 = vmatprep.subr.mxu0 0.0
    %1216 = vmatpush1.msra.mxu0 0.0
    %1217 = vmatprep.subr.mxu0 0.0
    %1218 = vmatpush1.msra.mxu0 0.0
    %1219 = vmatprep.subr.mxu0 0.0
    %1220 = vmatpush1.msra.mxu0 0.0
    %1221 = vmatprep.subr.mxu0 0.0
    %1222 = vmatpush1.msra.mxu0 0.0
    %1223 = vmatprep.subr.mxu0 0.0
    %1224 = vmatpush1.msra.mxu0 0.0
    %1225 = vmatprep.subr.mxu0 0.0
    %1226 = vmatpush1.msra.mxu0 0.0
    %1227 = vmatprep.subr.mxu0 0.0
    %1228 = vmatpush1.msra.mxu0 0.0
    %1229 = vmatprep.subr.mxu0 0.0
    %1230 = vmatpush1.msra.mxu0 0.0
    %1231 = vmatprep.subr.mxu0 0.0
    %1232 = vmatpush1.msra.mxu0 0.0
    %1233 = vmatprep.subr.mxu0 0.0
    %1234 = vmatpush1.msra.mxu0 0.0
    %1235 = vmatprep.subr.mxu0 0.0
    %1236 = vmatpush1.msra.mxu0 0.0
    %1237 = vmatprep.subr.mxu0 0.0
    %1238 = vmatpush1.msra.mxu0 0.0
    %1239 = vmatprep.subr.mxu0 0.0
    %1240 = vmatpush1.msra.mxu0 0.0
    %1241 = vmatprep.subr.mxu0 0.0
    %1242 = vmatpush1.msra.mxu0 0.0
    %1243 = vmatprep.subr.mxu0 0.0
    %1244 = vmatpush1.msra.mxu0 0.0
    %1245 = vmatprep.subr.mxu0 0.0
    %1246 = vmatpush1.msra.mxu0 0.0
    %1247 = vmatprep.subr.mxu0 0.0
    %1248 = vmatpush1.msra.mxu0 0.0
    %1249 = vmatprep.subr.mxu0 0.0
    %1250 = vmatpush1.msra.mxu0 0.0
    %1251 = vmatprep.subr.mxu0 0.0
    %1252 = vmatpush1.msra.mxu0 0.0
    %1253 = vmatprep.subr.mxu0 0.0
    %1254 = vmatpush1.msra.mxu0 0.0
    %1255 = vmatprep.subr.mxu0 0.0
    %1256 = vmatpush1.msra.mxu0 0.0
    %1257 = vmatprep.mubr.f32.mxu0 0.0
    %1258 = vmatmul.mubr.f32.gmra.mrb[0].mxu0 %v911
    %v1259 = vpop.f32.mrb[0].mxu0
    %v1260 = vadd.f32 %v896, %v1259
    %v1261 = vpop.f32.mrb[0].mxu0
    %1262 = vdwg.mxu0
    %1263 = vmatprep.subr.mxu0 0.0
    %1264 = vmatpush1.msra.mxu0 %v231
    %1265 = vmatprep.subr.mxu0 0.0
    %1266 = vmatpush1.msra.mxu0 %v232
    %1267 = vmatprep.subr.mxu0 0.0
    %1268 = vmatpush1.msra.mxu0 %v233
    %1269 = vmatprep.subr.mxu0 0.0
    %1270 = vmatpush1.msra.mxu0 %v234
    %1271 = vmatprep.subr.mxu0 0.0
    %1272 = vmatpush1.msra.mxu0 %v235
    %1273 = vmatprep.subr.mxu0 0.0
    %1274 = vmatpush1.msra.mxu0 %v236
    %1275 = vmatprep.subr.mxu0 0.0
    %1276 = vmatpush1.msra.mxu0 0.0
    %1277 = vmatprep.subr.mxu0 0.0
    %1278 = vmatpush1.msra.mxu0 0.0
    %1279 = vmatprep.subr.mxu0 0.0
    %1280 = vmatpush1.msra.mxu0 0.0
    %1281 = vmatprep.subr.mxu0 0.0
    %1282 = vmatpush1.msra.mxu0 0.0
    %1283 = vmatprep.subr.mxu0 0.0
    %1284 = vmatpush1.msra.mxu0 0.0
    %1285 = vmatprep.subr.mxu0 0.0
    %1286 = vmatpush1.msra.mxu0 0.0
    %1287 = vmatprep.subr.mxu0 0.0
    %1288 = vmatpush1.msra.mxu0 0.0
    %1289 = vmatprep.subr.mxu0 0.0
    %1290 = vmatpush1.msra.mxu0 0.0
    %1291 = vmatprep.subr.mxu0 0.0
    %1292 = vmatpush1.msra.mxu0 0.0
    %1293 = vmatprep.subr.mxu0 0.0
    %1294 = vmatpush1.msra.mxu0 0.0
    %1295 = vmatprep.subr.mxu0 0.0
    %1296 = vmatpush1.msra.mxu0 0.0
    %1297 = vmatprep.subr.mxu0 0.0
    %1298 = vmatpush1.msra.mxu0 0.0
    %1299 = vmatprep.subr.mxu0 0.0
    %1300 = vmatpush1.msra.mxu0 0.0
    %1301 = vmatprep.subr.mxu0 0.0
    %1302 = vmatpush1.msra.mxu0 0.0
    %1303 = vmatprep.subr.mxu0 0.0
    %1304 = vmatpush1.msra.mxu0 0.0
    %1305 = vmatprep.subr.mxu0 0.0
    %1306 = vmatpush1.msra.mxu0 0.0
    %1307 = vmatprep.subr.mxu0 0.0
    %1308 = vmatpush1.msra.mxu0 0.0
    %1309 = vmatprep.subr.mxu0 0.0
    %1310 = vmatpush1.msra.mxu0 0.0
    %1311 = vmatprep.subr.mxu0 0.0
    %1312 = vmatpush1.msra.mxu0 0.0
    %1313 = vmatprep.subr.mxu0 0.0
    %1314 = vmatpush1.msra.mxu0 0.0
    %1315 = vmatprep.subr.mxu0 0.0
    %1316 = vmatpush1.msra.mxu0 0.0
    %1317 = vmatprep.subr.mxu0 0.0
    %1318 = vmatpush1.msra.mxu0 0.0
    %1319 = vmatprep.subr.mxu0 0.0
    %1320 = vmatpush1.msra.mxu0 0.0
    %1321 = vmatprep.subr.mxu0 0.0
    %1322 = vmatpush1.msra.mxu0 0.0
    %1323 = vmatprep.subr.mxu0 0.0
    %1324 = vmatpush1.msra.mxu0 0.0
    %1325 = vmatprep.subr.mxu0 0.0
    %1326 = vmatpush1.msra.mxu0 0.0
    %1327 = vmatprep.mubr.f32.mxu0 0.0
    %1328 = vmatmul.mubr.f32.gmra.mrb[0].mxu0 %v911
    %v1329 = vpop.f32.mrb[0].mxu0
    %v1330 = vadd.f32 %v900, %v1329
    %v1331 = vpop.f32.mrb[0].mxu0
    %1332 = vdwg.mxu0
    %1333 = vmatprep.subr.mxu0 0.0
    %1334 = vmatpush1.msra.mxu0 %v237
    %1335 = vmatprep.subr.mxu0 0.0
    %1336 = vmatpush1.msra.mxu0 %v238
    %1337 = vmatprep.subr.mxu0 0.0
    %1338 = vmatpush1.msra.mxu0 %v239
    %1339 = vmatprep.subr.mxu0 0.0
    %1340 = vmatpush1.msra.mxu0 %v240
    %1341 = vmatprep.subr.mxu0 0.0
    %1342 = vmatpush1.msra.mxu0 %v241
    %1343 = vmatprep.subr.mxu0 0.0
    %1344 = vmatpush1.msra.mxu0 %v242
    %1345 = vmatprep.subr.mxu0 0.0
    %1346 = vmatpush1.msra.mxu0 0.0
    %1347 = vmatprep.subr.mxu0 0.0
    %1348 = vmatpush1.msra.mxu0 0.0
    %1349 = vmatprep.subr.mxu0 0.0
    %1350 = vmatpush1.msra.mxu0 0.0
    %1351 = vmatprep.subr.mxu0 0.0
    %1352 = vmatpush1.msra.mxu0 0.0
    %1353 = vmatprep.subr.mxu0 0.0
    %1354 = vmatpush1.msra.mxu0 0.0
    %1355 = vmatprep.subr.mxu0 0.0
    %1356 = vmatpush1.msra.mxu0 0.0
    %1357 = vmatprep.subr.mxu0 0.0
    %1358 = vmatpush1.msra.mxu0 0.0
    %1359 = vmatprep.subr.mxu0 0.0
    %1360 = vmatpush1.msra.mxu0 0.0
    %1361 = vmatprep.subr.mxu0 0.0
    %1362 = vmatpush1.msra.mxu0 0.0
    %1363 = vmatprep.subr.mxu0 0.0
    %1364 = vmatpush1.msra.mxu0 0.0
    %1365 = vmatprep.subr.mxu0 0.0
    %1366 = vmatpush1.msra.mxu0 0.0
    %1367 = vmatprep.subr.mxu0 0.0
    %1368 = vmatpush1.msra.mxu0 0.0
    %1369 = vmatprep.subr.mxu0 0.0
    %1370 = vmatpush1.msra.mxu0 0.0
    %1371 = vmatprep.subr.mxu0 0.0
    %1372 = vmatpush1.msra.mxu0 0.0
    %1373 = vmatprep.subr.mxu0 0.0
    %1374 = vmatpush1.msra.mxu0 0.0
    %1375 = vmatprep.subr.mxu0 0.0
    %1376 = vmatpush1.msra.mxu0 0.0
    %1377 = vmatprep.subr.mxu0 0.0
    %1378 = vmatpush1.msra.mxu0 0.0
    %1379 = vmatprep.subr.mxu0 0.0
    %1380 = vmatpush1.msra.mxu0 0.0
    %1381 = vmatprep.subr.mxu0 0.0
    %1382 = vmatpush1.msra.mxu0 0.0
    %1383 = vmatprep.subr.mxu0 0.0
    %1384 = vmatpush1.msra.mxu0 0.0
    %1385 = vmatprep.subr.mxu0 0.0
    %1386 = vmatpush1.msra.mxu0 0.0
    %1387 = vmatprep.subr.mxu0 0.0
    %1388 = vmatpush1.msra.mxu0 0.0
    %1389 = vmatprep.subr.mxu0 0.0
    %1390 = vmatpush1.msra.mxu0 0.0
    %1391 = vmatprep.subr.mxu0 0.0
    %1392 = vmatpush1.msra.mxu0 0.0
    %1393 = vmatprep.subr.mxu0 0.0
    %1394 = vmatpush1.msra.mxu0 0.0
    %1395 = vmatprep.subr.mxu0 0.0
    %1396 = vmatpush1.msra.mxu0 0.0
    %1397 = vmatprep.mubr.f32.mxu0 0.0
    %1398 = vmatmul.mubr.f32.gmra.mrb[0].mxu0 %v911
    %v1399 = vpop.f32.mrb[0].mxu0
    %v1400 = vadd.f32 %v904, %v1399
    %v1401 = vpop.f32.mrb[0].mxu0
    %1402 = vdwg.mxu0
    %1403 = vmatprep.subr.mxu0 0.0
    %1404 = vmatpush1.msra.mxu0 %v243
    %1405 = vmatprep.subr.mxu0 0.0
    %1406 = vmatpush1.msra.mxu0 %v244
    %1407 = vmatprep.subr.mxu0 0.0
    %1408 = vmatpush1.msra.mxu0 %v245
    %1409 = vmatprep.subr.mxu0 0.0
    %1410 = vmatpush1.msra.mxu0 %v246
    %1411 = vmatprep.subr.mxu0 0.0
    %1412 = vmatpush1.msra.mxu0 %v247
    %1413 = vmatprep.subr.mxu0 0.0
    %1414 = vmatpush1.msra.mxu0 %v248
    %1415 = vmatprep.subr.mxu0 0.0
    %1416 = vmatpush1.msra.mxu0 0.0
    %1417 = vmatprep.subr.mxu0 0.0
    %1418 = vmatpush1.msra.mxu0 0.0
    %1419 = vmatprep.subr.mxu0 0.0
    %1420 = vmatpush1.msra.mxu0 0.0
    %1421 = vmatprep.subr.mxu0 0.0
    %1422 = vmatpush1.msra.mxu0 0.0
    %1423 = vmatprep.subr.mxu0 0.0
    %1424 = vmatpush1.msra.mxu0 0.0
    %1425 = vmatprep.subr.mxu0 0.0
    %1426 = vmatpush1.msra.mxu0 0.0
    %1427 = vmatprep.subr.mxu0 0.0
    %1428 = vmatpush1.msra.mxu0 0.0
    %1429 = vmatprep.subr.mxu0 0.0
    %1430 = vmatpush1.msra.mxu0 0.0
    %1431 = vmatprep.subr.mxu0 0.0
    %1432 = vmatpush1.msra.mxu0 0.0
    %1433 = vmatprep.subr.mxu0 0.0
    %1434 = vmatpush1.msra.mxu0 0.0
    %1435 = vmatprep.subr.mxu0 0.0
    %1436 = vmatpush1.msra.mxu0 0.0
    %1437 = vmatprep.subr.mxu0 0.0
    %1438 = vmatpush1.msra.mxu0 0.0
    %1439 = vmatprep.subr.mxu0 0.0
    %1440 = vmatpush1.msra.mxu0 0.0
    %1441 = vmatprep.subr.mxu0 0.0
    %1442 = vmatpush1.msra.mxu0 0.0
    %1443 = vmatprep.subr.mxu0 0.0
    %1444 = vmatpush1.msra.mxu0 0.0
    %1445 = vmatprep.subr.mxu0 0.0
    %1446 = vmatpush1.msra.mxu0 0.0
    %1447 = vmatprep.subr.mxu0 0.0
    %1448 = vmatpush1.msra.mxu0 0.0
    %1449 = vmatprep.subr.mxu0 0.0
    %1450 = vmatpush1.msra.mxu0 0.0
    %1451 = vmatprep.subr.mxu0 0.0
    %1452 = vmatpush1.msra.mxu0 0.0
    %1453 = vmatprep.subr.mxu0 0.0
    %1454 = vmatpush1.msra.mxu0 0.0
    %1455 = vmatprep.subr.mxu0 0.0
    %1456 = vmatpush1.msra.mxu0 0.0
    %1457 = vmatprep.subr.mxu0 0.0
    %1458 = vmatpush1.msra.mxu0 0.0
    %1459 = vmatprep.subr.mxu0 0.0
    %1460 = vmatpush1.msra.mxu0 0.0
    %1461 = vmatprep.subr.mxu0 0.0
    %1462 = vmatpush1.msra.mxu0 0.0
    %1463 = vmatprep.subr.mxu0 0.0
    %1464 = vmatpush1.msra.mxu0 0.0
    %1465 = vmatprep.subr.mxu0 0.0
    %1466 = vmatpush1.msra.mxu0 0.0
    %1467 = vmatprep.mubr.f32.mxu0 0.0
    %1468 = vmatmul.mubr.f32.gmra.mrb[0].mxu0 %v911
    %v1469 = vpop.f32.mrb[0].mxu0
    %v1470 = vadd.f32 %v908, %v1469
    %v1471 = vpop.f32.mrb[0].mxu0
    %1472 = vdwg.mxu0
    %vm1473 = vcmask 130048
    %v1475 = vsel %vm1473, %v384, 0
    %v1478 = vsel %vm1473, %v980, 0
    %1480 = vmatprep.subr.mxu0 0.0
    %1481 = vmatpush1.xpose.msra.mxu0 %v1478
    %1482 = vmatprep.subr.mxu0 0.0
    %1483 = vmatpush1.xpose.msra.mxu0 0.0
    %1484 = vmatprep.subr.mxu0 0.0
    %1485 = vmatpush1.xpose.msra.mxu0 0.0
    %1486 = vmatprep.subr.mxu0 0.0
    %1487 = vmatpush1.xpose.msra.mxu0 0.0
    %1488 = vmatprep.subr.mxu0 0.0
    %1489 = vmatpush1.xpose.msra.mxu0 0.0
    %1490 = vmatprep.subr.mxu0 0.0
    %1491 = vmatpush1.xpose.msra.mxu0 0.0
    %1492 = vmatprep.subr.mxu0 0.0
    %1493 = vmatpush1.xpose.msra.mxu0 0.0
    %1494 = vmatprep.subr.mxu0 0.0
    %1495 = vmatpush1.xpose.msra.mxu0 0.0
    %1496 = vmatprep.subr.mxu0 0.0
    %1497 = vmatpush1.xpose.msra.mxu0 0.0
    %1498 = vmatprep.subr.mxu0 0.0
    %1499 = vmatpush1.xpose.msra.mxu0 0.0
    %1500 = vmatprep.subr.mxu0 0.0
    %1501 = vmatpush1.xpose.msra.mxu0 0.0
    %1502 = vmatprep.subr.mxu0 0.0
    %1503 = vmatpush1.xpose.msra.mxu0 0.0
    %1504 = vmatprep.subr.mxu0 0.0
    %1505 = vmatpush1.xpose.msra.mxu0 0.0
    %1506 = vmatprep.subr.mxu0 0.0
    %1507 = vmatpush1.xpose.msra.mxu0 0.0
    %1508 = vmatprep.subr.mxu0 0.0
    %1509 = vmatpush1.xpose.msra.mxu0 0.0
    %1510 = vmatprep.subr.mxu0 0.0
    %1511 = vmatpush1.xpose.msra.mxu0 0.0
    %1512 = vmatprep.subr.mxu0 0.0
    %1513 = vmatpush1.xpose.msra.mxu0 0.0
    %1514 = vmatprep.subr.mxu0 0.0
    %1515 = vmatpush1.xpose.msra.mxu0 0.0
    %1516 = vmatprep.subr.mxu0 0.0
    %1517 = vmatpush1.xpose.msra.mxu0 0.0
    %1518 = vmatprep.subr.mxu0 0.0
    %1519 = vmatpush1.xpose.msra.mxu0 0.0
    %1520 = vmatprep.subr.mxu0 0.0
    %1521 = vmatpush1.xpose.msra.mxu0 0.0
    %1522 = vmatprep.subr.mxu0 0.0
    %1523 = vmatpush1.xpose.msra.mxu0 0.0
    %1524 = vmatprep.subr.mxu0 0.0
    %1525 = vmatpush1.xpose.msra.mxu0 0.0
    %1526 = vmatprep.subr.mxu0 0.0
    %1527 = vmatpush1.xpose.msra.mxu0 0.0
    %1528 = vmatprep.subr.mxu0 0.0
    %1529 = vmatpush1.xpose.msra.mxu0 0.0
    %1530 = vmatprep.subr.mxu0 0.0
    %1531 = vmatpush1.xpose.msra.mxu0 0.0
    %1532 = vmatprep.subr.mxu0 0.0
    %1533 = vmatpush1.xpose.msra.mxu0 0.0
    %1534 = vmatprep.subr.mxu0 0.0
    %1535 = vmatpush1.xpose.msra.mxu0 0.0
    %1536 = vmatprep.subr.mxu0 0.0
    %1537 = vmatpush1.xpose.msra.mxu0 0.0
    %1538 = vmatprep.subr.mxu0 0.0
    %1539 = vmatpush1.xpose.msra.mxu0 0.0
    %1540 = vmatprep.subr.mxu0 0.0
    %1541 = vmatpush1.xpose.msra.mxu0 0.0
    %1542 = vmatprep.subr.mxu0 0.0
    %1543 = vmatpush1.xpose.msra.mxu0 0.0
    %1544 = vmatprep.mubr.f32.mxu0 0.0
    %1545 = vmatmul.mubr.f32.gmra.mrb[0].mxu0 %v1475
    %v1546 = vpop.f32.mrb[0].mxu0
    %v1547 = vadd.f32 0.0, %v1546
    %v1548 = vpop.f32.mrb[0].mxu0
    %1549 = vdwg.mxu0
    %v1551 = vsel %vm1473, %v454, 0
    %v1554 = vsel %vm1473, %v1050, 0
    %1556 = vmatprep.subr.mxu0 0.0
    %1557 = vmatpush1.xpose.msra.mxu0 %v1554
    %1558 = vmatprep.subr.mxu0 0.0
    %1559 = vmatpush1.xpose.msra.mxu0 0.0
    %1560 = vmatprep.subr.mxu0 0.0
    %1561 = vmatpush1.xpose.msra.mxu0 0.0
    %1562 = vmatprep.subr.mxu0 0.0
    %1563 = vmatpush1.xpose.msra.mxu0 0.0
    %1564 = vmatprep.subr.mxu0 0.0
    %1565 = vmatpush1.xpose.msra.mxu0 0.0
    %1566 = vmatprep.subr.mxu0 0.0
    %1567 = vmatpush1.xpose.msra.mxu0 0.0
    %1568 = vmatprep.subr.mxu0 0.0
    %1569 = vmatpush1.xpose.msra.mxu0 0.0
    %1570 = vmatprep.subr.mxu0 0.0
    %1571 = vmatpush1.xpose.msra.mxu0 0.0
    %1572 = vmatprep.subr.mxu0 0.0
    %1573 = vmatpush1.xpose.msra.mxu0 0.0
    %1574 = vmatprep.subr.mxu0 0.0
    %1575 = vmatpush1.xpose.msra.mxu0 0.0
    %1576 = vmatprep.subr.mxu0 0.0
    %1577 = vmatpush1.xpose.msra.mxu0 0.0
    %1578 = vmatprep.subr.mxu0 0.0
    %1579 = vmatpush1.xpose.msra.mxu0 0.0
    %1580 = vmatprep.subr.mxu0 0.0
    %1581 = vmatpush1.xpose.msra.mxu0 0.0
    %1582 = vmatprep.subr.mxu0 0.0
    %1583 = vmatpush1.xpose.msra.mxu0 0.0
    %1584 = vmatprep.subr.mxu0 0.0
    %1585 = vmatpush1.xpose.msra.mxu0 0.0
    %1586 = vmatprep.subr.mxu0 0.0
    %1587 = vmatpush1.xpose.msra.mxu0 0.0
    %1588 = vmatprep.subr.mxu0 0.0
    %1589 = vmatpush1.xpose.msra.mxu0 0.0
    %1590 = vmatprep.subr.mxu0 0.0
    %1591 = vmatpush1.xpose.msra.mxu0 0.0
    %1592 = vmatprep.subr.mxu0 0.0
    %1593 = vmatpush1.xpose.msra.mxu0 0.0
    %1594 = vmatprep.subr.mxu0 0.0
    %1595 = vmatpush1.xpose.msra.mxu0 0.0
    %1596 = vmatprep.subr.mxu0 0.0
    %1597 = vmatpush1.xpose.msra.mxu0 0.0
    %1598 = vmatprep.subr.mxu0 0.0
    %1599 = vmatpush1.xpose.msra.mxu0 0.0
    %1600 = vmatprep.subr.mxu0 0.0
    %1601 = vmatpush1.xpose.msra.mxu0 0.0
    %1602 = vmatprep.subr.mxu0 0.0
    %1603 = vmatpush1.xpose.msra.mxu0 0.0
    %1604 = vmatprep.subr.mxu0 0.0
    %1605 = vmatpush1.xpose.msra.mxu0 0.0
    %1606 = vmatprep.subr.mxu0 0.0
    %1607 = vmatpush1.xpose.msra.mxu0 0.0
    %1608 = vmatprep.subr.mxu0 0.0
    %1609 = vmatpush1.xpose.msra.mxu0 0.0
    %1610 = vmatprep.subr.mxu0 0.0
    %1611 = vmatpush1.xpose.msra.mxu0 0.0
    %1612 = vmatprep.subr.mxu0 0.0
    %1613 = vmatpush1.xpose.msra.mxu0 0.0
    %1614 = vmatprep.subr.mxu0 0.0
    %1615 = vmatpush1.xpose.msra.mxu0 0.0
    %1616 = vmatprep.subr.mxu0 0.0
    %1617 = vmatpush1.xpose.msra.mxu0 0.0
    %1618 = vmatprep.subr.mxu0 0.0
    %1619 = vmatpush1.xpose.msra.mxu0 0.0
    %1620 = vmatprep.mubr.f32.mxu0 0.0
    %1621 = vmatmul.mubr.f32.gmra.mrb[0].mxu0 %v1551
    %v1622 = vpop.f32.mrb[0].mxu0
    %v1623 = vadd.f32 0.0, %v1622
    %v1624 = vpop.f32.mrb[0].mxu0
    %1625 = vdwg.mxu0
    %v1627 = vsel %vm1473, %v524, 0
    %v1630 = vsel %vm1473, %v1120, 0
    %1632 = vmatprep.subr.mxu0 0.0
    %1633 = vmatpush1.xpose.msra.mxu0 %v1630
    %1634 = vmatprep.subr.mxu0 0.0
    %1635 = vmatpush1.xpose.msra.mxu0 0.0
    %1636 = vmatprep.subr.mxu0 0.0
    %1637 = vmatpush1.xpose.msra.mxu0 0.0
    %1638 = vmatprep.subr.mxu0 0.0
    %1639 = vmatpush1.xpose.msra.mxu0 0.0
    %1640 = vmatprep.subr.mxu0 0.0
    %1641 = vmatpush1.xpose.msra.mxu0 0.0
    %1642 = vmatprep.subr.mxu0 0.0
    %1643 = vmatpush1.xpose.msra.mxu0 0.0
    %1644 = vmatprep.subr.mxu0 0.0
    %1645 = vmatpush1.xpose.msra.mxu0 0.0
    %1646 = vmatprep.subr.mxu0 0.0
    %1647 = vmatpush1.xpose.msra.mxu0 0.0
    %1648 = vmatprep.subr.mxu0 0.0
    %1649 = vmatpush1.xpose.msra.mxu0 0.0
    %1650 = vmatprep.subr.mxu0 0.0
    %1651 = vmatpush1.xpose.msra.mxu0 0.0
    %1652 = vmatprep.subr.mxu0 0.0
    %1653 = vmatpush1.xpose.msra.mxu0 0.0
    %1654 = vmatprep.subr.mxu0 0.0
    %1655 = vmatpush1.xpose.msra.mxu0 0.0
    %1656 = vmatprep.subr.mxu0 0.0
    %1657 = vmatpush1.xpose.msra.mxu0 0.0
    %1658 = vmatprep.subr.mxu0 0.0
    %1659 = vmatpush1.xpose.msra.mxu0 0.0
    %1660 = vmatprep.subr.mxu0 0.0
    %1661 = vmatpush1.xpose.msra.mxu0 0.0
    %1662 = vmatprep.subr.mxu0 0.0
    %1663 = vmatpush1.xpose.msra.mxu0 0.0
    %1664 = vmatprep.subr.mxu0 0.0
    %1665 = vmatpush1.xpose.msra.mxu0 0.0
    %1666 = vmatprep.subr.mxu0 0.0
    %1667 = vmatpush1.xpose.msra.mxu0 0.0
    %1668 = vmatprep.subr.mxu0 0.0
    %1669 = vmatpush1.xpose.msra.mxu0 0.0
    %1670 = vmatprep.subr.mxu0 0.0
    %1671 = vmatpush1.xpose.msra.mxu0 0.0
    %1672 = vmatprep.subr.mxu0 0.0
    %1673 = vmatpush1.xpose.msra.mxu0 0.0
    %1674 = vmatprep.subr.mxu0 0.0
    %1675 = vmatpush1.xpose.msra.mxu0 0.0
    %1676 = vmatprep.subr.mxu0 0.0
    %1677 = vmatpush1.xpose.msra.mxu0 0.0
    %1678 = vmatprep.subr.mxu0 0.0
    %1679 = vmatpush1.xpose.msra.mxu0 0.0
    %1680 = vmatprep.subr.mxu0 0.0
    %1681 = vmatpush1.xpose.msra.mxu0 0.0
    %1682 = vmatprep.subr.mxu0 0.0
    %1683 = vmatpush1.xpose.msra.mxu0 0.0
    %1684 = vmatprep.subr.mxu0 0.0
    %1685 = vmatpush1.xpose.msra.mxu0 0.0
    %1686 = vmatprep.subr.mxu0 0.0
    %1687 = vmatpush1.xpose.msra.mxu0 0.0
    %1688 = vmatprep.subr.mxu0 0.0
    %1689 = vmatpush1.xpose.msra.mxu0 0.0
    %1690 = vmatprep.subr.mxu0 0.0
    %1691 = vmatpush1.xpose.msra.mxu0 0.0
    %1692 = vmatprep.subr.mxu0 0.0
    %1693 = vmatpush1.xpose.msra.mxu0 0.0
    %1694 = vmatprep.subr.mxu0 0.0
    %1695 = vmatpush1.xpose.msra.mxu0 0.0
    %1696 = vmatprep.mubr.f32.mxu0 0.0
    %1697 = vmatmul.mubr.f32.gmra.mrb[0].mxu0 %v1627
    %v1698 = vpop.f32.mrb[0].mxu0
    %v1699 = vadd.f32 0.0, %v1698
    %v1700 = vpop.f32.mrb[0].mxu0
    %1701 = vdwg.mxu0
    %v1703 = vsel %vm1473, %v594, 0
    %v1706 = vsel %vm1473, %v1190, 0
    %1708 = vmatprep.subr.mxu0 0.0
    %1709 = vmatpush1.xpose.msra.mxu0 %v1706
    %1710 = vmatprep.subr.mxu0 0.0
    %1711 = vmatpush1.xpose.msra.mxu0 0.0
    %1712 = vmatprep.subr.mxu0 0.0
    %1713 = vmatpush1.xpose.msra.mxu0 0.0
    %1714 = vmatprep.subr.mxu0 0.0
    %1715 = vmatpush1.xpose.msra.mxu0 0.0
    %1716 = vmatprep.subr.mxu0 0.0
    %1717 = vmatpush1.xpose.msra.mxu0 0.0
    %1718 = vmatprep.subr.mxu0 0.0
    %1719 = vmatpush1.xpose.msra.mxu0 0.0
    %1720 = vmatprep.subr.mxu0 0.0
    %1721 = vmatpush1.xpose.msra.mxu0 0.0
    %1722 = vmatprep.subr.mxu0 0.0
    %1723 = vmatpush1.xpose.msra.mxu0 0.0
    %1724 = vmatprep.subr.mxu0 0.0
    %1725 = vmatpush1.xpose.msra.mxu0 0.0
    %1726 = vmatprep.subr.mxu0 0.0
    %1727 = vmatpush1.xpose.msra.mxu0 0.0
    %1728 = vmatprep.subr.mxu0 0.0
    %1729 = vmatpush1.xpose.msra.mxu0 0.0
    %1730 = vmatprep.subr.mxu0 0.0
    %1731 = vmatpush1.xpose.msra.mxu0 0.0
    %1732 = vmatprep.subr.mxu0 0.0
    %1733 = vmatpush1.xpose.msra.mxu0 0.0
    %1734 = vmatprep.subr.mxu0 0.0
    %1735 = vmatpush1.xpose.msra.mxu0 0.0
    %1736 = vmatprep.subr.mxu0 0.0
    %1737 = vmatpush1.xpose.msra.mxu0 0.0
    %1738 = vmatprep.subr.mxu0 0.0
    %1739 = vmatpush1.xpose.msra.mxu0 0.0
    %1740 = vmatprep.subr.mxu0 0.0
    %1741 = vmatpush1.xpose.msra.mxu0 0.0
    %1742 = vmatprep.subr.mxu0 0.0
    %1743 = vmatpush1.xpose.msra.mxu0 0.0
    %1744 = vmatprep.subr.mxu0 0.0
    %1745 = vmatpush1.xpose.msra.mxu0 0.0
    %1746 = vmatprep.subr.mxu0 0.0
    %1747 = vmatpush1.xpose.msra.mxu0 0.0
    %1748 = vmatprep.subr.mxu0 0.0
    %1749 = vmatpush1.xpose.msra.mxu0 0.0
    %1750 = vmatprep.subr.mxu0 0.0
    %1751 = vmatpush1.xpose.msra.mxu0 0.0
    %1752 = vmatprep.subr.mxu0 0.0
    %1753 = vmatpush1.xpose.msra.mxu0 0.0
    %1754 = vmatprep.subr.mxu0 0.0
    %1755 = vmatpush1.xpose.msra.mxu0 0.0
    %1756 = vmatprep.subr.mxu0 0.0
    %1757 = vmatpush1.xpose.msra.mxu0 0.0
    %1758 = vmatprep.subr.mxu0 0.0
    %1759 = vmatpush1.xpose.msra.mxu0 0.0
    %1760 = vmatprep.subr.mxu0 0.0
    %1761 = vmatpush1.xpose.msra.mxu0 0.0
    %1762 = vmatprep.subr.mxu0 0.0
    %1763 = vmatpush1.xpose.msra.mxu0 0.0
    %1764 = vmatprep.subr.mxu0 0.0
    %1765 = vmatpush1.xpose.msra.mxu0 0.0
    %1766 = vmatprep.subr.mxu0 0.0
    %1767 = vmatpush1.xpose.msra.mxu0 0.0
    %1768 = vmatprep.subr.mxu0 0.0
    %1769 = vmatpush1.xpose.msra.mxu0 0.0
    %1770 = vmatprep.subr.mxu0 0.0
    %1771 = vmatpush1.xpose.msra.mxu0 0.0
    %1772 = vmatprep.mubr.f32.mxu0 0.0
    %1773 = vmatmul.mubr.f32.gmra.mrb[0].mxu0 %v1703
    %v1774 = vpop.f32.mrb[0].mxu0
    %v1775 = vadd.f32 0.0, %v1774
    %v1776 = vpop.f32.mrb[0].mxu0
    %1777 = vdwg.mxu0
    %v1779 = vsel %vm1473, %v664, 0
    %v1782 = vsel %vm1473, %v1260, 0
    %1784 = vmatprep.subr.mxu0 0.0
    %1785 = vmatpush1.xpose.msra.mxu0 %v1782
    %1786 = vmatprep.subr.mxu0 0.0
    %1787 = vmatpush1.xpose.msra.mxu0 0.0
    %1788 = vmatprep.subr.mxu0 0.0
    %1789 = vmatpush1.xpose.msra.mxu0 0.0
    %1790 = vmatprep.subr.mxu0 0.0
    %1791 = vmatpush1.xpose.msra.mxu0 0.0
    %1792 = vmatprep.subr.mxu0 0.0
    %1793 = vmatpush1.xpose.msra.mxu0 0.0
    %1794 = vmatprep.subr.mxu0 0.0
    %1795 = vmatpush1.xpose.msra.mxu0 0.0
    %1796 = vmatprep.subr.mxu0 0.0
    %1797 = vmatpush1.xpose.msra.mxu0 0.0
    %1798 = vmatprep.subr.mxu0 0.0
    %1799 = vmatpush1.xpose.msra.mxu0 0.0
    %1800 = vmatprep.subr.mxu0 0.0
    %1801 = vmatpush1.xpose.msra.mxu0 0.0
    %1802 = vmatprep.subr.mxu0 0.0
    %1803 = vmatpush1.xpose.msra.mxu0 0.0
    %1804 = vmatprep.subr.mxu0 0.0
    %1805 = vmatpush1.xpose.msra.mxu0 0.0
    %1806 = vmatprep.subr.mxu0 0.0
    %1807 = vmatpush1.xpose.msra.mxu0 0.0
    %1808 = vmatprep.subr.mxu0 0.0
    %1809 = vmatpush1.xpose.msra.mxu0 0.0
    %1810 = vmatprep.subr.mxu0 0.0
    %1811 = vmatpush1.xpose.msra.mxu0 0.0
    %1812 = vmatprep.subr.mxu0 0.0
    %1813 = vmatpush1.xpose.msra.mxu0 0.0
    %1814 = vmatprep.subr.mxu0 0.0
    %1815 = vmatpush1.xpose.msra.mxu0 0.0
    %1816 = vmatprep.subr.mxu0 0.0
    %1817 = vmatpush1.xpose.msra.mxu0 0.0
    %1818 = vmatprep.subr.mxu0 0.0
    %1819 = vmatpush1.xpose.msra.mxu0 0.0
    %1820 = vmatprep.subr.mxu0 0.0
    %1821 = vmatpush1.xpose.msra.mxu0 0.0
    %1822 = vmatprep.subr.mxu0 0.0
    %1823 = vmatpush1.xpose.msra.mxu0 0.0
    %1824 = vmatprep.subr.mxu0 0.0
    %1825 = vmatpush1.xpose.msra.mxu0 0.0
    %1826 = vmatprep.subr.mxu0 0.0
    %1827 = vmatpush1.xpose.msra.mxu0 0.0
    %1828 = vmatprep.subr.mxu0 0.0
    %1829 = vmatpush1.xpose.msra.mxu0 0.0
    %1830 = vmatprep.subr.mxu0 0.0
    %1831 = vmatpush1.xpose.msra.mxu0 0.0
    %1832 = vmatprep.subr.mxu0 0.0
    %1833 = vmatpush1.xpose.msra.mxu0 0.0
    %1834 = vmatprep.subr.mxu0 0.0
    %1835 = vmatpush1.xpose.msra.mxu0 0.0
    %1836 = vmatprep.subr.mxu0 0.0
    %1837 = vmatpush1.xpose.msra.mxu0 0.0
    %1838 = vmatprep.subr.mxu0 0.0
    %1839 = vmatpush1.xpose.msra.mxu0 0.0
    %1840 = vmatprep.subr.mxu0 0.0
    %1841 = vmatpush1.xpose.msra.mxu0 0.0
    %1842 = vmatprep.subr.mxu0 0.0
    %1843 = vmatpush1.xpose.msra.mxu0 0.0
    %1844 = vmatprep.subr.mxu0 0.0
    %1845 = vmatpush1.xpose.msra.mxu0 0.0
    %1846 = vmatprep.subr.mxu0 0.0
    %1847 = vmatpush1.xpose.msra.mxu0 0.0
    %1848 = vmatprep.mubr.f32.mxu0 0.0
    %1849 = vmatmul.mubr.f32.gmra.mrb[0].mxu0 %v1779
    %v1850 = vpop.f32.mrb[0].mxu0
    %v1851 = vadd.f32 0.0, %v1850
    %v1852 = vpop.f32.mrb[0].mxu0
    %1853 = vdwg.mxu0
    %v1855 = vsel %vm1473, %v734, 0
    %v1858 = vsel %vm1473, %v1330, 0
    %1860 = vmatprep.subr.mxu0 0.0
    %1861 = vmatpush1.xpose.msra.mxu0 %v1858
    %1862 = vmatprep.subr.mxu0 0.0
    %1863 = vmatpush1.xpose.msra.mxu0 0.0
    %1864 = vmatprep.subr.mxu0 0.0
    %1865 = vmatpush1.xpose.msra.mxu0 0.0
    %1866 = vmatprep.subr.mxu0 0.0
    %1867 = vmatpush1.xpose.msra.mxu0 0.0
    %1868 = vmatprep.subr.mxu0 0.0
    %1869 = vmatpush1.xpose.msra.mxu0 0.0
    %1870 = vmatprep.subr.mxu0 0.0
    %1871 = vmatpush1.xpose.msra.mxu0 0.0
    %1872 = vmatprep.subr.mxu0 0.0
    %1873 = vmatpush1.xpose.msra.mxu0 0.0
    %1874 = vmatprep.subr.mxu0 0.0
    %1875 = vmatpush1.xpose.msra.mxu0 0.0
    %1876 = vmatprep.subr.mxu0 0.0
    %1877 = vmatpush1.xpose.msra.mxu0 0.0
    %1878 = vmatprep.subr.mxu0 0.0
    %1879 = vmatpush1.xpose.msra.mxu0 0.0
    %1880 = vmatprep.subr.mxu0 0.0
    %1881 = vmatpush1.xpose.msra.mxu0 0.0
    %1882 = vmatprep.subr.mxu0 0.0
    %1883 = vmatpush1.xpose.msra.mxu0 0.0
    %1884 = vmatprep.subr.mxu0 0.0
    %1885 = vmatpush1.xpose.msra.mxu0 0.0
    %1886 = vmatprep.subr.mxu0 0.0
    %1887 = vmatpush1.xpose.msra.mxu0 0.0
    %1888 = vmatprep.subr.mxu0 0.0
    %1889 = vmatpush1.xpose.msra.mxu0 0.0
    %1890 = vmatprep.subr.mxu0 0.0
    %1891 = vmatpush1.xpose.msra.mxu0 0.0
    %1892 = vmatprep.subr.mxu0 0.0
    %1893 = vmatpush1.xpose.msra.mxu0 0.0
    %1894 = vmatprep.subr.mxu0 0.0
    %1895 = vmatpush1.xpose.msra.mxu0 0.0
    %1896 = vmatprep.subr.mxu0 0.0
    %1897 = vmatpush1.xpose.msra.mxu0 0.0
    %1898 = vmatprep.subr.mxu0 0.0
    %1899 = vmatpush1.xpose.msra.mxu0 0.0
    %1900 = vmatprep.subr.mxu0 0.0
    %1901 = vmatpush1.xpose.msra.mxu0 0.0
    %1902 = vmatprep.subr.mxu0 0.0
    %1903 = vmatpush1.xpose.msra.mxu0 0.0
    %1904 = vmatprep.subr.mxu0 0.0
    %1905 = vmatpush1.xpose.msra.mxu0 0.0
    %1906 = vmatprep.subr.mxu0 0.0
    %1907 = vmatpush1.xpose.msra.mxu0 0.0
    %1908 = vmatprep.subr.mxu0 0.0
    %1909 = vmatpush1.xpose.msra.mxu0 0.0
    %1910 = vmatprep.subr.mxu0 0.0
    %1911 = vmatpush1.xpose.msra.mxu0 0.0
    %1912 = vmatprep.subr.mxu0 0.0
    %1913 = vmatpush1.xpose.msra.mxu0 0.0
    %1914 = vmatprep.subr.mxu0 0.0
    %1915 = vmatpush1.xpose.msra.mxu0 0.0
    %1916 = vmatprep.subr.mxu0 0.0
    %1917 = vmatpush1.xpose.msra.mxu0 0.0
    %1918 = vmatprep.subr.mxu0 0.0
    %1919 = vmatpush1.xpose.msra.mxu0 0.0
    %1920 = vmatprep.subr.mxu0 0.0
    %1921 = vmatpush1.xpose.msra.mxu0 0.0
    %1922 = vmatprep.subr.mxu0 0.0
    %1923 = vmatpush1.xpose.msra.mxu0 0.0
    %1924 = vmatprep.mubr.f32.mxu0 0.0
    %1925 = vmatmul.mubr.f32.gmra.mrb[0].mxu0 %v1855
    %v1926 = vpop.f32.mrb[0].mxu0
    %v1927 = vadd.f32 0.0, %v1926
    %v1928 = vpop.f32.mrb[0].mxu0
    %1929 = vdwg.mxu0
    %v1931 = vsel %vm1473, %v804, 0
    %v1934 = vsel %vm1473, %v1400, 0
    %1936 = vmatprep.subr.mxu0 0.0
    %1937 = vmatpush1.xpose.msra.mxu0 %v1934
    %1938 = vmatprep.subr.mxu0 0.0
    %1939 = vmatpush1.xpose.msra.mxu0 0.0
    %1940 = vmatprep.subr.mxu0 0.0
    %1941 = vmatpush1.xpose.msra.mxu0 0.0
    %1942 = vmatprep.subr.mxu0 0.0
    %1943 = vmatpush1.xpose.msra.mxu0 0.0
    %1944 = vmatprep.subr.mxu0 0.0
    %1945 = vmatpush1.xpose.msra.mxu0 0.0
    %1946 = vmatprep.subr.mxu0 0.0
    %1947 = vmatpush1.xpose.msra.mxu0 0.0
    %1948 = vmatprep.subr.mxu0 0.0
    %1949 = vmatpush1.xpose.msra.mxu0 0.0
    %1950 = vmatprep.subr.mxu0 0.0
    %1951 = vmatpush1.xpose.msra.mxu0 0.0
    %1952 = vmatprep.subr.mxu0 0.0
    %1953 = vmatpush1.xpose.msra.mxu0 0.0
    %1954 = vmatprep.subr.mxu0 0.0
    %1955 = vmatpush1.xpose.msra.mxu0 0.0
    %1956 = vmatprep.subr.mxu0 0.0
    %1957 = vmatpush1.xpose.msra.mxu0 0.0
    %1958 = vmatprep.subr.mxu0 0.0
    %1959 = vmatpush1.xpose.msra.mxu0 0.0
    %1960 = vmatprep.subr.mxu0 0.0
    %1961 = vmatpush1.xpose.msra.mxu0 0.0
    %1962 = vmatprep.subr.mxu0 0.0
    %1963 = vmatpush1.xpose.msra.mxu0 0.0
    %1964 = vmatprep.subr.mxu0 0.0
    %1965 = vmatpush1.xpose.msra.mxu0 0.0
    %1966 = vmatprep.subr.mxu0 0.0
    %1967 = vmatpush1.xpose.msra.mxu0 0.0
    %1968 = vmatprep.subr.mxu0 0.0
    %1969 = vmatpush1.xpose.msra.mxu0 0.0
    %1970 = vmatprep.subr.mxu0 0.0
    %1971 = vmatpush1.xpose.msra.mxu0 0.0
    %1972 = vmatprep.subr.mxu0 0.0
    %1973 = vmatpush1.xpose.msra.mxu0 0.0
    %1974 = vmatprep.subr.mxu0 0.0
    %1975 = vmatpush1.xpose.msra.mxu0 0.0
    %1976 = vmatprep.subr.mxu0 0.0
    %1977 = vmatpush1.xpose.msra.mxu0 0.0
    %1978 = vmatprep.subr.mxu0 0.0
    %1979 = vmatpush1.xpose.msra.mxu0 0.0
    %1980 = vmatprep.subr.mxu0 0.0
    %1981 = vmatpush1.xpose.msra.mxu0 0.0
    %1982 = vmatprep.subr.mxu0 0.0
    %1983 = vmatpush1.xpose.msra.mxu0 0.0
    %1984 = vmatprep.subr.mxu0 0.0
    %1985 = vmatpush1.xpose.msra.mxu0 0.0
    %1986 = vmatprep.subr.mxu0 0.0
    %1987 = vmatpush1.xpose.msra.mxu0 0.0
    %1988 = vmatprep.subr.mxu0 0.0
    %1989 = vmatpush1.xpose.msra.mxu0 0.0
    %1990 = vmatprep.subr.mxu0 0.0
    %1991 = vmatpush1.xpose.msra.mxu0 0.0
    %1992 = vmatprep.subr.mxu0 0.0
    %1993 = vmatpush1.xpose.msra.mxu0 0.0
    %1994 = vmatprep.subr.mxu0 0.0
    %1995 = vmatpush1.xpose.msra.mxu0 0.0
    %1996 = vmatprep.subr.mxu0 0.0
    %1997 = vmatpush1.xpose.msra.mxu0 0.0
    %1998 = vmatprep.subr.mxu0 0.0
    %1999 = vmatpush1.xpose.msra.mxu0 0.0
    %2000 = vmatprep.mubr.f32.mxu0 0.0
    %2001 = vmatmul.mubr.f32.gmra.mrb[0].mxu0 %v1931
    %v2002 = vpop.f32.mrb[0].mxu0
    %v2003 = vadd.f32 0.0, %v2002
    %v2004 = vpop.f32.mrb[0].mxu0
    %2005 = vdwg.mxu0
    %v2007 = vsel %vm1473, %v874, 0
    %v2010 = vsel %vm1473, %v1470, 0
    %2012 = vmatprep.subr.mxu0 0.0
    %2013 = vmatpush1.xpose.msra.mxu0 %v2010
    %2014 = vmatprep.subr.mxu0 0.0
    %2015 = vmatpush1.xpose.msra.mxu0 0.0
    %2016 = vmatprep.subr.mxu0 0.0
    %2017 = vmatpush1.xpose.msra.mxu0 0.0
    %2018 = vmatprep.subr.mxu0 0.0
    %2019 = vmatpush1.xpose.msra.mxu0 0.0
    %2020 = vmatprep.subr.mxu0 0.0
    %2021 = vmatpush1.xpose.msra.mxu0 0.0
    %2022 = vmatprep.subr.mxu0 0.0
    %2023 = vmatpush1.xpose.msra.mxu0 0.0
    %2024 = vmatprep.subr.mxu0 0.0
    %2025 = vmatpush1.xpose.msra.mxu0 0.0
    %2026 = vmatprep.subr.mxu0 0.0
    %2027 = vmatpush1.xpose.msra.mxu0 0.0
    %2028 = vmatprep.subr.mxu0 0.0
    %2029 = vmatpush1.xpose.msra.mxu0 0.0
    %2030 = vmatprep.subr.mxu0 0.0
    %2031 = vmatpush1.xpose.msra.mxu0 0.0
    %2032 = vmatprep.subr.mxu0 0.0
    %2033 = vmatpush1.xpose.msra.mxu0 0.0
    %2034 = vmatprep.subr.mxu0 0.0
    %2035 = vmatpush1.xpose.msra.mxu0 0.0
    %2036 = vmatprep.subr.mxu0 0.0
    %2037 = vmatpush1.xpose.msra.mxu0 0.0
    %2038 = vmatprep.subr.mxu0 0.0
    %2039 = vmatpush1.xpose.msra.mxu0 0.0
    %2040 = vmatprep.subr.mxu0 0.0
    %2041 = vmatpush1.xpose.msra.mxu0 0.0
    %2042 = vmatprep.subr.mxu0 0.0
    %2043 = vmatpush1.xpose.msra.mxu0 0.0
    %2044 = vmatprep.subr.mxu0 0.0
    %2045 = vmatpush1.xpose.msra.mxu0 0.0
    %2046 = vmatprep.subr.mxu0 0.0
    %2047 = vmatpush1.xpose.msra.mxu0 0.0
    %2048 = vmatprep.subr.mxu0 0.0
    %2049 = vmatpush1.xpose.msra.mxu0 0.0
    %2050 = vmatprep.subr.mxu0 0.0
    %2051 = vmatpush1.xpose.msra.mxu0 0.0
    %2052 = vmatprep.subr.mxu0 0.0
    %2053 = vmatpush1.xpose.msra.mxu0 0.0
    %2054 = vmatprep.subr.mxu0 0.0
    %2055 = vmatpush1.xpose.msra.mxu0 0.0
    %2056 = vmatprep.subr.mxu0 0.0
    %2057 = vmatpush1.xpose.msra.mxu0 0.0
    %2058 = vmatprep.subr.mxu0 0.0
    %2059 = vmatpush1.xpose.msra.mxu0 0.0
    %2060 = vmatprep.subr.mxu0 0.0
    %2061 = vmatpush1.xpose.msra.mxu0 0.0
    %2062 = vmatprep.subr.mxu0 0.0
    %2063 = vmatpush1.xpose.msra.mxu0 0.0
    %2064 = vmatprep.subr.mxu0 0.0
    %2065 = vmatpush1.xpose.msra.mxu0 0.0
    %2066 = vmatprep.subr.mxu0 0.0
    %2067 = vmatpush1.xpose.msra.mxu0 0.0
    %2068 = vmatprep.subr.mxu0 0.0
    %2069 = vmatpush1.xpose.msra.mxu0 0.0
    %2070 = vmatprep.subr.mxu0 0.0
    %2071 = vmatpush1.xpose.msra.mxu0 0.0
    %2072 = vmatprep.subr.mxu0 0.0
    %2073 = vmatpush1.xpose.msra.mxu0 0.0
    %2074 = vmatprep.subr.mxu0 0.0
    %2075 = vmatpush1.xpose.msra.mxu0 0.0
    %2076 = vmatprep.mubr.f32.mxu0 0.0
    %2077 = vmatmul.mubr.f32.gmra.mrb[0].mxu0 %v2007
    %v2078 = vpop.f32.mrb[0].mxu0
    %v2079 = vadd.f32 0.0, %v2078
    %v2080 = vpop.f32.mrb[0].mxu0
    %2081 = vdwg.mxu0
    %vm2082 = vcmask 9216
    %v2083 = vsel %vm2082, %v1547, -inf
    %2084 = vmax.xlane.f32.xlu0 %v2083
    %v2085 = vpop.xlane.xlu0 %2084
    %v2086 = vsel %vm2082, %v1623, -inf
    %2087 = vmax.xlane.f32.xlu0 %v2086
    %v2088 = vpop.xlane.xlu0 %2087
    %v2089 = vsel %vm2082, %v1699, -inf
    %2090 = vmax.xlane.f32.xlu0 %v2089
    %v2091 = vpop.xlane.xlu0 %2090
    %v2092 = vsel %vm2082, %v1775, -inf
    %2093 = vmax.xlane.f32.xlu0 %v2092
    %v2094 = vpop.xlane.xlu0 %2093
    %v2095 = vsel %vm2082, %v1851, -inf
    %2096 = vmax.xlane.f32.xlu0 %v2095
    %v2097 = vpop.xlane.xlu0 %2096
    %v2098 = vsel %vm2082, %v1927, -inf
    %2099 = vmax.xlane.f32.xlu0 %v2098
    %v2100 = vpop.xlane.xlu0 %2099
    %v2101 = vsel %vm2082, %v2003, -inf
    %2102 = vmax.xlane.f32.xlu0 %v2101
    %v2103 = vpop.xlane.xlu0 %2102
    %v2104 = vsel %vm2082, %v2079, -inf
    %2105 = vmax.xlane.f32.xlu0 %v2104
    %v2106 = vpop.xlane.xlu0 %2105
    %v2107 = vsub.f32 %v1547, %v2085
    %v2108 = vsub.f32 %v1623, %v2088
    %v2109 = vsub.f32 %v1699, %v2091
    %v2110 = vsub.f32 %v1775, %v2094
    %v2111 = vsub.f32 %v1851, %v2097
    %v2112 = vsub.f32 %v1927, %v2100
    %v2113 = vsub.f32 %v2003, %v2103
    %v2114 = vsub.f32 %v2079, %v2106
    %v2115 = vmul.f32 %v2107, 1.442695
    %v2116 = vpow.pop %v2115
    %v2117 = vmul.f32 %v2108, 1.442695
    %v2118 = vpow.pop %v2117
    %v2119 = vmul.f32 %v2109, 1.442695
    %v2120 = vpow.pop %v2119
    %v2121 = vmul.f32 %v2110, 1.442695
    %v2122 = vpow.pop %v2121
    %v2123 = vmul.f32 %v2111, 1.442695
    %v2124 = vpow.pop %v2123
    %v2125 = vmul.f32 %v2112, 1.442695
    %v2126 = vpow.pop %v2125
    %v2127 = vmul.f32 %v2113, 1.442695
    %v2128 = vpow.pop %v2127
    %v2129 = vmul.f32 %v2114, 1.442695
    %v2130 = vpow.pop %v2129
    %v2131 = vsel %vm2082, %v2116, 0.0
    %2132 = vadd.xlane.f32.xlu0 %v2131
    %v2133 = vpop.xlane.xlu0 %2132
    %v2134 = vsel %vm2082, %v2118, 0.0
    %2135 = vadd.xlane.f32.xlu0 %v2134
    %v2136 = vpop.xlane.xlu0 %2135
    %v2137 = vsel %vm2082, %v2120, 0.0
    %2138 = vadd.xlane.f32.xlu0 %v2137
    %v2139 = vpop.xlane.xlu0 %2138
    %v2140 = vsel %vm2082, %v2122, 0.0
    %2141 = vadd.xlane.f32.xlu0 %v2140
    %v2142 = vpop.xlane.xlu0 %2141
    %v2143 = vsel %vm2082, %v2124, 0.0
    %2144 = vadd.xlane.f32.xlu0 %v2143
    %v2145 = vpop.xlane.xlu0 %2144
    %v2146 = vsel %vm2082, %v2126, 0.0
    %2147 = vadd.xlane.f32.xlu0 %v2146
    %v2148 = vpop.xlane.xlu0 %2147
    %v2149 = vsel %vm2082, %v2128, 0.0
    %2150 = vadd.xlane.f32.xlu0 %v2149
    %v2151 = vpop.xlane.xlu0 %2150
    %v2152 = vsel %vm2082, %v2130, 0.0
    %2153 = vadd.xlane.f32.xlu0 %v2152
    %v2154 = vpop.xlane.xlu0 %2153
    %v2155 = vrcp.pop %v2133
    %v2156 = vrcp.pop %v2136
    %v2157 = vrcp.pop %v2139
    %v2158 = vrcp.pop %v2142
    %v2159 = vrcp.pop %v2145
    %v2160 = vrcp.pop %v2148
    %v2161 = vrcp.pop %v2151
    %v2162 = vrcp.pop %v2154
    %v2163 = vmul.f32 %v2116, %v2155
    %v2164 = vmul.f32 %v2118, %v2156
    %v2165 = vmul.f32 %v2120, %v2157
    %v2166 = vmul.f32 %v2122, %v2158
    %v2167 = vmul.f32 %v2124, %v2159
    %v2168 = vmul.f32 %v2126, %v2160
    %v2169 = vmul.f32 %v2128, %v2161
    %v2170 = vmul.f32 %v2130, %v2162
    %vm2171 = vcmask 15360
    %v2173 = vsel %vm2171, %v2163, 0
    %vm2175 = vcmask 1041408
    %v2176 = vsel %vm2175, %v980, 0
    %2178 = vmatprep.subr.mxu0 0.0
    %2179 = vmatpush1.msra.mxu0 %v2176
    %2180 = vmatprep.subr.mxu0 0.0
    %2181 = vmatpush1.msra.mxu0 0.0
    %2182 = vmatprep.subr.mxu0 0.0
    %2183 = vmatpush1.msra.mxu0 0.0
    %2184 = vmatprep.subr.mxu0 0.0
    %2185 = vmatpush1.msra.mxu0 0.0
    %2186 = vmatprep.subr.mxu0 0.0
    %2187 = vmatpush1.msra.mxu0 0.0
    %2188 = vmatprep.subr.mxu0 0.0
    %2189 = vmatpush1.msra.mxu0 0.0
    %2190 = vmatprep.subr.mxu0 0.0
    %2191 = vmatpush1.msra.mxu0 0.0
    %2192 = vmatprep.subr.mxu0 0.0
    %2193 = vmatpush1.msra.mxu0 0.0
    %2194 = vmatprep.subr.mxu0 0.0
    %2195 = vmatpush1.msra.mxu0 0.0
    %2196 = vmatprep.subr.mxu0 0.0
    %2197 = vmatpush1.msra.mxu0 0.0
    %2198 = vmatprep.subr.mxu0 0.0
    %2199 = vmatpush1.msra.mxu0 0.0
    %2200 = vmatprep.subr.mxu0 0.0
    %2201 = vmatpush1.msra.mxu0 0.0
    %2202 = vmatprep.subr.mxu0 0.0
    %2203 = vmatpush1.msra.mxu0 0.0
    %2204 = vmatprep.subr.mxu0 0.0
    %2205 = vmatpush1.msra.mxu0 0.0
    %2206 = vmatprep.subr.mxu0 0.0
    %2207 = vmatpush1.msra.mxu0 0.0
    %2208 = vmatprep.subr.mxu0 0.0
    %2209 = vmatpush1.msra.mxu0 0.0
    %2210 = vmatprep.subr.mxu0 0.0
    %2211 = vmatpush1.msra.mxu0 0.0
    %2212 = vmatprep.subr.mxu0 0.0
    %2213 = vmatpush1.msra.mxu0 0.0
    %2214 = vmatprep.subr.mxu0 0.0
    %2215 = vmatpush1.msra.mxu0 0.0
    %2216 = vmatprep.subr.mxu0 0.0
    %2217 = vmatpush1.msra.mxu0 0.0
    %2218 = vmatprep.subr.mxu0 0.0
    %2219 = vmatpush1.msra.mxu0 0.0
    %2220 = vmatprep.subr.mxu0 0.0
    %2221 = vmatpush1.msra.mxu0 0.0
    %2222 = vmatprep.subr.mxu0 0.0
    %2223 = vmatpush1.msra.mxu0 0.0
    %2224 = vmatprep.subr.mxu0 0.0
    %2225 = vmatpush1.msra.mxu0 0.0
    %2226 = vmatprep.subr.mxu0 0.0
    %2227 = vmatpush1.msra.mxu0 0.0
    %2228 = vmatprep.subr.mxu0 0.0
    %2229 = vmatpush1.msra.mxu0 0.0
    %2230 = vmatprep.subr.mxu0 0.0
    %2231 = vmatpush1.msra.mxu0 0.0
    %2232 = vmatprep.subr.mxu0 0.0
    %2233 = vmatpush1.msra.mxu0 0.0
    %2234 = vmatprep.subr.mxu0 0.0
    %2235 = vmatpush1.msra.mxu0 0.0
    %2236 = vmatprep.subr.mxu0 0.0
    %2237 = vmatpush1.msra.mxu0 0.0
    %2238 = vmatprep.subr.mxu0 0.0
    %2239 = vmatpush1.msra.mxu0 0.0
    %2240 = vmatprep.subr.mxu0 0.0
    %2241 = vmatpush1.msra.mxu0 0.0
    %2242 = vmatprep.mubr.f32.mxu0 0.0
    %2243 = vmatmul.mubr.f32.gmra.mrb[0].mxu0 %v2173
    %v2244 = vpop.f32.mrb[0].mxu0
    %v2245 = vadd.f32 0.0, %v2244
    %v2246 = vpop.f32.mrb[0].mxu0
    %2247 = vdwg.mxu0
    %v2249 = vsel %vm2171, %v2164, 0
    %v2251 = vsel %vm2175, %v1050, 0
    %2253 = vmatprep.subr.mxu0 0.0
    %2254 = vmatpush1.msra.mxu0 %v2251
    %2255 = vmatprep.subr.mxu0 0.0
    %2256 = vmatpush1.msra.mxu0 0.0
    %2257 = vmatprep.subr.mxu0 0.0
    %2258 = vmatpush1.msra.mxu0 0.0
    %2259 = vmatprep.subr.mxu0 0.0
    %2260 = vmatpush1.msra.mxu0 0.0
    %2261 = vmatprep.subr.mxu0 0.0
    %2262 = vmatpush1.msra.mxu0 0.0
    %2263 = vmatprep.subr.mxu0 0.0
    %2264 = vmatpush1.msra.mxu0 0.0
    %2265 = vmatprep.subr.mxu0 0.0
    %2266 = vmatpush1.msra.mxu0 0.0
    %2267 = vmatprep.subr.mxu0 0.0
    %2268 = vmatpush1.msra.mxu0 0.0
    %2269 = vmatprep.subr.mxu0 0.0
    %2270 = vmatpush1.msra.mxu0 0.0
    %2271 = vmatprep.subr.mxu0 0.0
    %2272 = vmatpush1.msra.mxu0 0.0
    %2273 = vmatprep.subr.mxu0 0.0
    %2274 = vmatpush1.msra.mxu0 0.0
    %2275 = vmatprep.subr.mxu0 0.0
    %2276 = vmatpush1.msra.mxu0 0.0
    %2277 = vmatprep.subr.mxu0 0.0
    %2278 = vmatpush1.msra.mxu0 0.0
    %2279 = vmatprep.subr.mxu0 0.0
    %2280 = vmatpush1.msra.mxu0 0.0
    %2281 = vmatprep.subr.mxu0 0.0
    %2282 = vmatpush1.msra.mxu0 0.0
    %2283 = vmatprep.subr.mxu0 0.0
    %2284 = vmatpush1.msra.mxu0 0.0
    %2285 = vmatprep.subr.mxu0 0.0
    %2286 = vmatpush1.msra.mxu0 0.0
    %2287 = vmatprep.subr.mxu0 0.0
    %2288 = vmatpush1.msra.mxu0 0.0
    %2289 = vmatprep.subr.mxu0 0.0
    %2290 = vmatpush1.msra.mxu0 0.0
    %2291 = vmatprep.subr.mxu0 0.0
    %2292 = vmatpush1.msra.mxu0 0.0
    %2293 = vmatprep.subr.mxu0 0.0
    %2294 = vmatpush1.msra.mxu0 0.0
    %2295 = vmatprep.subr.mxu0 0.0
    %2296 = vmatpush1.msra.mxu0 0.0
    %2297 = vmatprep.subr.mxu0 0.0
    %2298 = vmatpush1.msra.mxu0 0.0
    %2299 = vmatprep.subr.mxu0 0.0
    %2300 = vmatpush1.msra.mxu0 0.0
    %2301 = vmatprep.subr.mxu0 0.0
    %2302 = vmatpush1.msra.mxu0 0.0
    %2303 = vmatprep.subr.mxu0 0.0
    %2304 = vmatpush1.msra.mxu0 0.0
    %2305 = vmatprep.subr.mxu0 0.0
    %2306 = vmatpush1.msra.mxu0 0.0
    %2307 = vmatprep.subr.mxu0 0.0
    %2308 = vmatpush1.msra.mxu0 0.0
    %2309 = vmatprep.subr.mxu0 0.0
    %2310 = vmatpush1.msra.mxu0 0.0
    %2311 = vmatprep.subr.mxu0 0.0
    %2312 = vmatpush1.msra.mxu0 0.0
    %2313 = vmatprep.subr.mxu0 0.0
    %2314 = vmatpush1.msra.mxu0 0.0
    %2315 = vmatprep.subr.mxu0 0.0
    %2316 = vmatpush1.msra.mxu0 0.0
    %2317 = vmatprep.mubr.f32.mxu0 0.0
    %2318 = vmatmul.mubr.f32.gmra.mrb[0].mxu0 %v2249
    %v2319 = vpop.f32.mrb[0].mxu0
    %v2320 = vadd.f32 0.0, %v2319
    %v2321 = vpop.f32.mrb[0].mxu0
    %2322 = vdwg.mxu0
    %v2324 = vsel %vm2171, %v2165, 0
    %v2326 = vsel %vm2175, %v1120, 0
    %2328 = vmatprep.subr.mxu0 0.0
    %2329 = vmatpush1.msra.mxu0 %v2326
    %2330 = vmatprep.subr.mxu0 0.0
    %2331 = vmatpush1.msra.mxu0 0.0
    %2332 = vmatprep.subr.mxu0 0.0
    %2333 = vmatpush1.msra.mxu0 0.0
    %2334 = vmatprep.subr.mxu0 0.0
    %2335 = vmatpush1.msra.mxu0 0.0
    %2336 = vmatprep.subr.mxu0 0.0
    %2337 = vmatpush1.msra.mxu0 0.0
    %2338 = vmatprep.subr.mxu0 0.0
    %2339 = vmatpush1.msra.mxu0 0.0
    %2340 = vmatprep.subr.mxu0 0.0
    %2341 = vmatpush1.msra.mxu0 0.0
    %2342 = vmatprep.subr.mxu0 0.0
    %2343 = vmatpush1.msra.mxu0 0.0
    %2344 = vmatprep.subr.mxu0 0.0
    %2345 = vmatpush1.msra.mxu0 0.0
    %2346 = vmatprep.subr.mxu0 0.0
    %2347 = vmatpush1.msra.mxu0 0.0
    %2348 = vmatprep.subr.mxu0 0.0
    %2349 = vmatpush1.msra.mxu0 0.0
    %2350 = vmatprep.subr.mxu0 0.0
    %2351 = vmatpush1.msra.mxu0 0.0
    %2352 = vmatprep.subr.mxu0 0.0
    %2353 = vmatpush1.msra.mxu0 0.0
    %2354 = vmatprep.subr.mxu0 0.0
    %2355 = vmatpush1.msra.mxu0 0.0
    %2356 = vmatprep.subr.mxu0 0.0
    %2357 = vmatpush1.msra.mxu0 0.0
    %2358 = vmatprep.subr.mxu0 0.0
    %2359 = vmatpush1.msra.mxu0 0.0
    %2360 = vmatprep.subr.mxu0 0.0
    %2361 = vmatpush1.msra.mxu0 0.0
    %2362 = vmatprep.subr.mxu0 0.0
    %2363 = vmatpush1.msra.mxu0 0.0
    %2364 = vmatprep.subr.mxu0 0.0
    %2365 = vmatpush1.msra.mxu0 0.0
    %2366 = vmatprep.subr.mxu0 0.0
    %2367 = vmatpush1.msra.mxu0 0.0
    %2368 = vmatprep.subr.mxu0 0.0
    %2369 = vmatpush1.msra.mxu0 0.0
    %2370 = vmatprep.subr.mxu0 0.0
    %2371 = vmatpush1.msra.mxu0 0.0
    %2372 = vmatprep.subr.mxu0 0.0
    %2373 = vmatpush1.msra.mxu0 0.0
    %2374 = vmatprep.subr.mxu0 0.0
    %2375 = vmatpush1.msra.mxu0 0.0
    %2376 = vmatprep.subr.mxu0 0.0
    %2377 = vmatpush1.msra.mxu0 0.0
    %2378 = vmatprep.subr.mxu0 0.0
    %2379 = vmatpush1.msra.mxu0 0.0
    %2380 = vmatprep.subr.mxu0 0.0
    %2381 = vmatpush1.msra.mxu0 0.0
    %2382 = vmatprep.subr.mxu0 0.0
    %2383 = vmatpush1.msra.mxu0 0.0
    %2384 = vmatprep.subr.mxu0 0.0
    %2385 = vmatpush1.msra.mxu0 0.0
    %2386 = vmatprep.subr.mxu0 0.0
    %2387 = vmatpush1.msra.mxu0 0.0
    %2388 = vmatprep.subr.mxu0 0.0
    %2389 = vmatpush1.msra.mxu0 0.0
    %2390 = vmatprep.subr.mxu0 0.0
    %2391 = vmatpush1.msra.mxu0 0.0
    %2392 = vmatprep.mubr.f32.mxu0 0.0
    %2393 = vmatmul.mubr.f32.gmra.mrb[0].mxu0 %v2324
    %v2394 = vpop.f32.mrb[0].mxu0
    %v2395 = vadd.f32 0.0, %v2394
    %v2396 = vpop.f32.mrb[0].mxu0
    %2397 = vdwg.mxu0
    %v2399 = vsel %vm2171, %v2166, 0
    %v2401 = vsel %vm2175, %v1190, 0
    %2403 = vmatprep.subr.mxu0 0.0
    %2404 = vmatpush1.msra.mxu0 %v2401
    %2405 = vmatprep.subr.mxu0 0.0
    %2406 = vmatpush1.msra.mxu0 0.0
    %2407 = vmatprep.subr.mxu0 0.0
    %2408 = vmatpush1.msra.mxu0 0.0
    %2409 = vmatprep.subr.mxu0 0.0
    %2410 = vmatpush1.msra.mxu0 0.0
    %2411 = vmatprep.subr.mxu0 0.0
    %2412 = vmatpush1.msra.mxu0 0.0
    %2413 = vmatprep.subr.mxu0 0.0
    %2414 = vmatpush1.msra.mxu0 0.0
    %2415 = vmatprep.subr.mxu0 0.0
    %2416 = vmatpush1.msra.mxu0 0.0
    %2417 = vmatprep.subr.mxu0 0.0
    %2418 = vmatpush1.msra.mxu0 0.0
    %2419 = vmatprep.subr.mxu0 0.0
    %2420 = vmatpush1.msra.mxu0 0.0
    %2421 = vmatprep.subr.mxu0 0.0
    %2422 = vmatpush1.msra.mxu0 0.0
    %2423 = vmatprep.subr.mxu0 0.0
    %2424 = vmatpush1.msra.mxu0 0.0
    %2425 = vmatprep.subr.mxu0 0.0
    %2426 = vmatpush1.msra.mxu0 0.0
    %2427 = vmatprep.subr.mxu0 0.0
    %2428 = vmatpush1.msra.mxu0 0.0
    %2429 = vmatprep.subr.mxu0 0.0
    %2430 = vmatpush1.msra.mxu0 0.0
    %2431 = vmatprep.subr.mxu0 0.0
    %2432 = vmatpush1.msra.mxu0 0.0
    %2433 = vmatprep.subr.mxu0 0.0
    %2434 = vmatpush1.msra.mxu0 0.0
    %2435 = vmatprep.subr.mxu0 0.0
    %2436 = vmatpush1.msra.mxu0 0.0
    %2437 = vmatprep.subr.mxu0 0.0
    %2438 = vmatpush1.msra.mxu0 0.0
    %2439 = vmatprep.subr.mxu0 0.0
    %2440 = vmatpush1.msra.mxu0 0.0
    %2441 = vmatprep.subr.mxu0 0.0
    %2442 = vmatpush1.msra.mxu0 0.0
    %2443 = vmatprep.subr.mxu0 0.0
    %2444 = vmatpush1.msra.mxu0 0.0
    %2445 = vmatprep.subr.mxu0 0.0
    %2446 = vmatpush1.msra.mxu0 0.0
    %2447 = vmatprep.subr.mxu0 0.0
    %2448 = vmatpush1.msra.mxu0 0.0
    %2449 = vmatprep.subr.mxu0 0.0
    %2450 = vmatpush1.msra.mxu0 0.0
    %2451 = vmatprep.subr.mxu0 0.0
    %2452 = vmatpush1.msra.mxu0 0.0
    %2453 = vmatprep.subr.mxu0 0.0
    %2454 = vmatpush1.msra.mxu0 0.0
    %2455 = vmatprep.subr.mxu0 0.0
    %2456 = vmatpush1.msra.mxu0 0.0
    %2457 = vmatprep.subr.mxu0 0.0
    %2458 = vmatpush1.msra.mxu0 0.0
    %2459 = vmatprep.subr.mxu0 0.0
    %2460 = vmatpush1.msra.mxu0 0.0
    %2461 = vmatprep.subr.mxu0 0.0
    %2462 = vmatpush1.msra.mxu0 0.0
    %2463 = vmatprep.subr.mxu0 0.0
    %2464 = vmatpush1.msra.mxu0 0.0
    %2465 = vmatprep.subr.mxu0 0.0
    %2466 = vmatpush1.msra.mxu0 0.0
    %2467 = vmatprep.mubr.f32.mxu0 0.0
    %2468 = vmatmul.mubr.f32.gmra.mrb[0].mxu0 %v2399
    %v2469 = vpop.f32.mrb[0].mxu0
    %v2470 = vadd.f32 0.0, %v2469
    %v2471 = vpop.f32.mrb[0].mxu0
    %2472 = vdwg.mxu0
    %v2474 = vsel %vm2171, %v2167, 0
    %v2476 = vsel %vm2175, %v1260, 0
    %2478 = vmatprep.subr.mxu0 0.0
    %2479 = vmatpush1.msra.mxu0 %v2476
    %2480 = vmatprep.subr.mxu0 0.0
    %2481 = vmatpush1.msra.mxu0 0.0
    %2482 = vmatprep.subr.mxu0 0.0
    %2483 = vmatpush1.msra.mxu0 0.0
    %2484 = vmatprep.subr.mxu0 0.0
    %2485 = vmatpush1.msra.mxu0 0.0
    %2486 = vmatprep.subr.mxu0 0.0
    %2487 = vmatpush1.msra.mxu0 0.0
    %2488 = vmatprep.subr.mxu0 0.0
    %2489 = vmatpush1.msra.mxu0 0.0
    %2490 = vmatprep.subr.mxu0 0.0
    %2491 = vmatpush1.msra.mxu0 0.0
    %2492 = vmatprep.subr.mxu0 0.0
    %2493 = vmatpush1.msra.mxu0 0.0
    %2494 = vmatprep.subr.mxu0 0.0
    %2495 = vmatpush1.msra.mxu0 0.0
    %2496 = vmatprep.subr.mxu0 0.0
    %2497 = vmatpush1.msra.mxu0 0.0
    %2498 = vmatprep.subr.mxu0 0.0
    %2499 = vmatpush1.msra.mxu0 0.0
    %2500 = vmatprep.subr.mxu0 0.0
    %2501 = vmatpush1.msra.mxu0 0.0
    %2502 = vmatprep.subr.mxu0 0.0
    %2503 = vmatpush1.msra.mxu0 0.0
    %2504 = vmatprep.subr.mxu0 0.0
    %2505 = vmatpush1.msra.mxu0 0.0
    %2506 = vmatprep.subr.mxu0 0.0
    %2507 = vmatpush1.msra.mxu0 0.0
    %2508 = vmatprep.subr.mxu0 0.0
    %2509 = vmatpush1.msra.mxu0 0.0
    %2510 = vmatprep.subr.mxu0 0.0
    %2511 = vmatpush1.msra.mxu0 0.0
    %2512 = vmatprep.subr.mxu0 0.0
    %2513 = vmatpush1.msra.mxu0 0.0
    %2514 = vmatprep.subr.mxu0 0.0
    %2515 = vmatpush1.msra.mxu0 0.0
    %2516 = vmatprep.subr.mxu0 0.0
    %2517 = vmatpush1.msra.mxu0 0.0
    %2518 = vmatprep.subr.mxu0 0.0
    %2519 = vmatpush1.msra.mxu0 0.0
    %2520 = vmatprep.subr.mxu0 0.0
    %2521 = vmatpush1.msra.mxu0 0.0
    %2522 = vmatprep.subr.mxu0 0.0
    %2523 = vmatpush1.msra.mxu0 0.0
    %2524 = vmatprep.subr.mxu0 0.0
    %2525 = vmatpush1.msra.mxu0 0.0
    %2526 = vmatprep.subr.mxu0 0.0
    %2527 = vmatpush1.msra.mxu0 0.0
    %2528 = vmatprep.subr.mxu0 0.0
    %2529 = vmatpush1.msra.mxu0 0.0
    %2530 = vmatprep.subr.mxu0 0.0
    %2531 = vmatpush1.msra.mxu0 0.0
    %2532 = vmatprep.subr.mxu0 0.0
    %2533 = vmatpush1.msra.mxu0 0.0
    %2534 = vmatprep.subr.mxu0 0.0
    %2535 = vmatpush1.msra.mxu0 0.0
    %2536 = vmatprep.subr.mxu0 0.0
    %2537 = vmatpush1.msra.mxu0 0.0
    %2538 = vmatprep.subr.mxu0 0.0
    %2539 = vmatpush1.msra.mxu0 0.0
    %2540 = vmatprep.subr.mxu0 0.0
    %2541 = vmatpush1.msra.mxu0 0.0
    %2542 = vmatprep.mubr.f32.mxu0 0.0
    %2543 = vmatmul.mubr.f32.gmra.mrb[0].mxu0 %v2474
    %v2544 = vpop.f32.mrb[0].mxu0
    %v2545 = vadd.f32 0.0, %v2544
    %v2546 = vpop.f32.mrb[0].mxu0
    %2547 = vdwg.mxu0
    %v2549 = vsel %vm2171, %v2168, 0
    %v2551 = vsel %vm2175, %v1330, 0
    %2553 = vmatprep.subr.mxu0 0.0
    %2554 = vmatpush1.msra.mxu0 %v2551
    %2555 = vmatprep.subr.mxu0 0.0
    %2556 = vmatpush1.msra.mxu0 0.0
    %2557 = vmatprep.subr.mxu0 0.0
    %2558 = vmatpush1.msra.mxu0 0.0
    %2559 = vmatprep.subr.mxu0 0.0
    %2560 = vmatpush1.msra.mxu0 0.0
    %2561 = vmatprep.subr.mxu0 0.0
    %2562 = vmatpush1.msra.mxu0 0.0
    %2563 = vmatprep.subr.mxu0 0.0
    %2564 = vmatpush1.msra.mxu0 0.0
    %2565 = vmatprep.subr.mxu0 0.0
    %2566 = vmatpush1.msra.mxu0 0.0
    %2567 = vmatprep.subr.mxu0 0.0
    %2568 = vmatpush1.msra.mxu0 0.0
    %2569 = vmatprep.subr.mxu0 0.0
    %2570 = vmatpush1.msra.mxu0 0.0
    %2571 = vmatprep.subr.mxu0 0.0
    %2572 = vmatpush1.msra.mxu0 0.0
    %2573 = vmatprep.subr.mxu0 0.0
    %2574 = vmatpush1.msra.mxu0 0.0
    %2575 = vmatprep.subr.mxu0 0.0
    %2576 = vmatpush1.msra.mxu0 0.0
    %2577 = vmatprep.subr.mxu0 0.0
    %2578 = vmatpush1.msra.mxu0 0.0
    %2579 = vmatprep.subr.mxu0 0.0
    %2580 = vmatpush1.msra.mxu0 0.0
    %2581 = vmatprep.subr.mxu0 0.0
    %2582 = vmatpush1.msra.mxu0 0.0
    %2583 = vmatprep.subr.mxu0 0.0
    %2584 = vmatpush1.msra.mxu0 0.0
    %2585 = vmatprep.subr.mxu0 0.0
    %2586 = vmatpush1.msra.mxu0 0.0
    %2587 = vmatprep.subr.mxu0 0.0
    %2588 = vmatpush1.msra.mxu0 0.0
    %2589 = vmatprep.subr.mxu0 0.0
    %2590 = vmatpush1.msra.mxu0 0.0
    %2591 = vmatprep.subr.mxu0 0.0
    %2592 = vmatpush1.msra.mxu0 0.0
    %2593 = vmatprep.subr.mxu0 0.0
    %2594 = vmatpush1.msra.mxu0 0.0
    %2595 = vmatprep.subr.mxu0 0.0
    %2596 = vmatpush1.msra.mxu0 0.0
    %2597 = vmatprep.subr.mxu0 0.0
    %2598 = vmatpush1.msra.mxu0 0.0
    %2599 = vmatprep.subr.mxu0 0.0
    %2600 = vmatpush1.msra.mxu0 0.0
    %2601 = vmatprep.subr.mxu0 0.0
    %2602 = vmatpush1.msra.mxu0 0.0
    %2603 = vmatprep.subr.mxu0 0.0
    %2604 = vmatpush1.msra.mxu0 0.0
    %2605 = vmatprep.subr.mxu0 0.0
    %2606 = vmatpush1.msra.mxu0 0.0
    %2607 = vmatprep.subr.mxu0 0.0
    %2608 = vmatpush1.msra.mxu0 0.0
    %2609 = vmatprep.subr.mxu0 0.0
    %2610 = vmatpush1.msra.mxu0 0.0
    %2611 = vmatprep.subr.mxu0 0.0
    %2612 = vmatpush1.msra.mxu0 0.0
    %2613 = vmatprep.subr.mxu0 0.0
    %2614 = vmatpush1.msra.mxu0 0.0
    %2615 = vmatprep.subr.mxu0 0.0
    %2616 = vmatpush1.msra.mxu0 0.0
    %2617 = vmatprep.mubr.f32.mxu0 0.0
    %2618 = vmatmul.mubr.f32.gmra.mrb[0].mxu0 %v2549
    %v2619 = vpop.f32.mrb[0].mxu0
    %v2620 = vadd.f32 0.0, %v2619
    %v2621 = vpop.f32.mrb[0].mxu0
    %2622 = vdwg.mxu0
    %v2624 = vsel %vm2171, %v2169, 0
    %v2626 = vsel %vm2175, %v1400, 0
    %2628 = vmatprep.subr.mxu0 0.0
    %2629 = vmatpush1.msra.mxu0 %v2626
    %2630 = vmatprep.subr.mxu0 0.0
    %2631 = vmatpush1.msra.mxu0 0.0
    %2632 = vmatprep.subr.mxu0 0.0
    %2633 = vmatpush1.msra.mxu0 0.0
    %2634 = vmatprep.subr.mxu0 0.0
    %2635 = vmatpush1.msra.mxu0 0.0
    %2636 = vmatprep.subr.mxu0 0.0
    %2637 = vmatpush1.msra.mxu0 0.0
    %2638 = vmatprep.subr.mxu0 0.0
    %2639 = vmatpush1.msra.mxu0 0.0
    %2640 = vmatprep.subr.mxu0 0.0
    %2641 = vmatpush1.msra.mxu0 0.0
    %2642 = vmatprep.subr.mxu0 0.0
    %2643 = vmatpush1.msra.mxu0 0.0
    %2644 = vmatprep.subr.mxu0 0.0
    %2645 = vmatpush1.msra.mxu0 0.0
    %2646 = vmatprep.subr.mxu0 0.0
    %2647 = vmatpush1.msra.mxu0 0.0
    %2648 = vmatprep.subr.mxu0 0.0
    %2649 = vmatpush1.msra.mxu0 0.0
    %2650 = vmatprep.subr.mxu0 0.0
    %2651 = vmatpush1.msra.mxu0 0.0
    %2652 = vmatprep.subr.mxu0 0.0
    %2653 = vmatpush1.msra.mxu0 0.0
    %2654 = vmatprep.subr.mxu0 0.0
    %2655 = vmatpush1.msra.mxu0 0.0
    %2656 = vmatprep.subr.mxu0 0.0
    %2657 = vmatpush1.msra.mxu0 0.0
    %2658 = vmatprep.subr.mxu0 0.0
    %2659 = vmatpush1.msra.mxu0 0.0
    %2660 = vmatprep.subr.mxu0 0.0
    %2661 = vmatpush1.msra.mxu0 0.0
    %2662 = vmatprep.subr.mxu0 0.0
    %2663 = vmatpush1.msra.mxu0 0.0
    %2664 = vmatprep.subr.mxu0 0.0
    %2665 = vmatpush1.msra.mxu0 0.0
    %2666 = vmatprep.subr.mxu0 0.0
    %2667 = vmatpush1.msra.mxu0 0.0
    %2668 = vmatprep.subr.mxu0 0.0
    %2669 = vmatpush1.msra.mxu0 0.0
    %2670 = vmatprep.subr.mxu0 0.0
    %2671 = vmatpush1.msra.mxu0 0.0
    %2672 = vmatprep.subr.mxu0 0.0
    %2673 = vmatpush1.msra.mxu0 0.0
    %2674 = vmatprep.subr.mxu0 0.0
    %2675 = vmatpush1.msra.mxu0 0.0
    %2676 = vmatprep.subr.mxu0 0.0
    %2677 = vmatpush1.msra.mxu0 0.0
    %2678 = vmatprep.subr.mxu0 0.0
    %2679 = vmatpush1.msra.mxu0 0.0
    %2680 = vmatprep.subr.mxu0 0.0
    %2681 = vmatpush1.msra.mxu0 0.0
    %2682 = vmatprep.subr.mxu0 0.0
    %2683 = vmatpush1.msra.mxu0 0.0
    %2684 = vmatprep.subr.mxu0 0.0
    %2685 = vmatpush1.msra.mxu0 0.0
    %2686 = vmatprep.subr.mxu0 0.0
    %2687 = vmatpush1.msra.mxu0 0.0
    %2688 = vmatprep.subr.mxu0 0.0
    %2689 = vmatpush1.msra.mxu0 0.0
    %2690 = vmatprep.subr.mxu0 0.0
    %2691 = vmatpush1.msra.mxu0 0.0
    %2692 = vmatprep.mubr.f32.mxu0 0.0
    %2693 = vmatmul.mubr.f32.gmra.mrb[0].mxu0 %v2624
    %v2694 = vpop.f32.mrb[0].mxu0
    %v2695 = vadd.f32 0.0, %v2694
    %v2696 = vpop.f32.mrb[0].mxu0
    %2697 = vdwg.mxu0
    %v2699 = vsel %vm2171, %v2170, 0
    %v2701 = vsel %vm2175, %v1470, 0
    %2703 = vmatprep.subr.mxu0 0.0
    %2704 = vmatpush1.msra.mxu0 %v2701
    %2705 = vmatprep.subr.mxu0 0.0
    %2706 = vmatpush1.msra.mxu0 0.0
    %2707 = vmatprep.subr.mxu0 0.0
    %2708 = vmatpush1.msra.mxu0 0.0
    %2709 = vmatprep.subr.mxu0 0.0
    %2710 = vmatpush1.msra.mxu0 0.0
    %2711 = vmatprep.subr.mxu0 0.0
    %2712 = vmatpush1.msra.mxu0 0.0
    %2713 = vmatprep.subr.mxu0 0.0
    %2714 = vmatpush1.msra.mxu0 0.0
    %2715 = vmatprep.subr.mxu0 0.0
    %2716 = vmatpush1.msra.mxu0 0.0
    %2717 = vmatprep.subr.mxu0 0.0
    %2718 = vmatpush1.msra.mxu0 0.0
    %2719 = vmatprep.subr.mxu0 0.0
    %2720 = vmatpush1.msra.mxu0 0.0
    %2721 = vmatprep.subr.mxu0 0.0
    %2722 = vmatpush1.msra.mxu0 0.0
    %2723 = vmatprep.subr.mxu0 0.0
    %2724 = vmatpush1.msra.mxu0 0.0
    %2725 = vmatprep.subr.mxu0 0.0
    %2726 = vmatpush1.msra.mxu0 0.0
    %2727 = vmatprep.subr.mxu0 0.0
    %2728 = vmatpush1.msra.mxu0 0.0
    %2729 = vmatprep.subr.mxu0 0.0
    %2730 = vmatpush1.msra.mxu0 0.0
    %2731 = vmatprep.subr.mxu0 0.0
    %2732 = vmatpush1.msra.mxu0 0.0
    %2733 = vmatprep.subr.mxu0 0.0
    %2734 = vmatpush1.msra.mxu0 0.0
    %2735 = vmatprep.subr.mxu0 0.0
    %2736 = vmatpush1.msra.mxu0 0.0
    %2737 = vmatprep.subr.mxu0 0.0
    %2738 = vmatpush1.msra.mxu0 0.0
    %2739 = vmatprep.subr.mxu0 0.0
    %2740 = vmatpush1.msra.mxu0 0.0
    %2741 = vmatprep.subr.mxu0 0.0
    %2742 = vmatpush1.msra.mxu0 0.0
    %2743 = vmatprep.subr.mxu0 0.0
    %2744 = vmatpush1.msra.mxu0 0.0
    %2745 = vmatprep.subr.mxu0 0.0
    %2746 = vmatpush1.msra.mxu0 0.0
    %2747 = vmatprep.subr.mxu0 0.0
    %2748 = vmatpush1.msra.mxu0 0.0
    %2749 = vmatprep.subr.mxu0 0.0
    %2750 = vmatpush1.msra.mxu0 0.0
    %2751 = vmatprep.subr.mxu0 0.0
    %2752 = vmatpush1.msra.mxu0 0.0
    %2753 = vmatprep.subr.mxu0 0.0
    %2754 = vmatpush1.msra.mxu0 0.0
    %2755 = vmatprep.subr.mxu0 0.0
    %2756 = vmatpush1.msra.mxu0 0.0
    %2757 = vmatprep.subr.mxu0 0.0
    %2758 = vmatpush1.msra.mxu0 0.0
    %2759 = vmatprep.subr.mxu0 0.0
    %2760 = vmatpush1.msra.mxu0 0.0
    %2761 = vmatprep.subr.mxu0 0.0
    %2762 = vmatpush1.msra.mxu0 0.0
    %2763 = vmatprep.subr.mxu0 0.0
    %2764 = vmatpush1.msra.mxu0 0.0
    %2765 = vmatprep.subr.mxu0 0.0
    %2766 = vmatpush1.msra.mxu0 0.0
    %2767 = vmatprep.mubr.f32.mxu0 0.0
    %2768 = vmatmul.mubr.f32.gmra.mrb[0].mxu0 %v2699
    %v2769 = vpop.f32.mrb[0].mxu0
    %v2770 = vadd.f32 0.0, %v2769
    %v2771 = vpop.f32.mrb[0].mxu0
    %2772 = vdwg.mxu0
    %v2774 = vsel %vm1473, %v2245, 0
    %2776 = vmatprep.subr.mxu0 0.0
    %2777 = vmatpush1.msra.mxu0 %v265
    %2778 = vmatprep.subr.mxu0 0.0
    %2779 = vmatpush1.msra.mxu0 %v266
    %2780 = vmatprep.subr.mxu0 0.0
    %2781 = vmatpush1.msra.mxu0 0.0
    %2782 = vmatprep.subr.mxu0 0.0
    %2783 = vmatpush1.msra.mxu0 0.0
    %2784 = vmatprep.subr.mxu0 0.0
    %2785 = vmatpush1.msra.mxu0 0.0
    %2786 = vmatprep.subr.mxu0 0.0
    %2787 = vmatpush1.msra.mxu0 0.0
    %2788 = vmatprep.subr.mxu0 0.0
    %2789 = vmatpush1.msra.mxu0 0.0
    %2790 = vmatprep.subr.mxu0 0.0
    %2791 = vmatpush1.msra.mxu0 0.0
    %2792 = vmatprep.subr.mxu0 0.0
    %2793 = vmatpush1.msra.mxu0 0.0
    %2794 = vmatprep.subr.mxu0 0.0
    %2795 = vmatpush1.msra.mxu0 0.0
    %2796 = vmatprep.subr.mxu0 0.0
    %2797 = vmatpush1.msra.mxu0 0.0
    %2798 = vmatprep.subr.mxu0 0.0
    %2799 = vmatpush1.msra.mxu0 0.0
    %2800 = vmatprep.subr.mxu0 0.0
    %2801 = vmatpush1.msra.mxu0 0.0
    %2802 = vmatprep.subr.mxu0 0.0
    %2803 = vmatpush1.msra.mxu0 0.0
    %2804 = vmatprep.subr.mxu0 0.0
    %2805 = vmatpush1.msra.mxu0 0.0
    %2806 = vmatprep.subr.mxu0 0.0
    %2807 = vmatpush1.msra.mxu0 0.0
    %2808 = vmatprep.subr.mxu0 0.0
    %2809 = vmatpush1.msra.mxu0 0.0
    %2810 = vmatprep.subr.mxu0 0.0
    %2811 = vmatpush1.msra.mxu0 0.0
    %2812 = vmatprep.subr.mxu0 0.0
    %2813 = vmatpush1.msra.mxu0 0.0
    %2814 = vmatprep.subr.mxu0 0.0
    %2815 = vmatpush1.msra.mxu0 0.0
    %2816 = vmatprep.subr.mxu0 0.0
    %2817 = vmatpush1.msra.mxu0 0.0
    %2818 = vmatprep.subr.mxu0 0.0
    %2819 = vmatpush1.msra.mxu0 0.0
    %2820 = vmatprep.subr.mxu0 0.0
    %2821 = vmatpush1.msra.mxu0 0.0
    %2822 = vmatprep.subr.mxu0 0.0
    %2823 = vmatpush1.msra.mxu0 0.0
    %2824 = vmatprep.subr.mxu0 0.0
    %2825 = vmatpush1.msra.mxu0 0.0
    %2826 = vmatprep.subr.mxu0 0.0
    %2827 = vmatpush1.msra.mxu0 0.0
    %2828 = vmatprep.subr.mxu0 0.0
    %2829 = vmatpush1.msra.mxu0 0.0
    %2830 = vmatprep.subr.mxu0 0.0
    %2831 = vmatpush1.msra.mxu0 0.0
    %2832 = vmatprep.subr.mxu0 0.0
    %2833 = vmatpush1.msra.mxu0 0.0
    %2834 = vmatprep.subr.mxu0 0.0
    %2835 = vmatpush1.msra.mxu0 0.0
    %2836 = vmatprep.subr.mxu0 0.0
    %2837 = vmatpush1.msra.mxu0 0.0
    %2838 = vmatprep.subr.mxu0 0.0
    %2839 = vmatpush1.msra.mxu0 0.0
    %2840 = vmatprep.mubr.f32.mxu0 0.0
    %2841 = vmatmul.mubr.f32.gmra.mrb[0].mxu0 %v2774
    %v2842 = vpop.f32.mrb[0].mxu0
    %v2843 = vadd.f32 0.0, %v2842
    %v2844 = vpop.f32.mrb[0].mxu0
    %2845 = vdwg.mxu0
    %v2847 = vsel %vm1473, %v2320, 0
    %2849 = vmatprep.subr.mxu0 0.0
    %2850 = vmatpush1.msra.mxu0 %v267
    %2851 = vmatprep.subr.mxu0 0.0
    %2852 = vmatpush1.msra.mxu0 %v268
    %2853 = vmatprep.subr.mxu0 0.0
    %2854 = vmatpush1.msra.mxu0 0.0
    %2855 = vmatprep.subr.mxu0 0.0
    %2856 = vmatpush1.msra.mxu0 0.0
    %2857 = vmatprep.subr.mxu0 0.0
    %2858 = vmatpush1.msra.mxu0 0.0
    %2859 = vmatprep.subr.mxu0 0.0
    %2860 = vmatpush1.msra.mxu0 0.0
    %2861 = vmatprep.subr.mxu0 0.0
    %2862 = vmatpush1.msra.mxu0 0.0
    %2863 = vmatprep.subr.mxu0 0.0
    %2864 = vmatpush1.msra.mxu0 0.0
    %2865 = vmatprep.subr.mxu0 0.0
    %2866 = vmatpush1.msra.mxu0 0.0
    %2867 = vmatprep.subr.mxu0 0.0
    %2868 = vmatpush1.msra.mxu0 0.0
    %2869 = vmatprep.subr.mxu0 0.0
    %2870 = vmatpush1.msra.mxu0 0.0
    %2871 = vmatprep.subr.mxu0 0.0
    %2872 = vmatpush1.msra.mxu0 0.0
    %2873 = vmatprep.subr.mxu0 0.0
    %2874 = vmatpush1.msra.mxu0 0.0
    %2875 = vmatprep.subr.mxu0 0.0
    %2876 = vmatpush1.msra.mxu0 0.0
    %2877 = vmatprep.subr.mxu0 0.0
    %2878 = vmatpush1.msra.mxu0 0.0
    %2879 = vmatprep.subr.mxu0 0.0
    %2880 = vmatpush1.msra.mxu0 0.0
    %2881 = vmatprep.subr.mxu0 0.0
    %2882 = vmatpush1.msra.mxu0 0.0
    %2883 = vmatprep.subr.mxu0 0.0
    %2884 = vmatpush1.msra.mxu0 0.0
    %2885 = vmatprep.subr.mxu0 0.0
    %2886 = vmatpush1.msra.mxu0 0.0
    %2887 = vmatprep.subr.mxu0 0.0
    %2888 = vmatpush1.msra.mxu0 0.0
    %2889 = vmatprep.subr.mxu0 0.0
    %2890 = vmatpush1.msra.mxu0 0.0
    %2891 = vmatprep.subr.mxu0 0.0
    %2892 = vmatpush1.msra.mxu0 0.0
    %2893 = vmatprep.subr.mxu0 0.0
    %2894 = vmatpush1.msra.mxu0 0.0
    %2895 = vmatprep.subr.mxu0 0.0
    %2896 = vmatpush1.msra.mxu0 0.0
    %2897 = vmatprep.subr.mxu0 0.0
    %2898 = vmatpush1.msra.mxu0 0.0
    %2899 = vmatprep.subr.mxu0 0.0
    %2900 = vmatpush1.msra.mxu0 0.0
    %2901 = vmatprep.subr.mxu0 0.0
    %2902 = vmatpush1.msra.mxu0 0.0
    %2903 = vmatprep.subr.mxu0 0.0
    %2904 = vmatpush1.msra.mxu0 0.0
    %2905 = vmatprep.subr.mxu0 0.0
    %2906 = vmatpush1.msra.mxu0 0.0
    %2907 = vmatprep.subr.mxu0 0.0
    %2908 = vmatpush1.msra.mxu0 0.0
    %2909 = vmatprep.subr.mxu0 0.0
    %2910 = vmatpush1.msra.mxu0 0.0
    %2911 = vmatprep.subr.mxu0 0.0
    %2912 = vmatpush1.msra.mxu0 0.0
    %2913 = vmatprep.mubr.f32.mxu0 0.0
    %2914 = vmatmul.mubr.f32.gmra.mrb[0].mxu0 %v2847
    %v2915 = vpop.f32.mrb[0].mxu0
    %v2916 = vadd.f32 0.0, %v2915
    %v2917 = vpop.f32.mrb[0].mxu0
    %2918 = vdwg.mxu0
    %v2920 = vsel %vm1473, %v2395, 0
    %2922 = vmatprep.subr.mxu0 0.0
    %2923 = vmatpush1.msra.mxu0 %v269
    %2924 = vmatprep.subr.mxu0 0.0
    %2925 = vmatpush1.msra.mxu0 %v270
    %2926 = vmatprep.subr.mxu0 0.0
    %2927 = vmatpush1.msra.mxu0 0.0
    %2928 = vmatprep.subr.mxu0 0.0
    %2929 = vmatpush1.msra.mxu0 0.0
    %2930 = vmatprep.subr.mxu0 0.0
    %2931 = vmatpush1.msra.mxu0 0.0
    %2932 = vmatprep.subr.mxu0 0.0
    %2933 = vmatpush1.msra.mxu0 0.0
    %2934 = vmatprep.subr.mxu0 0.0
    %2935 = vmatpush1.msra.mxu0 0.0
    %2936 = vmatprep.subr.mxu0 0.0
    %2937 = vmatpush1.msra.mxu0 0.0
    %2938 = vmatprep.subr.mxu0 0.0
    %2939 = vmatpush1.msra.mxu0 0.0
    %2940 = vmatprep.subr.mxu0 0.0
    %2941 = vmatpush1.msra.mxu0 0.0
    %2942 = vmatprep.subr.mxu0 0.0
    %2943 = vmatpush1.msra.mxu0 0.0
    %2944 = vmatprep.subr.mxu0 0.0
    %2945 = vmatpush1.msra.mxu0 0.0
    %2946 = vmatprep.subr.mxu0 0.0
    %2947 = vmatpush1.msra.mxu0 0.0
    %2948 = vmatprep.subr.mxu0 0.0
    %2949 = vmatpush1.msra.mxu0 0.0
    %2950 = vmatprep.subr.mxu0 0.0
    %2951 = vmatpush1.msra.mxu0 0.0
    %2952 = vmatprep.subr.mxu0 0.0
    %2953 = vmatpush1.msra.mxu0 0.0
    %2954 = vmatprep.subr.mxu0 0.0
    %2955 = vmatpush1.msra.mxu0 0.0
    %2956 = vmatprep.subr.mxu0 0.0
    %2957 = vmatpush1.msra.mxu0 0.0
    %2958 = vmatprep.subr.mxu0 0.0
    %2959 = vmatpush1.msra.mxu0 0.0
    %2960 = vmatprep.subr.mxu0 0.0
    %2961 = vmatpush1.msra.mxu0 0.0
    %2962 = vmatprep.subr.mxu0 0.0
    %2963 = vmatpush1.msra.mxu0 0.0
    %2964 = vmatprep.subr.mxu0 0.0
    %2965 = vmatpush1.msra.mxu0 0.0
    %2966 = vmatprep.subr.mxu0 0.0
    %2967 = vmatpush1.msra.mxu0 0.0
    %2968 = vmatprep.subr.mxu0 0.0
    %2969 = vmatpush1.msra.mxu0 0.0
    %2970 = vmatprep.subr.mxu0 0.0
    %2971 = vmatpush1.msra.mxu0 0.0
    %2972 = vmatprep.subr.mxu0 0.0
    %2973 = vmatpush1.msra.mxu0 0.0
    %2974 = vmatprep.subr.mxu0 0.0
    %2975 = vmatpush1.msra.mxu0 0.0
    %2976 = vmatprep.subr.mxu0 0.0
    %2977 = vmatpush1.msra.mxu0 0.0
    %2978 = vmatprep.subr.mxu0 0.0
    %2979 = vmatpush1.msra.mxu0 0.0
    %2980 = vmatprep.subr.mxu0 0.0
    %2981 = vmatpush1.msra.mxu0 0.0
    %2982 = vmatprep.subr.mxu0 0.0
    %2983 = vmatpush1.msra.mxu0 0.0
    %2984 = vmatprep.subr.mxu0 0.0
    %2985 = vmatpush1.msra.mxu0 0.0
    %2986 = vmatprep.mubr.f32.mxu0 0.0
    %2987 = vmatmul.mubr.f32.gmra.mrb[0].mxu0 %v2920
    %v2988 = vpop.f32.mrb[0].mxu0
    %v2989 = vadd.f32 0.0, %v2988
    %v2990 = vpop.f32.mrb[0].mxu0
    %2991 = vdwg.mxu0
    %v2993 = vsel %vm1473, %v2470, 0
    %2995 = vmatprep.subr.mxu0 0.0
    %2996 = vmatpush1.msra.mxu0 %v271
    %2997 = vmatprep.subr.mxu0 0.0
    %2998 = vmatpush1.msra.mxu0 %v272
    %2999 = vmatprep.subr.mxu0 0.0
    %3000 = vmatpush1.msra.mxu0 0.0
    %3001 = vmatprep.subr.mxu0 0.0
    %3002 = vmatpush1.msra.mxu0 0.0
    %3003 = vmatprep.subr.mxu0 0.0
    %3004 = vmatpush1.msra.mxu0 0.0
    %3005 = vmatprep.subr.mxu0 0.0
    %3006 = vmatpush1.msra.mxu0 0.0
    %3007 = vmatprep.subr.mxu0 0.0
    %3008 = vmatpush1.msra.mxu0 0.0
    %3009 = vmatprep.subr.mxu0 0.0
    %3010 = vmatpush1.msra.mxu0 0.0
    %3011 = vmatprep.subr.mxu0 0.0
    %3012 = vmatpush1.msra.mxu0 0.0
    %3013 = vmatprep.subr.mxu0 0.0
    %3014 = vmatpush1.msra.mxu0 0.0
    %3015 = vmatprep.subr.mxu0 0.0
    %3016 = vmatpush1.msra.mxu0 0.0
    %3017 = vmatprep.subr.mxu0 0.0
    %3018 = vmatpush1.msra.mxu0 0.0
    %3019 = vmatprep.subr.mxu0 0.0
    %3020 = vmatpush1.msra.mxu0 0.0
    %3021 = vmatprep.subr.mxu0 0.0
    %3022 = vmatpush1.msra.mxu0 0.0
    %3023 = vmatprep.subr.mxu0 0.0
    %3024 = vmatpush1.msra.mxu0 0.0
    %3025 = vmatprep.subr.mxu0 0.0
    %3026 = vmatpush1.msra.mxu0 0.0
    %3027 = vmatprep.subr.mxu0 0.0
    %3028 = vmatpush1.msra.mxu0 0.0
    %3029 = vmatprep.subr.mxu0 0.0
    %3030 = vmatpush1.msra.mxu0 0.0
    %3031 = vmatprep.subr.mxu0 0.0
    %3032 = vmatpush1.msra.mxu0 0.0
    %3033 = vmatprep.subr.mxu0 0.0
    %3034 = vmatpush1.msra.mxu0 0.0
    %3035 = vmatprep.subr.mxu0 0.0
    %3036 = vmatpush1.msra.mxu0 0.0
    %3037 = vmatprep.subr.mxu0 0.0
    %3038 = vmatpush1.msra.mxu0 0.0
    %3039 = vmatprep.subr.mxu0 0.0
    %3040 = vmatpush1.msra.mxu0 0.0
    %3041 = vmatprep.subr.mxu0 0.0
    %3042 = vmatpush1.msra.mxu0 0.0
    %3043 = vmatprep.subr.mxu0 0.0
    %3044 = vmatpush1.msra.mxu0 0.0
    %3045 = vmatprep.subr.mxu0 0.0
    %3046 = vmatpush1.msra.mxu0 0.0
    %3047 = vmatprep.subr.mxu0 0.0
    %3048 = vmatpush1.msra.mxu0 0.0
    %3049 = vmatprep.subr.mxu0 0.0
    %3050 = vmatpush1.msra.mxu0 0.0
    %3051 = vmatprep.subr.mxu0 0.0
    %3052 = vmatpush1.msra.mxu0 0.0
    %3053 = vmatprep.subr.mxu0 0.0
    %3054 = vmatpush1.msra.mxu0 0.0
    %3055 = vmatprep.subr.mxu0 0.0
    %3056 = vmatpush1.msra.mxu0 0.0
    %3057 = vmatprep.subr.mxu0 0.0
    %3058 = vmatpush1.msra.mxu0 0.0
    %3059 = vmatprep.mubr.f32.mxu0 0.0
    %3060 = vmatmul.mubr.f32.gmra.mrb[0].mxu0 %v2993
    %v3061 = vpop.f32.mrb[0].mxu0
    %v3062 = vadd.f32 0.0, %v3061
    %v3063 = vpop.f32.mrb[0].mxu0
    %3064 = vdwg.mxu0
    %v3066 = vsel %vm1473, %v2545, 0
    %3068 = vmatprep.subr.mxu0 0.0
    %3069 = vmatpush1.msra.mxu0 %v273
    %3070 = vmatprep.subr.mxu0 0.0
    %3071 = vmatpush1.msra.mxu0 %v274
    %3072 = vmatprep.subr.mxu0 0.0
    %3073 = vmatpush1.msra.mxu0 0.0
    %3074 = vmatprep.subr.mxu0 0.0
    %3075 = vmatpush1.msra.mxu0 0.0
    %3076 = vmatprep.subr.mxu0 0.0
    %3077 = vmatpush1.msra.mxu0 0.0
    %3078 = vmatprep.subr.mxu0 0.0
    %3079 = vmatpush1.msra.mxu0 0.0
    %3080 = vmatprep.subr.mxu0 0.0
    %3081 = vmatpush1.msra.mxu0 0.0
    %3082 = vmatprep.subr.mxu0 0.0
    %3083 = vmatpush1.msra.mxu0 0.0
    %3084 = vmatprep.subr.mxu0 0.0
    %3085 = vmatpush1.msra.mxu0 0.0
    %3086 = vmatprep.subr.mxu0 0.0
    %3087 = vmatpush1.msra.mxu0 0.0
    %3088 = vmatprep.subr.mxu0 0.0
    %3089 = vmatpush1.msra.mxu0 0.0
    %3090 = vmatprep.subr.mxu0 0.0
    %3091 = vmatpush1.msra.mxu0 0.0
    %3092 = vmatprep.subr.mxu0 0.0
    %3093 = vmatpush1.msra.mxu0 0.0
    %3094 = vmatprep.subr.mxu0 0.0
    %3095 = vmatpush1.msra.mxu0 0.0
    %3096 = vmatprep.subr.mxu0 0.0
    %3097 = vmatpush1.msra.mxu0 0.0
    %3098 = vmatprep.subr.mxu0 0.0
    %3099 = vmatpush1.msra.mxu0 0.0
    %3100 = vmatprep.subr.mxu0 0.0
    %3101 = vmatpush1.msra.mxu0 0.0
    %3102 = vmatprep.subr.mxu0 0.0
    %3103 = vmatpush1.msra.mxu0 0.0
    %3104 = vmatprep.subr.mxu0 0.0
    %3105 = vmatpush1.msra.mxu0 0.0
    %3106 = vmatprep.subr.mxu0 0.0
    %3107 = vmatpush1.msra.mxu0 0.0
    %3108 = vmatprep.subr.mxu0 0.0
    %3109 = vmatpush1.msra.mxu0 0.0
    %3110 = vmatprep.subr.mxu0 0.0
    %3111 = vmatpush1.msra.mxu0 0.0
    %3112 = vmatprep.subr.mxu0 0.0
    %3113 = vmatpush1.msra.mxu0 0.0
    %3114 = vmatprep.subr.mxu0 0.0
    %3115 = vmatpush1.msra.mxu0 0.0
    %3116 = vmatprep.subr.mxu0 0.0
    %3117 = vmatpush1.msra.mxu0 0.0
    %3118 = vmatprep.subr.mxu0 0.0
    %3119 = vmatpush1.msra.mxu0 0.0
    %3120 = vmatprep.subr.mxu0 0.0
    %3121 = vmatpush1.msra.mxu0 0.0
    %3122 = vmatprep.subr.mxu0 0.0
    %3123 = vmatpush1.msra.mxu0 0.0
    %3124 = vmatprep.subr.mxu0 0.0
    %3125 = vmatpush1.msra.mxu0 0.0
    %3126 = vmatprep.subr.mxu0 0.0
    %3127 = vmatpush1.msra.mxu0 0.0
    %3128 = vmatprep.subr.mxu0 0.0
    %3129 = vmatpush1.msra.mxu0 0.0
    %3130 = vmatprep.subr.mxu0 0.0
    %3131 = vmatpush1.msra.mxu0 0.0
    %3132 = vmatprep.mubr.f32.mxu0 0.0
    %3133 = vmatmul.mubr.f32.gmra.mrb[0].mxu0 %v3066
    %v3134 = vpop.f32.mrb[0].mxu0
    %v3135 = vadd.f32 0.0, %v3134
    %v3136 = vpop.f32.mrb[0].mxu0
    %3137 = vdwg.mxu0
    %v3139 = vsel %vm1473, %v2620, 0
    %3141 = vmatprep.subr.mxu0 0.0
    %3142 = vmatpush1.msra.mxu0 %v275
    %3143 = vmatprep.subr.mxu0 0.0
    %3144 = vmatpush1.msra.mxu0 %v276
    %3145 = vmatprep.subr.mxu0 0.0
    %3146 = vmatpush1.msra.mxu0 0.0
    %3147 = vmatprep.subr.mxu0 0.0
    %3148 = vmatpush1.msra.mxu0 0.0
    %3149 = vmatprep.subr.mxu0 0.0
    %3150 = vmatpush1.msra.mxu0 0.0
    %3151 = vmatprep.subr.mxu0 0.0
    %3152 = vmatpush1.msra.mxu0 0.0
    %3153 = vmatprep.subr.mxu0 0.0
    %3154 = vmatpush1.msra.mxu0 0.0
    %3155 = vmatprep.subr.mxu0 0.0
    %3156 = vmatpush1.msra.mxu0 0.0
    %3157 = vmatprep.subr.mxu0 0.0
    %3158 = vmatpush1.msra.mxu0 0.0
    %3159 = vmatprep.subr.mxu0 0.0
    %3160 = vmatpush1.msra.mxu0 0.0
    %3161 = vmatprep.subr.mxu0 0.0
    %3162 = vmatpush1.msra.mxu0 0.0
    %3163 = vmatprep.subr.mxu0 0.0
    %3164 = vmatpush1.msra.mxu0 0.0
    %3165 = vmatprep.subr.mxu0 0.0
    %3166 = vmatpush1.msra.mxu0 0.0
    %3167 = vmatprep.subr.mxu0 0.0
    %3168 = vmatpush1.msra.mxu0 0.0
    %3169 = vmatprep.subr.mxu0 0.0
    %3170 = vmatpush1.msra.mxu0 0.0
    %3171 = vmatprep.subr.mxu0 0.0
    %3172 = vmatpush1.msra.mxu0 0.0
    %3173 = vmatprep.subr.mxu0 0.0
    %3174 = vmatpush1.msra.mxu0 0.0
    %3175 = vmatprep.subr.mxu0 0.0
    %3176 = vmatpush1.msra.mxu0 0.0
    %3177 = vmatprep.subr.mxu0 0.0
    %3178 = vmatpush1.msra.mxu0 0.0
    %3179 = vmatprep.subr.mxu0 0.0
    %3180 = vmatpush1.msra.mxu0 0.0
    %3181 = vmatprep.subr.mxu0 0.0
    %3182 = vmatpush1.msra.mxu0 0.0
    %3183 = vmatprep.subr.mxu0 0.0
    %3184 = vmatpush1.msra.mxu0 0.0
    %3185 = vmatprep.subr.mxu0 0.0
    %3186 = vmatpush1.msra.mxu0 0.0
    %3187 = vmatprep.subr.mxu0 0.0
    %3188 = vmatpush1.msra.mxu0 0.0
    %3189 = vmatprep.subr.mxu0 0.0
    %3190 = vmatpush1.msra.mxu0 0.0
    %3191 = vmatprep.subr.mxu0 0.0
    %3192 = vmatpush1.msra.mxu0 0.0
    %3193 = vmatprep.subr.mxu0 0.0
    %3194 = vmatpush1.msra.mxu0 0.0
    %3195 = vmatprep.subr.mxu0 0.0
    %3196 = vmatpush1.msra.mxu0 0.0
    %3197 = vmatprep.subr.mxu0 0.0
    %3198 = vmatpush1.msra.mxu0 0.0
    %3199 = vmatprep.subr.mxu0 0.0
    %3200 = vmatpush1.msra.mxu0 0.0
    %3201 = vmatprep.subr.mxu0 0.0
    %3202 = vmatpush1.msra.mxu0 0.0
    %3203 = vmatprep.subr.mxu0 0.0
    %3204 = vmatpush1.msra.mxu0 0.0
    %3205 = vmatprep.mubr.f32.mxu0 0.0
    %3206 = vmatmul.mubr.f32.gmra.mrb[0].mxu0 %v3139
    %v3207 = vpop.f32.mrb[0].mxu0
    %v3208 = vadd.f32 0.0, %v3207
    %v3209 = vpop.f32.mrb[0].mxu0
    %3210 = vdwg.mxu0
    %v3212 = vsel %vm1473, %v2695, 0
    %3214 = vmatprep.subr.mxu0 0.0
    %3215 = vmatpush1.msra.mxu0 %v277
    %3216 = vmatprep.subr.mxu0 0.0
    %3217 = vmatpush1.msra.mxu0 %v278
    %3218 = vmatprep.subr.mxu0 0.0
    %3219 = vmatpush1.msra.mxu0 0.0
    %3220 = vmatprep.subr.mxu0 0.0
    %3221 = vmatpush1.msra.mxu0 0.0
    %3222 = vmatprep.subr.mxu0 0.0
    %3223 = vmatpush1.msra.mxu0 0.0
    %3224 = vmatprep.subr.mxu0 0.0
    %3225 = vmatpush1.msra.mxu0 0.0
    %3226 = vmatprep.subr.mxu0 0.0
    %3227 = vmatpush1.msra.mxu0 0.0
    %3228 = vmatprep.subr.mxu0 0.0
    %3229 = vmatpush1.msra.mxu0 0.0
    %3230 = vmatprep.subr.mxu0 0.0
    %3231 = vmatpush1.msra.mxu0 0.0
    %3232 = vmatprep.subr.mxu0 0.0
    %3233 = vmatpush1.msra.mxu0 0.0
    %3234 = vmatprep.subr.mxu0 0.0
    %3235 = vmatpush1.msra.mxu0 0.0
    %3236 = vmatprep.subr.mxu0 0.0
    %3237 = vmatpush1.msra.mxu0 0.0
    %3238 = vmatprep.subr.mxu0 0.0
    %3239 = vmatpush1.msra.mxu0 0.0
    %3240 = vmatprep.subr.mxu0 0.0
    %3241 = vmatpush1.msra.mxu0 0.0
    %3242 = vmatprep.subr.mxu0 0.0
    %3243 = vmatpush1.msra.mxu0 0.0
    %3244 = vmatprep.subr.mxu0 0.0
    %3245 = vmatpush1.msra.mxu0 0.0
    %3246 = vmatprep.subr.mxu0 0.0
    %3247 = vmatpush1.msra.mxu0 0.0
    %3248 = vmatprep.subr.mxu0 0.0
    %3249 = vmatpush1.msra.mxu0 0.0
    %3250 = vmatprep.subr.mxu0 0.0
    %3251 = vmatpush1.msra.mxu0 0.0
    %3252 = vmatprep.subr.mxu0 0.0
    %3253 = vmatpush1.msra.mxu0 0.0
    %3254 = vmatprep.subr.mxu0 0.0
    %3255 = vmatpush1.msra.mxu0 0.0
    %3256 = vmatprep.subr.mxu0 0.0
    %3257 = vmatpush1.msra.mxu0 0.0
    %3258 = vmatprep.subr.mxu0 0.0
    %3259 = vmatpush1.msra.mxu0 0.0
    %3260 = vmatprep.subr.mxu0 0.0
    %3261 = vmatpush1.msra.mxu0 0.0
    %3262 = vmatprep.subr.mxu0 0.0
    %3263 = vmatpush1.msra.mxu0 0.0
    %3264 = vmatprep.subr.mxu0 0.0
    %3265 = vmatpush1.msra.mxu0 0.0
    %3266 = vmatprep.subr.mxu0 0.0
    %3267 = vmatpush1.msra.mxu0 0.0
    %3268 = vmatprep.subr.mxu0 0.0
    %3269 = vmatpush1.msra.mxu0 0.0
    %3270 = vmatprep.subr.mxu0 0.0
    %3271 = vmatpush1.msra.mxu0 0.0
    %3272 = vmatprep.subr.mxu0 0.0
    %3273 = vmatpush1.msra.mxu0 0.0
    %3274 = vmatprep.subr.mxu0 0.0
    %3275 = vmatpush1.msra.mxu0 0.0
    %3276 = vmatprep.subr.mxu0 0.0
    %3277 = vmatpush1.msra.mxu0 0.0
    %3278 = vmatprep.mubr.f32.mxu0 0.0
    %3279 = vmatmul.mubr.f32.gmra.mrb[0].mxu0 %v3212
    %v3280 = vpop.f32.mrb[0].mxu0
    %v3281 = vadd.f32 0.0, %v3280
    %v3282 = vpop.f32.mrb[0].mxu0
    %3283 = vdwg.mxu0
    %v3285 = vsel %vm1473, %v2770, 0
    %3287 = vmatprep.subr.mxu0 0.0
    %3288 = vmatpush1.msra.mxu0 %v279
    %3289 = vmatprep.subr.mxu0 0.0
    %3290 = vmatpush1.msra.mxu0 %v280
    %3291 = vmatprep.subr.mxu0 0.0
    %3292 = vmatpush1.msra.mxu0 0.0
    %3293 = vmatprep.subr.mxu0 0.0
    %3294 = vmatpush1.msra.mxu0 0.0
    %3295 = vmatprep.subr.mxu0 0.0
    %3296 = vmatpush1.msra.mxu0 0.0
    %3297 = vmatprep.subr.mxu0 0.0
    %3298 = vmatpush1.msra.mxu0 0.0
    %3299 = vmatprep.subr.mxu0 0.0
    %3300 = vmatpush1.msra.mxu0 0.0
    %3301 = vmatprep.subr.mxu0 0.0
    %3302 = vmatpush1.msra.mxu0 0.0
    %3303 = vmatprep.subr.mxu0 0.0
    %3304 = vmatpush1.msra.mxu0 0.0
    %3305 = vmatprep.subr.mxu0 0.0
    %3306 = vmatpush1.msra.mxu0 0.0
    %3307 = vmatprep.subr.mxu0 0.0
    %3308 = vmatpush1.msra.mxu0 0.0
    %3309 = vmatprep.subr.mxu0 0.0
    %3310 = vmatpush1.msra.mxu0 0.0
    %3311 = vmatprep.subr.mxu0 0.0
    %3312 = vmatpush1.msra.mxu0 0.0
    %3313 = vmatprep.subr.mxu0 0.0
    %3314 = vmatpush1.msra.mxu0 0.0
    %3315 = vmatprep.subr.mxu0 0.0
    %3316 = vmatpush1.msra.mxu0 0.0
    %3317 = vmatprep.subr.mxu0 0.0
    %3318 = vmatpush1.msra.mxu0 0.0
    %3319 = vmatprep.subr.mxu0 0.0
    %3320 = vmatpush1.msra.mxu0 0.0
    %3321 = vmatprep.subr.mxu0 0.0
    %3322 = vmatpush1.msra.mxu0 0.0
    %3323 = vmatprep.subr.mxu0 0.0
    %3324 = vmatpush1.msra.mxu0 0.0
    %3325 = vmatprep.subr.mxu0 0.0
    %3326 = vmatpush1.msra.mxu0 0.0
    %3327 = vmatprep.subr.mxu0 0.0
    %3328 = vmatpush1.msra.mxu0 0.0
    %3329 = vmatprep.subr.mxu0 0.0
    %3330 = vmatpush1.msra.mxu0 0.0
    %3331 = vmatprep.subr.mxu0 0.0
    %3332 = vmatpush1.msra.mxu0 0.0
    %3333 = vmatprep.subr.mxu0 0.0
    %3334 = vmatpush1.msra.mxu0 0.0
    %3335 = vmatprep.subr.mxu0 0.0
    %3336 = vmatpush1.msra.mxu0 0.0
    %3337 = vmatprep.subr.mxu0 0.0
    %3338 = vmatpush1.msra.mxu0 0.0
    %3339 = vmatprep.subr.mxu0 0.0
    %3340 = vmatpush1.msra.mxu0 0.0
    %3341 = vmatprep.subr.mxu0 0.0
    %3342 = vmatpush1.msra.mxu0 0.0
    %3343 = vmatprep.subr.mxu0 0.0
    %3344 = vmatpush1.msra.mxu0 0.0
    %3345 = vmatprep.subr.mxu0 0.0
    %3346 = vmatpush1.msra.mxu0 0.0
    %3347 = vmatprep.subr.mxu0 0.0
    %3348 = vmatpush1.msra.mxu0 0.0
    %3349 = vmatprep.subr.mxu0 0.0
    %3350 = vmatpush1.msra.mxu0 0.0
    %3351 = vmatprep.mubr.f32.mxu0 0.0
    %3352 = vmatmul.mubr.f32.gmra.mrb[0].mxu0 %v3285
    %v3353 = vpop.f32.mrb[0].mxu0
    %v3354 = vadd.f32 0.0, %v3353
    %v3355 = vpop.f32.mrb[0].mxu0
    %3356 = vdwg.mxu0
    %v3357 = vsel %vm2082, %v2843, 0.0
    %v3358 = vsel %vm2082, %v2916, 0.0
    %v3359 = vadd.f32 %v3357, %v3358
    %v3360 = vsel %vm2082, %v2989, 0.0
    %v3361 = vadd.f32 %v3359, %v3360
    %v3362 = vsel %vm2082, %v3062, 0.0
    %v3363 = vadd.f32 %v3361, %v3362
    %v3364 = vsel %vm2082, %v3135, 0.0
    %v3365 = vadd.f32 %v3363, %v3364
    %v3366 = vsel %vm2082, %v3208, 0.0
    %v3367 = vadd.f32 %v3365, %v3366
    %v3368 = vsel %vm2082, %v3281, 0.0
    %v3369 = vadd.f32 %v3367, %v3368
    %v3370 = vsel %vm2082, %v3354, 0.0
    %v3371 = vadd.f32 %v3369, %v3370
    %v3372 = vld [vmem:[%s2 + $0x7] ss:$0 sm:$0xff]
    %v3373 = vadd.f32 %v3371, %v3372
    %3374 = vst.msk [vmem:[#allocation2] sm:$0x3] %vm2082, %v3373
    // Predicated region
    $region18: #{lstm_att_forward.1} parent=1 // pred_check
      _
    $region19: #{lstm_att_forward.1} parent=1 // pred_check_branch
      %3376 = sbr.rel (0) target = $region21
    $region20: #{lstm_att_forward.1} parent=1 // pred_region
      %s3378 = ssub.s32 32, 32
      %3379 = vsyncadd [#allocation3], %s3378
      %s3381 = sshll.u32 [#allocation2], 4
      %s3382 = int_to_ptr.vmem [resolvable:$true] %s3381
      %3384 = dma.vmem_to_hbm [thread:$0]  %s3382, 32, %s4, [#allocation3]
    $region21: #{lstm_att_forward.1} parent=1 // pred_fallthru
      _
    // Predicated region
    $region22: #{lstm_att_forward.1} parent=1 // pred_check
      _
    $region23: #{lstm_att_forward.1} parent=1 // pred_check_branch
      %3386 = sbr.rel (0) target = $region25
    $region24: #{lstm_att_forward.1} parent=1 // pred_region
      %3387 = dma.done [#allocation3], 32
    $region25: #{lstm_att_forward.1} parent=1 // pred_fallthru
      _
    %3388 = vsyncpa [#allocation3], 1

</llo_original>
